<compile_context>
chip_gen: v5e
topology: v5e:2x2
jax: 0.10.0
libtpu: 0.0.40
codegen_flags: <defaults>
</compile_context>

<pallas_src>
import functools
import numpy as np
import jax
import jax.numpy as jnp
from jax import lax
from jax.experimental import pallas as pl
from jax.experimental.pallas import tpu as pltpu  # noqa: F401

MXU_DTYPE = jnp.bfloat16   # bf16 MXU operands, f32 accumulation


# ----------------------------- in-kernel helpers -----------------------------

def _mm(a, b):
    return jnp.dot(a.astype(MXU_DTYPE), b.astype(MXU_DTYPE),
                   preferred_element_type=jnp.float32)


def _mm_nt(a, b):
    # a @ b.T (contract last dims) without materializing the transpose.
    return lax.dot_general(a.astype(MXU_DTYPE), b.astype(MXU_DTYPE),
                           (((1,), (1,)), ((), ())),
                           preferred_element_type=jnp.float32)


def _layernorm(x, g, b, eps=1e-6):
    mu = jnp.mean(x, axis=-1, keepdims=True)
    var = jnp.mean((x - mu) ** 2, axis=-1, keepdims=True)
    return (x - mu) * lax.rsqrt(var + eps) * g + b


def _batchnorm(x, g, b, eps=1e-5):
    # Training-mode BatchNorm1d (biased batch variance, PyTorch normalization).
    mu = jnp.mean(x, axis=0, keepdims=True)
    var = jnp.mean((x - mu) ** 2, axis=0, keepdims=True)
    y = (x - mu) * lax.rsqrt(var + eps)
    if g is not None:
        y = y * g + b
    return y


def _softmax_lastdim(s):
    s = s - jnp.max(s, axis=-1, keepdims=True)
    p = jnp.exp(s)
    return p * pl.reciprocal(jnp.sum(p, axis=-1, keepdims=True), approx=True)


# ----------------------------- the fused kernel -----------------------------

def _simclr_fused_kernel(
    patches_ref, patch_w_ref, tok_bias_ref,
    head_mask_ref, attn_bias_ref,
    wq_ref, wk_ref, wv_ref, proj_w_ref, fc1_w_ref, fc2_w_ref, blk_vecs_ref,
    tail_vecs_ref, hw1_ref, hw2_ref, hw3_ref,
    sim_ref,
    *, depth, B_enc, B, S_pad, D, H, MLP, PD, duplicate, inv_t):

    f32 = jnp.float32
    R = B_enc * S_pad

    # --- patch embedding; tok_bias already carries cls+pos / patch_b+pos / zero pad ---
    x = _mm(patches_ref[...], patch_w_ref[...]) + tok_bias_ref[...]        # (R, D) f32

    head_mask = head_mask_ref[...]                                         # (H*R, D) f32
    attn_bias = attn_bias_ref[...]                                         # (H*R, R) f32

    # --- transformer blocks (statically unrolled; all weights resident in VMEM) ---
    for d in range(depth):
        vecs = blk_vecs_ref[d]                                             # (10, MLP) f32
        ln1_g = vecs[0:1, 0:D]
        ln1_b = vecs[1:2, 0:D]
        bq = vecs[2:3, 0:D]
        bk = vecs[3:4, 0:D]
        bv = vecs[4:5, 0:D]
        pb = vecs[5:6, 0:D]
        ln2_g = vecs[6:7, 0:D]
        ln2_b = vecs[7:8, 0:D]
        fb1 = vecs[8:9, 0:MLP]
        fb2 = vecs[9:10, 0:D]

        # attention: heads stacked along the query-row axis; one QK^T + one P@V matmul
        h1 = _layernorm(x, ln1_g, ln1_b).astype(MXU_DTYPE)
        q = jnp.dot(h1, wq_ref[d], preferred_element_type=f32) + bq        # scale folded
        k = jnp.dot(h1, wk_ref[d], preferred_element_type=f32) + bk
        v = jnp.dot(h1, wv_ref[d], preferred_element_type=f32) + bv
        q_s = jnp.concatenate([q] * H, axis=0) * head_mask                 # (H*R, D)
        s = _mm_nt(q_s, k) + attn_bias                                     # (H*R, R)
        p = _softmax_lastdim(s)
        o = _mm(p, v) * head_mask                                          # (H*R, D)
        attn = o[0:R]
        for hh in range(1, H):
            attn = attn + o[hh * R:(hh + 1) * R]                           # (R, D)
        x = x + jnp.dot(attn.astype(MXU_DTYPE), proj_w_ref[d],
                        preferred_element_type=f32) + pb

        # mlp
        h2 = _layernorm(x, ln2_g, ln2_b).astype(MXU_DTYPE)
        h2 = jnp.dot(h2, fc1_w_ref[d], preferred_element_type=f32) + fb1
        # TODO(synk): timm ViT uses exact (erf) GELU; tanh approximation used here
        # for robust Mosaic lowering.
        h2 = jax.nn.gelu(h2, approximate=True)
        x = x + jnp.dot(h2.astype(MXU_DTYPE), fc2_w_ref[d],
                        preferred_element_type=f32) + fb2

    # --- cls-token pooling (row 0 of each aligned S_pad block) + final LayerNorm ---
    cls = jnp.concatenate([x[b * S_pad:b * S_pad + 1, :] for b in range(B_enc)], axis=0)
    tail = tail_vecs_ref[...]                                              # (9, PD) f32
    cls = _layernorm(cls, tail[0:1, 0:D], tail[1:2, 0:D])

    # --- projection head (BatchNorm statistics per view, as in the reference) ---
    def head_fn(z):
        y = jnp.dot(z.astype(MXU_DTYPE), hw1_ref[...],
                    preferred_element_type=f32) + tail[2:3, 0:D]
        y = jnp.maximum(_batchnorm(y, tail[3:4, 0:D], tail[4:5, 0:D]), 0.0)
        y = jnp.dot(y.astype(MXU_DTYPE), hw2_ref[...],
                    preferred_element_type=f32) + tail[5:6, 0:D]
        y = jnp.maximum(_batchnorm(y, tail[6:7, 0:D], tail[7:8, 0:D]), 0.0)
        y = jnp.dot(y.astype(MXU_DTYPE), hw3_ref[...],
                    preferred_element_type=f32) + tail[8:9, 0:PD]
        return _batchnorm(y, None, None)          # BatchNorm1d(dim, affine=False)

    if duplicate:
        feats = head_fn(cls)                      # encoder_k shares params -> k == q
        ft = jnp.concatenate([feats, feats], axis=0)
    else:
        qf = head_fn(cls[0:B, :])
        kf = head_fn(cls[B:2 * B, :])
        ft = jnp.concatenate([qf, kf], axis=0)    # (2B, PD)

    # --- F.normalize(dim=1) with exact rsqrt, then f32 similarity / T ---
    sumsq = jnp.sum(ft * ft, axis=-1, keepdims=True)
    nft = ft * lax.rsqrt(jnp.maximum(sumsq, 1e-24))
    sim = lax.dot_general(nft, nft, (((1,), (1,)), ((), ())),
                          preferred_element_type=f32)
    sim_ref[...] = sim * inv_t


# ----------------------------- model wrapper -----------------------------

CFG = dict(img=16, patch=4, in_chans=3, embed_dim=32, depth=2, num_heads=4,
           mlp_hidden=64, proj_dim=128, T=0.07)


def init_params(key, cfg):
    D = cfg["embed_dim"]
    p = cfg["patch"]
    C = cfg["in_chans"]
    n_patch = (cfg["img"] // p) ** 2
    keys = iter(jax.random.split(key, 64))

    def w(shape, scale=0.02):
        return (scale * jax.random.normal(next(keys), shape)).astype(jnp.float32)

    params = {
        "patch_w": w((C * p * p, D)),
        "patch_b": jnp.zeros((D,), jnp.float32),
        "cls": w((1, 1, D)),
        "pos": w((1, n_patch + 1, D)),
        "blocks": [],
        "norm_g": jnp.ones((D,), jnp.float32),
        "norm_b": jnp.zeros((D,), jnp.float32),
    }
    for _ in range(cfg["depth"]):
        params["blocks"].append({
            "ln1_g": jnp.ones((D,)), "ln1_b": jnp.zeros((D,)),
            "qkv_w": w((D, 3 * D)), "qkv_b": jnp.zeros((3 * D,)),
            "proj_w": w((D, D)), "proj_b": jnp.zeros((D,)),
            "ln2_g": jnp.ones((D,)), "ln2_b": jnp.zeros((D,)),
            "fc1_w": w((D, cfg["mlp_hidden"])), "fc1_b": jnp.zeros((cfg["mlp_hidden"],)),
            "fc2_w": w((cfg["mlp_hidden"], D)), "fc2_b": jnp.zeros((D,)),
        })
    dim = cfg["proj_dim"]
    params["head"] = {
        "w1": w((D, D)), "b1": jnp.zeros((D,)),
        "bn1_g": jnp.ones((D,)), "bn1_b": jnp.zeros((D,)),
        "w2": w((D, D)), "b2": jnp.zeros((D,)),
        "bn2_g": jnp.ones((D,)), "bn2_b": jnp.zeros((D,)),
        "w3": w((D, dim)), "b3": jnp.zeros((dim,)),
    }
    return params


def patchify(img, patch):
    # img: (B, C, H, W) NCHW -> (B, num_patches, C*patch*patch); pure layout glue.
    B, C, Hh, Ww = img.shape
    p = patch
    x = img.reshape(B, C, Hh // p, p, Ww // p, p)
    x = x.transpose(0, 2, 4, 1, 3, 5)
    return x.reshape(B, (Hh // p) * (Ww // p), C * p * p)


def simclr_forward(params, cfg, img1, img2=None):
    # encoder_q and encoder_k share parameters (see _param_init), so a single
    # batched encoder pass covers both views.
    B = img1.shape[0]
    if img2 is None:
        imgs = img1
        duplicate = True            # k == q exactly; encode once.
    else:
        imgs = jnp.concatenate([img1, img2], axis=0)
        duplicate = False
    B_enc = imgs.shape[0]

    D = cfg["embed_dim"]
    H = cfg["num_heads"]
    Dh = D // H
    depth = cfg["depth"]
    MLP = cfg["mlp_hidden"]
    PD = cfg["proj_dim"]
    p = cfg["patch"]
    n_patch = (cfg["img"] // p) ** 2
    S = n_patch + 1
    S_pad = ((S + 7) // 8) * 8          # sublane-aligned token count per image
    R = B_enc * S_pad
    n2 = 2 * B
    scale = Dh ** -0.5

    # ---- images -> zero-padded patch rows (row 0 = cls slot, rows S.. = pad) ----
    patches = patchify(imgs, p)                                        # (B_enc, N, Cpp)
    Cpp = patches.shape[-1]
    patches_pad = jnp.concatenate(
        [jnp.zeros((B_enc, 1, Cpp), jnp.float32), patches,
         jnp.zeros((B_enc, S_pad - S, Cpp), jnp.float32)], axis=1)
    patches_pad = patches_pad.reshape(R, Cpp).astype(MXU_DTYPE)

    # ---- additive token bias: cls+pos[0] / patch_b+pos[i] / zeros for pad rows ----
    pos = params["pos"].reshape(S, D).astype(jnp.float32)
    blk_bias = jnp.concatenate(
        [params["cls"].reshape(1, D) + pos[0:1],
         params["patch_b"].reshape(1, D) + pos[1:S],
         jnp.zeros((S_pad - S, D), jnp.float32)], axis=0)              # (S_pad, D)
    tok_bias = jnp.tile(blk_bias, (B_enc, 1))                          # (R, D)

    # ---- static attention masks (trace-time numpy constants) ----
    r_idx = np.arange(H * R)
    c_idx = np.arange(R)
    same_batch = ((r_idx[:, None] % R) // S_pad) == (c_idx[None, :] // S_pad)
    valid_key = (c_idx[None, :] % S_pad) < S
    attn_bias = np.where(same_batch & valid_key, 0.0, -1e30).astype(np.float32)
    head_mask = ((r_idx[:, None] // R) ==
                 (np.arange(D)[None, :] // Dh)).astype(np.float32)

    # ---- per-block weights: bf16, attention scale folded into Wq / bq ----
    def blk(name):
        return jnp.stack([b[name] for b in params["blocks"]], axis=0)

    qkv_w = blk("qkv_w")                                               # (depth, D, 3D)
    wq = (qkv_w[:, :, 0:D] * scale).astype(MXU_DTYPE)
    wk = qkv_w[:, :, D:2 * D].astype(MXU_DTYPE)
    wv = qkv_w[:, :, 2 * D:3 * D].astype(MXU_DTYPE)
    proj_w = blk("proj_w").astype(MXU_DTYPE)
    fc1_w = blk("fc1_w").astype(MXU_DTYPE)
    fc2_w = blk("fc2_w").astype(MXU_DTYPE)

    def pad_row(v, width):
        v = jnp.asarray(v, jnp.float32).reshape(1, -1)
        return jnp.pad(v, ((0, 0), (0, width - v.shape[1])))

    blk_vecs = jnp.stack([
        jnp.concatenate([
            pad_row(bp["ln1_g"], MLP), pad_row(bp["ln1_b"], MLP),
            pad_row(bp["qkv_b"][0:D] * scale, MLP),
            pad_row(bp["qkv_b"][D:2 * D], MLP),
            pad_row(bp["qkv_b"][2 * D:3 * D], MLP),
            pad_row(bp["proj_b"], MLP),
            pad_row(bp["ln2_g"], MLP), pad_row(bp["ln2_b"], MLP),
            pad_row(bp["fc1_b"], MLP), pad_row(bp["fc2_b"], MLP),
        ], axis=0) for bp in params["blocks"]], axis=0)                # (depth, 10, MLP)

    hp = params["head"]
    tail_vecs = jnp.concatenate([
        pad_row(params["norm_g"], PD), pad_row(params["norm_b"], PD),
        pad_row(hp["b1"], PD), pad_row(hp["bn1_g"], PD), pad_row(hp["bn1_b"], PD),
        pad_row(hp["b2"], PD), pad_row(hp["bn2_g"], PD), pad_row(hp["bn2_b"], PD),
        pad_row(hp["b3"], PD)], axis=0)                                # (9, PD)
    hw1 = hp["w1"].astype(MXU_DTYPE)
    hw2 = hp["w2"].astype(MXU_DTYPE)
    hw3 = hp["w3"].astype(MXU_DTYPE)

    kernel = functools.partial(
        _simclr_fused_kernel,
        depth=depth, B_enc=B_enc, B=B, S_pad=S_pad, D=D, H=H, MLP=MLP, PD=PD,
        duplicate=duplicate, inv_t=1.0 / cfg["T"])

    # Single fused pallas_call: all weights and activations stay in VMEM.
    sim = pl.pallas_call(
        kernel,
        out_shape=jax.ShapeDtypeStruct((n2, n2), jnp.float32),
    )(patches_pad, params["patch_w"].astype(MXU_DTYPE), tok_bias,
      jnp.asarray(head_mask), jnp.asarray(attn_bias),
      wq, wk, wv, proj_w, fc1_w, fc2_w, blk_vecs,
      tail_vecs, hw1, hw2, hw3)

    # positive / negative reorder (same ordering as the ~eye boolean-mask view).
    pos_idx = (np.arange(n2) + B) % n2
    cols = np.zeros((n2, n2 - 1), np.int32)
    for i in range(n2):
        negs = [j for j in range(n2) if j != i and j != int(pos_idx[i])]
        cols[i] = [int(pos_idx[i])] + negs
    logits = jnp.take_along_axis(sim, jnp.asarray(cols), axis=1)
    labels = jnp.zeros((n2,), dtype=jnp.int32)    # torch.long -> int32 (x64 disabled)
    return logits, labels


if __name__ == "__main__":
    cfg = CFG
    key = jax.random.PRNGKey(0)
    pkey, xkey = jax.random.split(key)
    params = init_params(pkey, cfg)
    img1 = jax.random.normal(xkey, (2, cfg["in_chans"], cfg["img"], cfg["img"]),
                             jnp.float32)

    fwd = jax.jit(functools.partial(simclr_forward, params, cfg))
    logits, labels = fwd(img1)
    jax.block_until_ready((logits, labels))

    assert logits.shape == (4, 3), logits.shape        # (2B, 1 + (2B - 2))
    assert labels.shape == (4,)
    assert bool(jnp.all(jnp.isfinite(logits)))
    print("KERNEL_OK")
</pallas_src>

<mosaic_0001>
module attributes {stable_mosaic.version = 11 : i64} {
  func.func @_simclr_fused_kernel(%arg0: memref<48x48xbf16, #tpu.memory_space<vmem>>, %arg1: memref<48x32xbf16, #tpu.memory_space<vmem>>, %arg2: memref<48x32xf32, #tpu.memory_space<vmem>>, %arg3: memref<192x32xf32, #tpu.memory_space<vmem>>, %arg4: memref<192x48xf32, #tpu.memory_space<vmem>>, %arg5: memref<2x32x32xbf16, #tpu.memory_space<vmem>>, %arg6: memref<2x32x32xbf16, #tpu.memory_space<vmem>>, %arg7: memref<2x32x32xbf16, #tpu.memory_space<vmem>>, %arg8: memref<2x32x32xbf16, #tpu.memory_space<vmem>>, %arg9: memref<2x32x64xbf16, #tpu.memory_space<vmem>>, %arg10: memref<2x64x32xbf16, #tpu.memory_space<vmem>>, %arg11: memref<2x10x64xf32, #tpu.memory_space<vmem>>, %arg12: memref<9x128xf32, #tpu.memory_space<vmem>>, %arg13: memref<32x32xbf16, #tpu.memory_space<vmem>>, %arg14: memref<32x32xbf16, #tpu.memory_space<vmem>>, %arg15: memref<32x128xbf16, #tpu.memory_space<vmem>>, %arg16: memref<4x4xf32, #tpu.memory_space<vmem>>) attributes {dimension_semantics = [], scalar_prefetch = 0 : i64, scratch_operands = 0 : i64, tpu.core_type = #tpu.core_type<tc>} {
    %c0 = arith.constant 0 : index
    %c0_0 = arith.constant 0 : index
    %0 = vector.load %arg0[%c0, %c0_0] : memref<48x48xbf16, #tpu.memory_space<vmem>>, vector<48x48xbf16>
    %c0_1 = arith.constant 0 : index
    %c0_2 = arith.constant 0 : index
    %1 = vector.load %arg1[%c0_1, %c0_2] : memref<48x32xbf16, #tpu.memory_space<vmem>>, vector<48x32xbf16>
    %cst = arith.constant dense<0.000000e+00> : vector<48x32xf32>
    %2 = tpu.matmul %0, %1, %cst {dimension_numbers = #tpu.dot_dimension_numbers<[1], [0], [0], [1], [0, 0, 1, 1], [], []>} : vector<48x48xbf16>, vector<48x32xbf16>, vector<48x32xf32> -> vector<48x32xf32>
    %c0_3 = arith.constant 0 : index
    %c0_4 = arith.constant 0 : index
    %3 = vector.load %arg2[%c0_3, %c0_4] : memref<48x32xf32, #tpu.memory_space<vmem>>, vector<48x32xf32>
    %4 = arith.addf %2, %3 : vector<48x32xf32>
    %c0_5 = arith.constant 0 : index
    %c0_6 = arith.constant 0 : index
    %5 = vector.load %arg3[%c0_5, %c0_6] : memref<192x32xf32, #tpu.memory_space<vmem>>, vector<192x32xf32>
    %c0_7 = arith.constant 0 : index
    %c0_8 = arith.constant 0 : index
    %6 = vector.load %arg4[%c0_7, %c0_8] : memref<192x48xf32, #tpu.memory_space<vmem>>, vector<192x48xf32>
    %c0_9 = arith.constant 0 : index
    %c0_10 = arith.constant 0 : index
    %c0_11 = arith.constant 0 : index
    %7 = vector.load %arg11[%c0_9, %c0_10, %c0_11] : memref<2x10x64xf32, #tpu.memory_space<vmem>>, vector<1x10x64xf32>
    %8 = vector.shape_cast %7 : vector<1x10x64xf32> to vector<10x64xf32>
    %9 = vector.extract_strided_slice %8 {offsets = [0, 0], sizes = [1, 32], strides = [1, 1]} : vector<10x64xf32> to vector<1x32xf32>
    %10 = vector.extract_strided_slice %8 {offsets = [1, 0], sizes = [1, 32], strides = [1, 1]} : vector<10x64xf32> to vector<1x32xf32>
    %11 = vector.extract_strided_slice %8 {offsets = [2, 0], sizes = [1, 32], strides = [1, 1]} : vector<10x64xf32> to vector<1x32xf32>
    %12 = vector.extract_strided_slice %8 {offsets = [3, 0], sizes = [1, 32], strides = [1, 1]} : vector<10x64xf32> to vector<1x32xf32>
    %13 = vector.extract_strided_slice %8 {offsets = [4, 0], sizes = [1, 32], strides = [1, 1]} : vector<10x64xf32> to vector<1x32xf32>
    %14 = vector.extract_strided_slice %8 {offsets = [5, 0], sizes = [1, 32], strides = [1, 1]} : vector<10x64xf32> to vector<1x32xf32>
    %15 = vector.extract_strided_slice %8 {offsets = [6, 0], sizes = [1, 32], strides = [1, 1]} : vector<10x64xf32> to vector<1x32xf32>
    %16 = vector.extract_strided_slice %8 {offsets = [7, 0], sizes = [1, 32], strides = [1, 1]} : vector<10x64xf32> to vector<1x32xf32>
    %17 = vector.extract_strided_slice %8 {offsets = [8, 0], sizes = [1, 64], strides = [1, 1]} : vector<10x64xf32> to vector<1x64xf32>
    %18 = vector.extract_strided_slice %8 {offsets = [9, 0], sizes = [1, 32], strides = [1, 1]} : vector<10x64xf32> to vector<1x32xf32>
    %cst_12 = arith.constant dense<0.000000e+00> : vector<48xf32>
    %19 = vector.multi_reduction <add>, %4, %cst_12 [1] : vector<48x32xf32> to vector<48xf32>
    %20 = vector.shape_cast %19 : vector<48xf32> to vector<48x1xf32>
    %cst_13 = arith.constant 3.200000e+01 : f32
    %21 = vector.broadcast %cst_13 : f32 to vector<48x1xf32>
    %22 = arith.divf %20, %21 : vector<48x1xf32>
    %23 = vector.broadcast %22 : vector<48x1xf32> to vector<48x32xf32>
    %24 = arith.subf %4, %23 : vector<48x32xf32>
    %25 = arith.mulf %24, %24 : vector<48x32xf32>
    %cst_14 = arith.constant dense<0.000000e+00> : vector<48xf32>
    %26 = vector.multi_reduction <add>, %25, %cst_14 [1] : vector<48x32xf32> to vector<48xf32>
    %27 = vector.shape_cast %26 : vector<48xf32> to vector<48x1xf32>
    %cst_15 = arith.constant 3.200000e+01 : f32
    %28 = vector.broadcast %cst_15 : f32 to vector<48x1xf32>
    %29 = arith.divf %27, %28 : vector<48x1xf32>
    %30 = vector.broadcast %22 : vector<48x1xf32> to vector<48x32xf32>
    %31 = arith.subf %4, %30 : vector<48x32xf32>
    %cst_16 = arith.constant 9.99999997E-7 : f32
    %32 = vector.broadcast %cst_16 : f32 to vector<48x1xf32>
    %33 = arith.addf %29, %32 : vector<48x1xf32>
    %34 = math.rsqrt %33 : vector<48x1xf32>
    %35 = vector.broadcast %34 : vector<48x1xf32> to vector<48x32xf32>
    %36 = arith.mulf %31, %35 : vector<48x32xf32>
    %37 = vector.broadcast %9 : vector<1x32xf32> to vector<48x32xf32>
    %38 = arith.mulf %36, %37 : vector<48x32xf32>
    %39 = vector.broadcast %10 : vector<1x32xf32> to vector<48x32xf32>
    %40 = arith.addf %38, %39 : vector<48x32xf32>
    %41 = arith.truncf %40 : vector<48x32xf32> to vector<48x32xbf16>
    %c0_17 = arith.constant 0 : index
    %c0_18 = arith.constant 0 : index
    %c0_19 = arith.constant 0 : index
    %42 = vector.load %arg5[%c0_17, %c0_18, %c0_19] : memref<2x32x32xbf16, #tpu.memory_space<vmem>>, vector<1x32x32xbf16>
    %43 = vector.shape_cast %42 : vector<1x32x32xbf16> to vector<32x32xbf16>
    %cst_20 = arith.constant dense<0.000000e+00> : vector<48x32xf32>
    %44 = tpu.matmul %41, %43, %cst_20 {dimension_numbers = #tpu.dot_dimension_numbers<[1], [0], [0], [1], [0, 0, 1, 1], [], []>} : vector<48x32xbf16>, vector<32x32xbf16>, vector<48x32xf32> -> vector<48x32xf32>
    %45 = vector.broadcast %11 : vector<1x32xf32> to vector<48x32xf32>
    %46 = arith.addf %44, %45 : vector<48x32xf32>
    %c0_21 = arith.constant 0 : index
    %c0_22 = arith.constant 0 : index
    %c0_23 = arith.constant 0 : index
    %47 = vector.load %arg6[%c0_21, %c0_22, %c0_23] : memref<2x32x32xbf16, #tpu.memory_space<vmem>>, vector<1x32x32xbf16>
    %48 = vector.shape_cast %47 : vector<1x32x32xbf16> to vector<32x32xbf16>
    %cst_24 = arith.constant dense<0.000000e+00> : vector<48x32xf32>
    %49 = tpu.matmul %41, %48, %cst_24 {dimension_numbers = #tpu.dot_dimension_numbers<[1], [0], [0], [1], [0, 0, 1, 1], [], []>} : vector<48x32xbf16>, vector<32x32xbf16>, vector<48x32xf32> -> vector<48x32xf32>
    %50 = vector.broadcast %12 : vector<1x32xf32> to vector<48x32xf32>
    %51 = arith.addf %49, %50 : vector<48x32xf32>
    %c0_25 = arith.constant 0 : index
    %c0_26 = arith.constant 0 : index
    %c0_27 = arith.constant 0 : index
    %52 = vector.load %arg7[%c0_25, %c0_26, %c0_27] : memref<2x32x32xbf16, #tpu.memory_space<vmem>>, vector<1x32x32xbf16>
    %53 = vector.shape_cast %52 : vector<1x32x32xbf16> to vector<32x32xbf16>
    %cst_28 = arith.constant dense<0.000000e+00> : vector<48x32xf32>
    %54 = tpu.matmul %41, %53, %cst_28 {dimension_numbers = #tpu.dot_dimension_numbers<[1], [0], [0], [1], [0, 0, 1, 1], [], []>} : vector<48x32xbf16>, vector<32x32xbf16>, vector<48x32xf32> -> vector<48x32xf32>
    %55 = vector.broadcast %13 : vector<1x32xf32> to vector<48x32xf32>
    %56 = arith.addf %54, %55 : vector<48x32xf32>
    %57 = tpu.concatenate %46, %46, %46, %46 in 0 : vector<48x32xf32>, vector<48x32xf32>, vector<48x32xf32>, vector<48x32xf32> -> vector<192x32xf32>
    %58 = arith.mulf %57, %5 : vector<192x32xf32>
    %59 = arith.truncf %58 : vector<192x32xf32> to vector<192x32xbf16>
    %60 = arith.truncf %51 : vector<48x32xf32> to vector<48x32xbf16>
    %cst_29 = arith.constant dense<0.000000e+00> : vector<192x48xf32>
    %61 = tpu.matmul %59, %60, %cst_29 {dimension_numbers = #tpu.dot_dimension_numbers<[1], [1], [0], [0], [0, 0, 1, 0], [], []>} : vector<192x32xbf16>, vector<48x32xbf16>, vector<192x48xf32> -> vector<192x48xf32>
    %62 = arith.addf %61, %6 : vector<192x48xf32>
    %cst_30 = arith.constant dense<0xFF800000> : vector<192xf32>
    %63 = vector.multi_reduction <maximumf>, %62, %cst_30 [1] : vector<192x48xf32> to vector<192xf32>
    %64 = vector.shape_cast %63 : vector<192xf32> to vector<192x1xf32>
    %65 = vector.broadcast %64 : vector<192x1xf32> to vector<192x48xf32>
    %66 = arith.subf %62, %65 : vector<192x48xf32>
    %67 = math.exp %66 : vector<192x48xf32>
    %cst_31 = arith.constant dense<0.000000e+00> : vector<192xf32>
    %68 = vector.multi_reduction <add>, %67, %cst_31 [1] : vector<192x48xf32> to vector<192xf32>
    %69 = vector.shape_cast %68 : vector<192xf32> to vector<192x1xf32>
    %70 = tpu.reciprocal %69 {approx = true} : vector<192x1xf32> -> vector<192x1xf32>
    %71 = vector.broadcast %70 : vector<192x1xf32> to vector<192x48xf32>
    %72 = arith.mulf %67, %71 : vector<192x48xf32>
    %73 = arith.truncf %72 : vector<192x48xf32> to vector<192x48xbf16>
    %74 = arith.truncf %56 : vector<48x32xf32> to vector<48x32xbf16>
    %cst_32 = arith.constant dense<0.000000e+00> : vector<192x32xf32>
    %75 = tpu.matmul %73, %74, %cst_32 {dimension_numbers = #tpu.dot_dimension_numbers<[1], [0], [0], [1], [0, 0, 1, 1], [], []>} : vector<192x48xbf16>, vector<48x32xbf16>, vector<192x32xf32> -> vector<192x32xf32>
    %76 = arith.mulf %75, %5 : vector<192x32xf32>
    %77 = vector.extract_strided_slice %76 {offsets = [0, 0], sizes = [48, 32], strides = [1, 1]} : vector<192x32xf32> to vector<48x32xf32>
    %78 = vector.extract_strided_slice %76 {offsets = [48, 0], sizes = [48, 32], strides = [1, 1]} : vector<192x32xf32> to vector<48x32xf32>
    %79 = arith.addf %77, %78 : vector<48x32xf32>
    %80 = vector.extract_strided_slice %76 {offsets = [96, 0], sizes = [48, 32], strides = [1, 1]} : vector<192x32xf32> to vector<48x32xf32>
    %81 = arith.addf %79, %80 : vector<48x32xf32>
    %82 = vector.extract_strided_slice %76 {offsets = [144, 0], sizes = [48, 32], strides = [1, 1]} : vector<192x32xf32> to vector<48x32xf32>
    %83 = arith.addf %81, %82 : vector<48x32xf32>
    %84 = arith.truncf %83 : vector<48x32xf32> to vector<48x32xbf16>
    %c0_33 = arith.constant 0 : index
    %c0_34 = arith.constant 0 : index
    %c0_35 = arith.constant 0 : index
    %85 = vector.load %arg8[%c0_33, %c0_34, %c0_35] : memref<2x32x32xbf16, #tpu.memory_space<vmem>>, vector<1x32x32xbf16>
    %86 = vector.shape_cast %85 : vector<1x32x32xbf16> to vector<32x32xbf16>
    %cst_36 = arith.constant dense<0.000000e+00> : vector<48x32xf32>
    %87 = tpu.matmul %84, %86, %cst_36 {dimension_numbers = #tpu.dot_dimension_numbers<[1], [0], [0], [1], [0, 0, 1, 1], [], []>} : vector<48x32xbf16>, vector<32x32xbf16>, vector<48x32xf32> -> vector<48x32xf32>
    %88 = arith.addf %4, %87 : vector<48x32xf32>
    %89 = vector.broadcast %14 : vector<1x32xf32> to vector<48x32xf32>
    %90 = arith.addf %88, %89 : vector<48x32xf32>
    %cst_37 = arith.constant dense<0.000000e+00> : vector<48xf32>
    %91 = vector.multi_reduction <add>, %90, %cst_37 [1] : vector<48x32xf32> to vector<48xf32>
    %92 = vector.shape_cast %91 : vector<48xf32> to vector<48x1xf32>
    %cst_38 = arith.constant 3.200000e+01 : f32
    %93 = vector.broadcast %cst_38 : f32 to vector<48x1xf32>
    %94 = arith.divf %92, %93 : vector<48x1xf32>
    %95 = vector.broadcast %94 : vector<48x1xf32> to vector<48x32xf32>
    %96 = arith.subf %90, %95 : vector<48x32xf32>
    %97 = arith.mulf %96, %96 : vector<48x32xf32>
    %cst_39 = arith.constant dense<0.000000e+00> : vector<48xf32>
    %98 = vector.multi_reduction <add>, %97, %cst_39 [1] : vector<48x32xf32> to vector<48xf32>
    %99 = vector.shape_cast %98 : vector<48xf32> to vector<48x1xf32>
    %cst_40 = arith.constant 3.200000e+01 : f32
    %100 = vector.broadcast %cst_40 : f32 to vector<48x1xf32>
    %101 = arith.divf %99, %100 : vector<48x1xf32>
    %102 = vector.broadcast %94 : vector<48x1xf32> to vector<48x32xf32>
    %103 = arith.subf %90, %102 : vector<48x32xf32>
    %cst_41 = arith.constant 9.99999997E-7 : f32
    %104 = vector.broadcast %cst_41 : f32 to vector<48x1xf32>
    %105 = arith.addf %101, %104 : vector<48x1xf32>
    %106 = math.rsqrt %105 : vector<48x1xf32>
    %107 = vector.broadcast %106 : vector<48x1xf32> to vector<48x32xf32>
    %108 = arith.mulf %103, %107 : vector<48x32xf32>
    %109 = vector.broadcast %15 : vector<1x32xf32> to vector<48x32xf32>
    %110 = arith.mulf %108, %109 : vector<48x32xf32>
    %111 = vector.broadcast %16 : vector<1x32xf32> to vector<48x32xf32>
    %112 = arith.addf %110, %111 : vector<48x32xf32>
    %113 = arith.truncf %112 : vector<48x32xf32> to vector<48x32xbf16>
    %c0_42 = arith.constant 0 : index
    %c0_43 = arith.constant 0 : index
    %c0_44 = arith.constant 0 : index
    %114 = vector.load %arg9[%c0_42, %c0_43, %c0_44] : memref<2x32x64xbf16, #tpu.memory_space<vmem>>, vector<1x32x64xbf16>
    %115 = vector.shape_cast %114 : vector<1x32x64xbf16> to vector<32x64xbf16>
    %cst_45 = arith.constant dense<0.000000e+00> : vector<48x64xf32>
    %116 = tpu.matmul %113, %115, %cst_45 {dimension_numbers = #tpu.dot_dimension_numbers<[1], [0], [0], [1], [0, 0, 1, 1], [], []>} : vector<48x32xbf16>, vector<32x64xbf16>, vector<48x64xf32> -> vector<48x64xf32>
    %117 = vector.broadcast %17 : vector<1x64xf32> to vector<48x64xf32>
    %118 = arith.addf %116, %117 : vector<48x64xf32>
    %119 = arith.mulf %118, %118 : vector<48x64xf32>
    %120 = arith.mulf %118, %119 : vector<48x64xf32>
    %cst_46 = arith.constant 4.471500e-02 : f32
    %121 = vector.broadcast %cst_46 : f32 to vector<48x64xf32>
    %122 = arith.mulf %121, %120 : vector<48x64xf32>
    %123 = arith.addf %118, %122 : vector<48x64xf32>
    %cst_47 = arith.constant 0.797884583 : f32
    %124 = vector.broadcast %cst_47 : f32 to vector<48x64xf32>
    %125 = arith.mulf %124, %123 : vector<48x64xf32>
    %126 = math.tanh %125 : vector<48x64xf32>
    %cst_48 = arith.constant 1.000000e+00 : f32
    %127 = vector.broadcast %cst_48 : f32 to vector<48x64xf32>
    %128 = arith.addf %127, %126 : vector<48x64xf32>
    %cst_49 = arith.constant 5.000000e-01 : f32
    %129 = vector.broadcast %cst_49 : f32 to vector<48x64xf32>
    %130 = arith.mulf %129, %128 : vector<48x64xf32>
    %131 = arith.mulf %118, %130 : vector<48x64xf32>
    %132 = arith.truncf %131 : vector<48x64xf32> to vector<48x64xbf16>
    %c0_50 = arith.constant 0 : index
    %c0_51 = arith.constant 0 : index
    %c0_52 = arith.constant 0 : index
    %133 = vector.load %arg10[%c0_50, %c0_51, %c0_52] : memref<2x64x32xbf16, #tpu.memory_space<vmem>>, vector<1x64x32xbf16>
    %134 = vector.shape_cast %133 : vector<1x64x32xbf16> to vector<64x32xbf16>
    %cst_53 = arith.constant dense<0.000000e+00> : vector<48x32xf32>
    %135 = tpu.matmul %132, %134, %cst_53 {dimension_numbers = #tpu.dot_dimension_numbers<[1], [0], [0], [1], [0, 0, 1, 1], [], []>} : vector<48x64xbf16>, vector<64x32xbf16>, vector<48x32xf32> -> vector<48x32xf32>
    %136 = arith.addf %90, %135 : vector<48x32xf32>
    %137 = vector.broadcast %18 : vector<1x32xf32> to vector<48x32xf32>
    %138 = arith.addf %136, %137 : vector<48x32xf32>
    %c1 = arith.constant 1 : index
    %c0_54 = arith.constant 0 : index
    %c0_55 = arith.constant 0 : index
    %139 = vector.load %arg11[%c1, %c0_54, %c0_55] : memref<2x10x64xf32, #tpu.memory_space<vmem>>, vector<1x10x64xf32>
    %140 = vector.shape_cast %139 : vector<1x10x64xf32> to vector<10x64xf32>
    %141 = vector.extract_strided_slice %140 {offsets = [0, 0], sizes = [1, 32], strides = [1, 1]} : vector<10x64xf32> to vector<1x32xf32>
    %142 = vector.extract_strided_slice %140 {offsets = [1, 0], sizes = [1, 32], strides = [1, 1]} : vector<10x64xf32> to vector<1x32xf32>
    %143 = vector.extract_strided_slice %140 {offsets = [2, 0], sizes = [1, 32], strides = [1, 1]} : vector<10x64xf32> to vector<1x32xf32>
    %144 = vector.extract_strided_slice %140 {offsets = [3, 0], sizes = [1, 32], strides = [1, 1]} : vector<10x64xf32> to vector<1x32xf32>
    %145 = vector.extract_strided_slice %140 {offsets = [4, 0], sizes = [1, 32], strides = [1, 1]} : vector<10x64xf32> to vector<1x32xf32>
    %146 = vector.extract_strided_slice %140 {offsets = [5, 0], sizes = [1, 32], strides = [1, 1]} : vector<10x64xf32> to vector<1x32xf32>
    %147 = vector.extract_strided_slice %140 {offsets = [6, 0], sizes = [1, 32], strides = [1, 1]} : vector<10x64xf32> to vector<1x32xf32>
    %148 = vector.extract_strided_slice %140 {offsets = [7, 0], sizes = [1, 32], strides = [1, 1]} : vector<10x64xf32> to vector<1x32xf32>
    %149 = vector.extract_strided_slice %140 {offsets = [8, 0], sizes = [1, 64], strides = [1, 1]} : vector<10x64xf32> to vector<1x64xf32>
    %150 = vector.extract_strided_slice %140 {offsets = [9, 0], sizes = [1, 32], strides = [1, 1]} : vector<10x64xf32> to vector<1x32xf32>
    %cst_56 = arith.constant dense<0.000000e+00> : vector<48xf32>
    %151 = vector.multi_reduction <add>, %138, %cst_56 [1] : vector<48x32xf32> to vector<48xf32>
    %152 = vector.shape_cast %151 : vector<48xf32> to vector<48x1xf32>
    %cst_57 = arith.constant 3.200000e+01 : f32
    %153 = vector.broadcast %cst_57 : f32 to vector<48x1xf32>
    %154 = arith.divf %152, %153 : vector<48x1xf32>
    %155 = vector.broadcast %154 : vector<48x1xf32> to vector<48x32xf32>
    %156 = arith.subf %138, %155 : vector<48x32xf32>
    %157 = arith.mulf %156, %156 : vector<48x32xf32>
    %cst_58 = arith.constant dense<0.000000e+00> : vector<48xf32>
    %158 = vector.multi_reduction <add>, %157, %cst_58 [1] : vector<48x32xf32> to vector<48xf32>
    %159 = vector.shape_cast %158 : vector<48xf32> to vector<48x1xf32>
    %cst_59 = arith.constant 3.200000e+01 : f32
    %160 = vector.broadcast %cst_59 : f32 to vector<48x1xf32>
    %161 = arith.divf %159, %160 : vector<48x1xf32>
    %162 = vector.broadcast %154 : vector<48x1xf32> to vector<48x32xf32>
    %163 = arith.subf %138, %162 : vector<48x32xf32>
    %cst_60 = arith.constant 9.99999997E-7 : f32
    %164 = vector.broadcast %cst_60 : f32 to vector<48x1xf32>
    %165 = arith.addf %161, %164 : vector<48x1xf32>
    %166 = math.rsqrt %165 : vector<48x1xf32>
    %167 = vector.broadcast %166 : vector<48x1xf32> to vector<48x32xf32>
    %168 = arith.mulf %163, %167 : vector<48x32xf32>
    %169 = vector.broadcast %141 : vector<1x32xf32> to vector<48x32xf32>
    %170 = arith.mulf %168, %169 : vector<48x32xf32>
    %171 = vector.broadcast %142 : vector<1x32xf32> to vector<48x32xf32>
    %172 = arith.addf %170, %171 : vector<48x32xf32>
    %173 = arith.truncf %172 : vector<48x32xf32> to vector<48x32xbf16>
    %c1_61 = arith.constant 1 : index
    %c0_62 = arith.constant 0 : index
    %c0_63 = arith.constant 0 : index
    %174 = vector.load %arg5[%c1_61, %c0_62, %c0_63] : memref<2x32x32xbf16, #tpu.memory_space<vmem>>, vector<1x32x32xbf16>
    %175 = vector.shape_cast %174 : vector<1x32x32xbf16> to vector<32x32xbf16>
    %cst_64 = arith.constant dense<0.000000e+00> : vector<48x32xf32>
    %176 = tpu.matmul %173, %175, %cst_64 {dimension_numbers = #tpu.dot_dimension_numbers<[1], [0], [0], [1], [0, 0, 1, 1], [], []>} : vector<48x32xbf16>, vector<32x32xbf16>, vector<48x32xf32> -> vector<48x32xf32>
    %177 = vector.broadcast %143 : vector<1x32xf32> to vector<48x32xf32>
    %178 = arith.addf %176, %177 : vector<48x32xf32>
    %c1_65 = arith.constant 1 : index
    %c0_66 = arith.constant 0 : index
    %c0_67 = arith.constant 0 : index
    %179 = vector.load %arg6[%c1_65, %c0_66, %c0_67] : memref<2x32x32xbf16, #tpu.memory_space<vmem>>, vector<1x32x32xbf16>
    %180 = vector.shape_cast %179 : vector<1x32x32xbf16> to vector<32x32xbf16>
    %cst_68 = arith.constant dense<0.000000e+00> : vector<48x32xf32>
    %181 = tpu.matmul %173, %180, %cst_68 {dimension_numbers = #tpu.dot_dimension_numbers<[1], [0], [0], [1], [0, 0, 1, 1], [], []>} : vector<48x32xbf16>, vector<32x32xbf16>, vector<48x32xf32> -> vector<48x32xf32>
    %182 = vector.broadcast %144 : vector<1x32xf32> to vector<48x32xf32>
    %183 = arith.addf %181, %182 : vector<48x32xf32>
    %c1_69 = arith.constant 1 : index
    %c0_70 = arith.constant 0 : index
    %c0_71 = arith.constant 0 : index
    %184 = vector.load %arg7[%c1_69, %c0_70, %c0_71] : memref<2x32x32xbf16, #tpu.memory_space<vmem>>, vector<1x32x32xbf16>
    %185 = vector.shape_cast %184 : vector<1x32x32xbf16> to vector<32x32xbf16>
    %cst_72 = arith.constant dense<0.000000e+00> : vector<48x32xf32>
    %186 = tpu.matmul %173, %185, %cst_72 {dimension_numbers = #tpu.dot_dimension_numbers<[1], [0], [0], [1], [0, 0, 1, 1], [], []>} : vector<48x32xbf16>, vector<32x32xbf16>, vector<48x32xf32> -> vector<48x32xf32>
    %187 = vector.broadcast %145 : vector<1x32xf32> to vector<48x32xf32>
    %188 = arith.addf %186, %187 : vector<48x32xf32>
    %189 = tpu.concatenate %178, %178, %178, %178 in 0 : vector<48x32xf32>, vector<48x32xf32>, vector<48x32xf32>, vector<48x32xf32> -> vector<192x32xf32>
    %190 = arith.mulf %189, %5 : vector<192x32xf32>
    %191 = arith.truncf %190 : vector<192x32xf32> to vector<192x32xbf16>
    %192 = arith.truncf %183 : vector<48x32xf32> to vector<48x32xbf16>
    %cst_73 = arith.constant dense<0.000000e+00> : vector<192x48xf32>
    %193 = tpu.matmul %191, %192, %cst_73 {dimension_numbers = #tpu.dot_dimension_numbers<[1], [1], [0], [0], [0, 0, 1, 0], [], []>} : vector<192x32xbf16>, vector<48x32xbf16>, vector<192x48xf32> -> vector<192x48xf32>
    %194 = arith.addf %193, %6 : vector<192x48xf32>
    %cst_74 = arith.constant dense<0xFF800000> : vector<192xf32>
    %195 = vector.multi_reduction <maximumf>, %194, %cst_74 [1] : vector<192x48xf32> to vector<192xf32>
    %196 = vector.shape_cast %195 : vector<192xf32> to vector<192x1xf32>
    %197 = vector.broadcast %196 : vector<192x1xf32> to vector<192x48xf32>
    %198 = arith.subf %194, %197 : vector<192x48xf32>
    %199 = math.exp %198 : vector<192x48xf32>
    %cst_75 = arith.constant dense<0.000000e+00> : vector<192xf32>
    %200 = vector.multi_reduction <add>, %199, %cst_75 [1] : vector<192x48xf32> to vector<192xf32>
    %201 = vector.shape_cast %200 : vector<192xf32> to vector<192x1xf32>
    %202 = tpu.reciprocal %201 {approx = true} : vector<192x1xf32> -> vector<192x1xf32>
    %203 = vector.broadcast %202 : vector<192x1xf32> to vector<192x48xf32>
    %204 = arith.mulf %199, %203 : vector<192x48xf32>
    %205 = arith.truncf %204 : vector<192x48xf32> to vector<192x48xbf16>
    %206 = arith.truncf %188 : vector<48x32xf32> to vector<48x32xbf16>
    %cst_76 = arith.constant dense<0.000000e+00> : vector<192x32xf32>
    %207 = tpu.matmul %205, %206, %cst_76 {dimension_numbers = #tpu.dot_dimension_numbers<[1], [0], [0], [1], [0, 0, 1, 1], [], []>} : vector<192x48xbf16>, vector<48x32xbf16>, vector<192x32xf32> -> vector<192x32xf32>
    %208 = arith.mulf %207, %5 : vector<192x32xf32>
    %209 = vector.extract_strided_slice %208 {offsets = [0, 0], sizes = [48, 32], strides = [1, 1]} : vector<192x32xf32> to vector<48x32xf32>
    %210 = vector.extract_strided_slice %208 {offsets = [48, 0], sizes = [48, 32], strides = [1, 1]} : vector<192x32xf32> to vector<48x32xf32>
    %211 = arith.addf %209, %210 : vector<48x32xf32>
    %212 = vector.extract_strided_slice %208 {offsets = [96, 0], sizes = [48, 32], strides = [1, 1]} : vector<192x32xf32> to vector<48x32xf32>
    %213 = arith.addf %211, %212 : vector<48x32xf32>
    %214 = vector.extract_strided_slice %208 {offsets = [144, 0], sizes = [48, 32], strides = [1, 1]} : vector<192x32xf32> to vector<48x32xf32>
    %215 = arith.addf %213, %214 : vector<48x32xf32>
    %216 = arith.truncf %215 : vector<48x32xf32> to vector<48x32xbf16>
    %c1_77 = arith.constant 1 : index
    %c0_78 = arith.constant 0 : index
    %c0_79 = arith.constant 0 : index
    %217 = vector.load %arg8[%c1_77, %c0_78, %c0_79] : memref<2x32x32xbf16, #tpu.memory_space<vmem>>, vector<1x32x32xbf16>
    %218 = vector.shape_cast %217 : vector<1x32x32xbf16> to vector<32x32xbf16>
    %cst_80 = arith.constant dense<0.000000e+00> : vector<48x32xf32>
    %219 = tpu.matmul %216, %218, %cst_80 {dimension_numbers = #tpu.dot_dimension_numbers<[1], [0], [0], [1], [0, 0, 1, 1], [], []>} : vector<48x32xbf16>, vector<32x32xbf16>, vector<48x32xf32> -> vector<48x32xf32>
    %220 = arith.addf %138, %219 : vector<48x32xf32>
    %221 = vector.broadcast %146 : vector<1x32xf32> to vector<48x32xf32>
    %222 = arith.addf %220, %221 : vector<48x32xf32>
    %cst_81 = arith.constant dense<0.000000e+00> : vector<48xf32>
    %223 = vector.multi_reduction <add>, %222, %cst_81 [1] : vector<48x32xf32> to vector<48xf32>
    %224 = vector.shape_cast %223 : vector<48xf32> to vector<48x1xf32>
    %cst_82 = arith.constant 3.200000e+01 : f32
    %225 = vector.broadcast %cst_82 : f32 to vector<48x1xf32>
    %226 = arith.divf %224, %225 : vector<48x1xf32>
    %227 = vector.broadcast %226 : vector<48x1xf32> to vector<48x32xf32>
    %228 = arith.subf %222, %227 : vector<48x32xf32>
    %229 = arith.mulf %228, %228 : vector<48x32xf32>
    %cst_83 = arith.constant dense<0.000000e+00> : vector<48xf32>
    %230 = vector.multi_reduction <add>, %229, %cst_83 [1] : vector<48x32xf32> to vector<48xf32>
    %231 = vector.shape_cast %230 : vector<48xf32> to vector<48x1xf32>
    %cst_84 = arith.constant 3.200000e+01 : f32
    %232 = vector.broadcast %cst_84 : f32 to vector<48x1xf32>
    %233 = arith.divf %231, %232 : vector<48x1xf32>
    %234 = vector.broadcast %226 : vector<48x1xf32> to vector<48x32xf32>
    %235 = arith.subf %222, %234 : vector<48x32xf32>
    %cst_85 = arith.constant 9.99999997E-7 : f32
    %236 = vector.broadcast %cst_85 : f32 to vector<48x1xf32>
    %237 = arith.addf %233, %236 : vector<48x1xf32>
    %238 = math.rsqrt %237 : vector<48x1xf32>
    %239 = vector.broadcast %238 : vector<48x1xf32> to vector<48x32xf32>
    %240 = arith.mulf %235, %239 : vector<48x32xf32>
    %241 = vector.broadcast %147 : vector<1x32xf32> to vector<48x32xf32>
    %242 = arith.mulf %240, %241 : vector<48x32xf32>
    %243 = vector.broadcast %148 : vector<1x32xf32> to vector<48x32xf32>
    %244 = arith.addf %242, %243 : vector<48x32xf32>
    %245 = arith.truncf %244 : vector<48x32xf32> to vector<48x32xbf16>
    %c1_86 = arith.constant 1 : index
    %c0_87 = arith.constant 0 : index
    %c0_88 = arith.constant 0 : index
    %246 = vector.load %arg9[%c1_86, %c0_87, %c0_88] : memref<2x32x64xbf16, #tpu.memory_space<vmem>>, vector<1x32x64xbf16>
    %247 = vector.shape_cast %246 : vector<1x32x64xbf16> to vector<32x64xbf16>
    %cst_89 = arith.constant dense<0.000000e+00> : vector<48x64xf32>
    %248 = tpu.matmul %245, %247, %cst_89 {dimension_numbers = #tpu.dot_dimension_numbers<[1], [0], [0], [1], [0, 0, 1, 1], [], []>} : vector<48x32xbf16>, vector<32x64xbf16>, vector<48x64xf32> -> vector<48x64xf32>
    %249 = vector.broadcast %149 : vector<1x64xf32> to vector<48x64xf32>
    %250 = arith.addf %248, %249 : vector<48x64xf32>
    %251 = arith.mulf %250, %250 : vector<48x64xf32>
    %252 = arith.mulf %250, %251 : vector<48x64xf32>
    %cst_90 = arith.constant 4.471500e-02 : f32
    %253 = vector.broadcast %cst_90 : f32 to vector<48x64xf32>
    %254 = arith.mulf %253, %252 : vector<48x64xf32>
    %255 = arith.addf %250, %254 : vector<48x64xf32>
    %cst_91 = arith.constant 0.797884583 : f32
    %256 = vector.broadcast %cst_91 : f32 to vector<48x64xf32>
    %257 = arith.mulf %256, %255 : vector<48x64xf32>
    %258 = math.tanh %257 : vector<48x64xf32>
    %cst_92 = arith.constant 1.000000e+00 : f32
    %259 = vector.broadcast %cst_92 : f32 to vector<48x64xf32>
    %260 = arith.addf %259, %258 : vector<48x64xf32>
    %cst_93 = arith.constant 5.000000e-01 : f32
    %261 = vector.broadcast %cst_93 : f32 to vector<48x64xf32>
    %262 = arith.mulf %261, %260 : vector<48x64xf32>
    %263 = arith.mulf %250, %262 : vector<48x64xf32>
    %264 = arith.truncf %263 : vector<48x64xf32> to vector<48x64xbf16>
    %c1_94 = arith.constant 1 : index
    %c0_95 = arith.constant 0 : index
    %c0_96 = arith.constant 0 : index
    %265 = vector.load %arg10[%c1_94, %c0_95, %c0_96] : memref<2x64x32xbf16, #tpu.memory_space<vmem>>, vector<1x64x32xbf16>
    %266 = vector.shape_cast %265 : vector<1x64x32xbf16> to vector<64x32xbf16>
    %cst_97 = arith.constant dense<0.000000e+00> : vector<48x32xf32>
    %267 = tpu.matmul %264, %266, %cst_97 {dimension_numbers = #tpu.dot_dimension_numbers<[1], [0], [0], [1], [0, 0, 1, 1], [], []>} : vector<48x64xbf16>, vector<64x32xbf16>, vector<48x32xf32> -> vector<48x32xf32>
    %268 = arith.addf %222, %267 : vector<48x32xf32>
    %269 = vector.broadcast %150 : vector<1x32xf32> to vector<48x32xf32>
    %270 = arith.addf %268, %269 : vector<48x32xf32>
    %271 = vector.extract_strided_slice %270 {offsets = [0, 0], sizes = [1, 32], strides = [1, 1]} : vector<48x32xf32> to vector<1x32xf32>
    %272 = vector.extract_strided_slice %270 {offsets = [24, 0], sizes = [1, 32], strides = [1, 1]} : vector<48x32xf32> to vector<1x32xf32>
    %273 = tpu.concatenate %271, %272 in 0 : vector<1x32xf32>, vector<1x32xf32> -> vector<2x32xf32>
    %c0_98 = arith.constant 0 : index
    %c0_99 = arith.constant 0 : index
    %274 = vector.load %arg12[%c0_98, %c0_99] : memref<9x128xf32, #tpu.memory_space<vmem>>, vector<9x128xf32>
    %275 = vector.extract_strided_slice %274 {offsets = [0, 0], sizes = [1, 32], strides = [1, 1]} : vector<9x128xf32> to vector<1x32xf32>
    %276 = vector.extract_strided_slice %274 {offsets = [1, 0], sizes = [1, 32], strides = [1, 1]} : vector<9x128xf32> to vector<1x32xf32>
    %cst_100 = arith.constant dense<0.000000e+00> : vector<2xf32>
    %277 = vector.multi_reduction <add>, %273, %cst_100 [1] : vector<2x32xf32> to vector<2xf32>
    %278 = vector.shape_cast %277 : vector<2xf32> to vector<2x1xf32>
    %cst_101 = arith.constant 3.200000e+01 : f32
    %279 = vector.broadcast %cst_101 : f32 to vector<2x1xf32>
    %280 = arith.divf %278, %279 : vector<2x1xf32>
    %281 = vector.broadcast %280 : vector<2x1xf32> to vector<2x32xf32>
    %282 = arith.subf %273, %281 : vector<2x32xf32>
    %283 = arith.mulf %282, %282 : vector<2x32xf32>
    %cst_102 = arith.constant dense<0.000000e+00> : vector<2xf32>
    %284 = vector.multi_reduction <add>, %283, %cst_102 [1] : vector<2x32xf32> to vector<2xf32>
    %285 = vector.shape_cast %284 : vector<2xf32> to vector<2x1xf32>
    %cst_103 = arith.constant 3.200000e+01 : f32
    %286 = vector.broadcast %cst_103 : f32 to vector<2x1xf32>
    %287 = arith.divf %285, %286 : vector<2x1xf32>
    %288 = vector.broadcast %280 : vector<2x1xf32> to vector<2x32xf32>
    %289 = arith.subf %273, %288 : vector<2x32xf32>
    %cst_104 = arith.constant 9.99999997E-7 : f32
    %290 = vector.broadcast %cst_104 : f32 to vector<2x1xf32>
    %291 = arith.addf %287, %290 : vector<2x1xf32>
    %292 = math.rsqrt %291 : vector<2x1xf32>
    %293 = vector.broadcast %292 : vector<2x1xf32> to vector<2x32xf32>
    %294 = arith.mulf %289, %293 : vector<2x32xf32>
    %295 = vector.broadcast %275 : vector<1x32xf32> to vector<2x32xf32>
    %296 = arith.mulf %294, %295 : vector<2x32xf32>
    %297 = vector.broadcast %276 : vector<1x32xf32> to vector<2x32xf32>
    %298 = arith.addf %296, %297 : vector<2x32xf32>
    %299 = arith.truncf %298 : vector<2x32xf32> to vector<2x32xbf16>
    %c0_105 = arith.constant 0 : index
    %c0_106 = arith.constant 0 : index
    %300 = vector.load %arg13[%c0_105, %c0_106] : memref<32x32xbf16, #tpu.memory_space<vmem>>, vector<32x32xbf16>
    %cst_107 = arith.constant dense<0.000000e+00> : vector<2x32xf32>
    %301 = tpu.matmul %299, %300, %cst_107 {dimension_numbers = #tpu.dot_dimension_numbers<[1], [0], [0], [1], [0, 0, 1, 1], [], []>} : vector<2x32xbf16>, vector<32x32xbf16>, vector<2x32xf32> -> vector<2x32xf32>
    %302 = vector.extract_strided_slice %274 {offsets = [2, 0], sizes = [1, 32], strides = [1, 1]} : vector<9x128xf32> to vector<1x32xf32>
    %303 = vector.broadcast %302 : vector<1x32xf32> to vector<2x32xf32>
    %304 = arith.addf %301, %303 : vector<2x32xf32>
    %305 = vector.extract_strided_slice %274 {offsets = [3, 0], sizes = [1, 32], strides = [1, 1]} : vector<9x128xf32> to vector<1x32xf32>
    %306 = vector.extract_strided_slice %274 {offsets = [4, 0], sizes = [1, 32], strides = [1, 1]} : vector<9x128xf32> to vector<1x32xf32>
    %cst_108 = arith.constant dense<0.000000e+00> : vector<32xf32>
    %307 = vector.multi_reduction <add>, %304, %cst_108 [0] : vector<2x32xf32> to vector<32xf32>
    %308 = vector.shape_cast %307 : vector<32xf32> to vector<1x32xf32>
    %cst_109 = arith.constant 2.000000e+00 : f32
    %309 = vector.broadcast %cst_109 : f32 to vector<1x32xf32>
    %310 = arith.divf %308, %309 : vector<1x32xf32>
    %311 = vector.broadcast %310 : vector<1x32xf32> to vector<2x32xf32>
    %312 = arith.subf %304, %311 : vector<2x32xf32>
    %313 = arith.mulf %312, %312 : vector<2x32xf32>
    %cst_110 = arith.constant dense<0.000000e+00> : vector<32xf32>
    %314 = vector.multi_reduction <add>, %313, %cst_110 [0] : vector<2x32xf32> to vector<32xf32>
    %315 = vector.shape_cast %314 : vector<32xf32> to vector<1x32xf32>
    %cst_111 = arith.constant 2.000000e+00 : f32
    %316 = vector.broadcast %cst_111 : f32 to vector<1x32xf32>
    %317 = arith.divf %315, %316 : vector<1x32xf32>
    %318 = vector.broadcast %310 : vector<1x32xf32> to vector<2x32xf32>
    %319 = arith.subf %304, %318 : vector<2x32xf32>
    %cst_112 = arith.constant 9.99999974E-6 : f32
    %320 = vector.broadcast %cst_112 : f32 to vector<1x32xf32>
    %321 = arith.addf %317, %320 : vector<1x32xf32>
    %322 = math.rsqrt %321 : vector<1x32xf32>
    %323 = vector.broadcast %322 : vector<1x32xf32> to vector<2x32xf32>
    %324 = arith.mulf %319, %323 : vector<2x32xf32>
    %325 = vector.broadcast %305 : vector<1x32xf32> to vector<2x32xf32>
    %326 = arith.mulf %324, %325 : vector<2x32xf32>
    %327 = vector.broadcast %306 : vector<1x32xf32> to vector<2x32xf32>
    %328 = arith.addf %326, %327 : vector<2x32xf32>
    %cst_113 = arith.constant 0.000000e+00 : f32
    %329 = vector.broadcast %cst_113 : f32 to vector<2x32xf32>
    %330 = arith.maximumf %328, %329 : vector<2x32xf32>
    %331 = arith.truncf %330 : vector<2x32xf32> to vector<2x32xbf16>
    %c0_114 = arith.constant 0 : index
    %c0_115 = arith.constant 0 : index
    %332 = vector.load %arg14[%c0_114, %c0_115] : memref<32x32xbf16, #tpu.memory_space<vmem>>, vector<32x32xbf16>
    %cst_116 = arith.constant dense<0.000000e+00> : vector<2x32xf32>
    %333 = tpu.matmul %331, %332, %cst_116 {dimension_numbers = #tpu.dot_dimension_numbers<[1], [0], [0], [1], [0, 0, 1, 1], [], []>} : vector<2x32xbf16>, vector<32x32xbf16>, vector<2x32xf32> -> vector<2x32xf32>
    %334 = vector.extract_strided_slice %274 {offsets = [5, 0], sizes = [1, 32], strides = [1, 1]} : vector<9x128xf32> to vector<1x32xf32>
    %335 = vector.broadcast %334 : vector<1x32xf32> to vector<2x32xf32>
    %336 = arith.addf %333, %335 : vector<2x32xf32>
    %337 = vector.extract_strided_slice %274 {offsets = [6, 0], sizes = [1, 32], strides = [1, 1]} : vector<9x128xf32> to vector<1x32xf32>
    %338 = vector.extract_strided_slice %274 {offsets = [7, 0], sizes = [1, 32], strides = [1, 1]} : vector<9x128xf32> to vector<1x32xf32>
    %cst_117 = arith.constant dense<0.000000e+00> : vector<32xf32>
    %339 = vector.multi_reduction <add>, %336, %cst_117 [0] : vector<2x32xf32> to vector<32xf32>
    %340 = vector.shape_cast %339 : vector<32xf32> to vector<1x32xf32>
    %cst_118 = arith.constant 2.000000e+00 : f32
    %341 = vector.broadcast %cst_118 : f32 to vector<1x32xf32>
    %342 = arith.divf %340, %341 : vector<1x32xf32>
    %343 = vector.broadcast %342 : vector<1x32xf32> to vector<2x32xf32>
    %344 = arith.subf %336, %343 : vector<2x32xf32>
    %345 = arith.mulf %344, %344 : vector<2x32xf32>
    %cst_119 = arith.constant dense<0.000000e+00> : vector<32xf32>
    %346 = vector.multi_reduction <add>, %345, %cst_119 [0] : vector<2x32xf32> to vector<32xf32>
    %347 = vector.shape_cast %346 : vector<32xf32> to vector<1x32xf32>
    %cst_120 = arith.constant 2.000000e+00 : f32
    %348 = vector.broadcast %cst_120 : f32 to vector<1x32xf32>
    %349 = arith.divf %347, %348 : vector<1x32xf32>
    %350 = vector.broadcast %342 : vector<1x32xf32> to vector<2x32xf32>
    %351 = arith.subf %336, %350 : vector<2x32xf32>
    %cst_121 = arith.constant 9.99999974E-6 : f32
    %352 = vector.broadcast %cst_121 : f32 to vector<1x32xf32>
    %353 = arith.addf %349, %352 : vector<1x32xf32>
    %354 = math.rsqrt %353 : vector<1x32xf32>
    %355 = vector.broadcast %354 : vector<1x32xf32> to vector<2x32xf32>
    %356 = arith.mulf %351, %355 : vector<2x32xf32>
    %357 = vector.broadcast %337 : vector<1x32xf32> to vector<2x32xf32>
    %358 = arith.mulf %356, %357 : vector<2x32xf32>
    %359 = vector.broadcast %338 : vector<1x32xf32> to vector<2x32xf32>
    %360 = arith.addf %358, %359 : vector<2x32xf32>
    %cst_122 = arith.constant 0.000000e+00 : f32
    %361 = vector.broadcast %cst_122 : f32 to vector<2x32xf32>
    %362 = arith.maximumf %360, %361 : vector<2x32xf32>
    %363 = arith.truncf %362 : vector<2x32xf32> to vector<2x32xbf16>
    %c0_123 = arith.constant 0 : index
    %c0_124 = arith.constant 0 : index
    %364 = vector.load %arg15[%c0_123, %c0_124] : memref<32x128xbf16, #tpu.memory_space<vmem>>, vector<32x128xbf16>
    %cst_125 = arith.constant dense<0.000000e+00> : vector<2x128xf32>
    %365 = tpu.matmul %363, %364, %cst_125 {dimension_numbers = #tpu.dot_dimension_numbers<[1], [0], [0], [1], [0, 0, 1, 1], [], []>} : vector<2x32xbf16>, vector<32x128xbf16>, vector<2x128xf32> -> vector<2x128xf32>
    %366 = vector.extract_strided_slice %274 {offsets = [8, 0], sizes = [1, 128], strides = [1, 1]} : vector<9x128xf32> to vector<1x128xf32>
    %367 = vector.broadcast %366 : vector<1x128xf32> to vector<2x128xf32>
    %368 = arith.addf %365, %367 : vector<2x128xf32>
    %cst_126 = arith.constant dense<0.000000e+00> : vector<128xf32>
    %369 = vector.multi_reduction <add>, %368, %cst_126 [0] : vector<2x128xf32> to vector<128xf32>
    %370 = vector.shape_cast %369 : vector<128xf32> to vector<1x128xf32>
    %cst_127 = arith.constant 2.000000e+00 : f32
    %371 = vector.broadcast %cst_127 : f32 to vector<1x128xf32>
    %372 = arith.divf %370, %371 : vector<1x128xf32>
    %373 = vector.broadcast %372 : vector<1x128xf32> to vector<2x128xf32>
    %374 = arith.subf %368, %373 : vector<2x128xf32>
    %375 = arith.mulf %374, %374 : vector<2x128xf32>
    %cst_128 = arith.constant dense<0.000000e+00> : vector<128xf32>
    %376 = vector.multi_reduction <add>, %375, %cst_128 [0] : vector<2x128xf32> to vector<128xf32>
    %377 = vector.shape_cast %376 : vector<128xf32> to vector<1x128xf32>
    %cst_129 = arith.constant 2.000000e+00 : f32
    %378 = vector.broadcast %cst_129 : f32 to vector<1x128xf32>
    %379 = arith.divf %377, %378 : vector<1x128xf32>
    %380 = vector.broadcast %372 : vector<1x128xf32> to vector<2x128xf32>
    %381 = arith.subf %368, %380 : vector<2x128xf32>
    %cst_130 = arith.constant 9.99999974E-6 : f32
    %382 = vector.broadcast %cst_130 : f32 to vector<1x128xf32>
    %383 = arith.addf %379, %382 : vector<1x128xf32>
    %384 = math.rsqrt %383 : vector<1x128xf32>
    %385 = vector.broadcast %384 : vector<1x128xf32> to vector<2x128xf32>
    %386 = arith.mulf %381, %385 : vector<2x128xf32>
    %387 = tpu.concatenate %386, %386 in 0 : vector<2x128xf32>, vector<2x128xf32> -> vector<4x128xf32>
    %388 = arith.mulf %387, %387 : vector<4x128xf32>
    %cst_131 = arith.constant dense<0.000000e+00> : vector<4xf32>
    %389 = vector.multi_reduction <add>, %388, %cst_131 [1] : vector<4x128xf32> to vector<4xf32>
    %390 = vector.shape_cast %389 : vector<4xf32> to vector<4x1xf32>
    %cst_132 = arith.constant 1.000000e-24 : f32
    %391 = vector.broadcast %cst_132 : f32 to vector<4x1xf32>
    %392 = arith.maximumf %390, %391 : vector<4x1xf32>
    %393 = math.rsqrt %392 : vector<4x1xf32>
    %394 = vector.broadcast %393 : vector<4x1xf32> to vector<4x128xf32>
    %395 = arith.mulf %387, %394 : vector<4x128xf32>
    %cst_133 = arith.constant dense<0.000000e+00> : vector<4x4xf32>
    %396 = tpu.matmul %395, %395, %cst_133 {dimension_numbers = #tpu.dot_dimension_numbers<[1], [1], [0], [0], [0, 0, 1, 0], [], []>} : vector<4x128xf32>, vector<4x128xf32>, vector<4x4xf32> -> vector<4x4xf32>
    %cst_134 = arith.constant 14.2857141 : f32
    %397 = vector.broadcast %cst_134 : f32 to vector<4x4xf32>
    %398 = arith.mulf %396, %397 : vector<4x4xf32>
    %c0_135 = arith.constant 0 : index
    %c0_136 = arith.constant 0 : index
    %399 = vector.load %arg16[%c0_135, %c0_136] : memref<4x4xf32, #tpu.memory_space<vmem>>, vector<4x4xf32>
    tpu.vector_store %arg16[%c0_135, %c0_136], %398 {strides = array<i32>} : memref<4x4xf32, #tpu.memory_space<vmem>>, vector<4x4xf32>,
    return
  }
}

</mosaic_0001>

<llo_original>
// kernel: simclr_forward.1
$region0: #{simclr_forward.1}
  #allocation0 [shape = 'u32[]', space=smem, size = 0x4, offset = 0x4, fixed_abs, tag = 'smem constant byte address 0x4 - core index']
  #allocation1 [shape = 'u32[72,128]{1,0:T(1,128)}', space=vmem, size = 0x9000, scoped, tag = 'internal scratch']
  %s0 = inlined_call_operand.vmem [shape: bf16[48,48], index: 0, kind: input, shape index: {}]
  %s1 = inlined_call_operand.vmem [shape: bf16[48,32], index: 1, kind: input, shape index: {}]
  %s2 = inlined_call_operand.vmem [shape: f32[48,32], index: 2, kind: input, shape index: {}]
  %s3 = inlined_call_operand.vmem [shape: f32[192,32], index: 3, kind: input, shape index: {}]
  %s4 = inlined_call_operand.vmem [shape: f32[192,48], index: 4, kind: input, shape index: {}]
  %s5 = inlined_call_operand.vmem [shape: bf16[2,32,32], index: 5, kind: input, shape index: {}]
  %s6 = inlined_call_operand.vmem [shape: bf16[2,32,32], index: 6, kind: input, shape index: {}]
  %s7 = inlined_call_operand.vmem [shape: bf16[2,32,32], index: 7, kind: input, shape index: {}]
  %s8 = inlined_call_operand.vmem [shape: bf16[2,32,32], index: 8, kind: input, shape index: {}]
  %s9 = inlined_call_operand.vmem [shape: bf16[2,32,64], index: 9, kind: input, shape index: {}]
  %s10 = inlined_call_operand.vmem [shape: bf16[2,64,32], index: 10, kind: input, shape index: {}]
  %s11 = inlined_call_operand.vmem [shape: f32[2,10,64], index: 11, kind: input, shape index: {}]
  %s12 = inlined_call_operand.vmem [shape: f32[9,128], index: 12, kind: input, shape index: {}]
  %s13 = inlined_call_operand.vmem [shape: bf16[32,32], index: 13, kind: input, shape index: {}]
  %s14 = inlined_call_operand.vmem [shape: bf16[32,32], index: 14, kind: input, shape index: {}]
  %s15 = inlined_call_operand.vmem [shape: bf16[32,128], index: 15, kind: input, shape index: {}]
  %s16 = inlined_call_operand.vmem [shape: f32[4,4], index: 16, kind: output, shape index: {}]
  %s17 = sld [smem:[#allocation0]]
  $region74: #{simclr_forward.1} parent=0
    _
  %s19 = ssub.s32 1, %s17
  %s20 = scalar_select 0, %s19, %s17
  // Predicated region
  $region2: #{simclr_forward.1} parent=0 // pred_check
    _
  $region3: #{simclr_forward.1} parent=0 // pred_check_branch
    %22 = sbr.rel (0) target = $region5
  $region4: #{simclr_forward.1} parent=0 // pred_region
    _
  $region5: #{simclr_forward.1} parent=0 // pred_fallthru
    _
  // Predicated region
  $region6: #{simclr_forward.1} parent=0 // pred_check
    _
  $region7: #{simclr_forward.1} parent=0 // pred_check_branch
    %24 = sbr.rel (0) target = $region9
  $region8: #{simclr_forward.1} parent=0 // pred_region
    _
  $region9: #{simclr_forward.1} parent=0 // pred_fallthru
    _
  // Predicated region
  $region10: #{simclr_forward.1} parent=0 // pred_check
    _
  $region11: #{simclr_forward.1} parent=0 // pred_check_branch
    %26 = sbr.rel (0) target = $region13
  $region12: #{simclr_forward.1} parent=0 // pred_region
    _
  $region13: #{simclr_forward.1} parent=0 // pred_fallthru
    _
  // Predicated region
  $region14: #{simclr_forward.1} parent=0 // pred_check
    _
  $region15: #{simclr_forward.1} parent=0 // pred_check_branch
    %28 = sbr.rel (0) target = $region17
  $region16: #{simclr_forward.1} parent=0 // pred_region
    _
  $region17: #{simclr_forward.1} parent=0 // pred_fallthru
    _
  // Predicated region
  $region18: #{simclr_forward.1} parent=0 // pred_check
    _
  $region19: #{simclr_forward.1} parent=0 // pred_check_branch
    %30 = sbr.rel (0) target = $region21
  $region20: #{simclr_forward.1} parent=0 // pred_region
    _
  $region21: #{simclr_forward.1} parent=0 // pred_fallthru
    _
  // Predicated region
  $region22: #{simclr_forward.1} parent=0 // pred_check
    _
  $region23: #{simclr_forward.1} parent=0 // pred_check_branch
    %32 = sbr.rel (0) target = $region25
  $region24: #{simclr_forward.1} parent=0 // pred_region
    _
  $region25: #{simclr_forward.1} parent=0 // pred_fallthru
    _
  // Predicated region
  $region26: #{simclr_forward.1} parent=0 // pred_check
    _
  $region27: #{simclr_forward.1} parent=0 // pred_check_branch
    %34 = sbr.rel (0) target = $region29
  $region28: #{simclr_forward.1} parent=0 // pred_region
    _
  $region29: #{simclr_forward.1} parent=0 // pred_fallthru
    _
  // Predicated region
  $region30: #{simclr_forward.1} parent=0 // pred_check
    _
  $region31: #{simclr_forward.1} parent=0 // pred_check_branch
    %36 = sbr.rel (0) target = $region33
  $region32: #{simclr_forward.1} parent=0 // pred_region
    _
  $region33: #{simclr_forward.1} parent=0 // pred_fallthru
    _
  // Predicated region
  $region34: #{simclr_forward.1} parent=0 // pred_check
    _
  $region35: #{simclr_forward.1} parent=0 // pred_check_branch
    %38 = sbr.rel (0) target = $region37
  $region36: #{simclr_forward.1} parent=0 // pred_region
    _
  $region37: #{simclr_forward.1} parent=0 // pred_fallthru
    _
  // Predicated region
  $region38: #{simclr_forward.1} parent=0 // pred_check
    _
  $region39: #{simclr_forward.1} parent=0 // pred_check_branch
    %40 = sbr.rel (0) target = $region41
  $region40: #{simclr_forward.1} parent=0 // pred_region
    _
  $region41: #{simclr_forward.1} parent=0 // pred_fallthru
    _
  // Predicated region
  $region42: #{simclr_forward.1} parent=0 // pred_check
    _
  $region43: #{simclr_forward.1} parent=0 // pred_check_branch
    %42 = sbr.rel (0) target = $region45
  $region44: #{simclr_forward.1} parent=0 // pred_region
    _
  $region45: #{simclr_forward.1} parent=0 // pred_fallthru
    _
  // Predicated region
  $region46: #{simclr_forward.1} parent=0 // pred_check
    _
  $region47: #{simclr_forward.1} parent=0 // pred_check_branch
    %44 = sbr.rel (0) target = $region49
  $region48: #{simclr_forward.1} parent=0 // pred_region
    _
  $region49: #{simclr_forward.1} parent=0 // pred_fallthru
    _
  // Predicated region
  $region50: #{simclr_forward.1} parent=0 // pred_check
    _
  $region51: #{simclr_forward.1} parent=0 // pred_check_branch
    %46 = sbr.rel (0) target = $region53
  $region52: #{simclr_forward.1} parent=0 // pred_region
    _
  $region53: #{simclr_forward.1} parent=0 // pred_fallthru
    _
  // Predicated region
  $region54: #{simclr_forward.1} parent=0 // pred_check
    _
  $region55: #{simclr_forward.1} parent=0 // pred_check_branch
    %48 = sbr.rel (0) target = $region57
  $region56: #{simclr_forward.1} parent=0 // pred_region
    _
  $region57: #{simclr_forward.1} parent=0 // pred_fallthru
    _
  // Predicated region
  $region58: #{simclr_forward.1} parent=0 // pred_check
    _
  $region59: #{simclr_forward.1} parent=0 // pred_check_branch
    %50 = sbr.rel (0) target = $region61
  $region60: #{simclr_forward.1} parent=0 // pred_region
    _
  $region61: #{simclr_forward.1} parent=0 // pred_fallthru
    _
  // Predicated region
  $region62: #{simclr_forward.1} parent=0 // pred_check
    _
  $region63: #{simclr_forward.1} parent=0 // pred_check_branch
    %52 = sbr.rel (0) target = $region65
  $region64: #{simclr_forward.1} parent=0 // pred_region
    _
  $region65: #{simclr_forward.1} parent=0 // pred_fallthru
    _
  %v54 = vld [vmem:[%s0] sm:$0xf]
  %v55 = vld [vmem:[%s0 + $0x4] sm:$0xf]
  %v56 = vld [vmem:[%s0 + $0x8] sm:$0xf]
  %v57 = vld [vmem:[%s0 + $0xc] sm:$0xf]
  %v58 = vld [vmem:[%s0 + $0x10] sm:$0xf]
  %v59 = vld [vmem:[%s0 + $0x14] sm:$0xf]
  %v60 = vld [vmem:[%s1] sm:$0xf]
  %v61 = vld [vmem:[%s1 + $0x4] sm:$0xf]
  %v62 = vld [vmem:[%s1 + $0x8] sm:$0xf]
  %v63 = vld [vmem:[%s1 + $0xc] sm:$0xf]
  %v64 = vld [vmem:[%s1 + $0x10] sm:$0xf]
  %v65 = vld [vmem:[%s1 + $0x14] sm:$0xf]
  %v66 = vld [vmem:[%s2] sm:$0xff]
  %v67 = vld [vmem:[%s2 + $0x8] sm:$0xff]
  %v68 = vld [vmem:[%s2 + $0x10] sm:$0xff]
  %v69 = vld [vmem:[%s2 + $0x18] sm:$0xff]
  %v70 = vld [vmem:[%s2 + $0x20] sm:$0xff]
  %v71 = vld [vmem:[%s2 + $0x28] sm:$0xff]
  %v78 = vunpack.c.l.b16 %v54
  %v79 = vunpack.c.l.b16 %v55
  %v80 = vunpack.c.l.b16 %v56
  %v81 = vunpack.c.l.b16 %v57
  %v82 = vunpack.c.l.b16 %v58
  %v83 = vunpack.c.l.b16 %v59
  %v84 = vpack.c.b16 %v79, %v78
  %v85 = vpack.c.b16 %v81, %v80
  %v86 = vpack.c.b16 %v83, %v82
  %v93 = vunpack.c.l.b16 %v60
  %v94 = vunpack.c.l.b16 %v61
  %v95 = vunpack.c.l.b16 %v62
  %v96 = vunpack.c.l.b16 %v63
  %v97 = vunpack.c.l.b16 %v64
  %v98 = vunpack.c.l.b16 %v65
  %v99 = vpack.c.b16 %v94, %v93
  %v100 = vpack.c.b16 %v96, %v95
  %v101 = vpack.c.b16 %v98, %v97
  %vm105 = vcmask 392192
  %v107 = vsel %vm105, %v84, 0
  %v110 = vsel %vm105, %v85, 0
  %v113 = vsel %vm105, %v86, 0
  %115 = vmatpush.bf16.msra.mxu0 0
  %116 = vmatpush.bf16.msra.mxu0 0
  %117 = vmatpush.bf16.msra.mxu0 0
  %118 = vmatpush.bf16.msra.mxu0 0
  %119 = vmatpush.bf16.msra.mxu0 0
  %120 = vmatpush.bf16.msra.mxu0 %v101
  %121 = vmatpush.bf16.msra.mxu0 %v100
  %122 = vmatpush.bf16.msra.mxu0 %v99
  %123 = vmatmul.bf16.gmra.mxu0 %v107
  %v124 = vpop.f32.mrf.mxu0
  %v125 = vadd.f32 %v66, %v124
  %v126 = vpop.f32.mrf.mxu0
  %v127 = vadd.f32 %v67, %v126
  %128 = vmatmul.bf16.gmra.mxu0 %v110
  %v129 = vpop.f32.mrf.mxu0
  %v130 = vadd.f32 %v68, %v129
  %v131 = vpop.f32.mrf.mxu0
  %v132 = vadd.f32 %v69, %v131
  %133 = vmatmul.bf16.gmra.mxu0 %v113
  %v134 = vpop.f32.mrf.mxu0
  %v135 = vadd.f32 %v70, %v134
  %v136 = vpop.f32.mrf.mxu0
  %v137 = vadd.f32 %v71, %v136
  %138 = vdwg.mxu0
  %v139 = vld [vmem:[%s3] sm:$0xff]
  %v140 = vld [vmem:[%s3 + $0x8] sm:$0xff]
  %v141 = vld [vmem:[%s3 + $0x10] sm:$0xff]
  %v142 = vld [vmem:[%s3 + $0x18] sm:$0xff]
  %v143 = vld [vmem:[%s3 + $0x20] sm:$0xff]
  %v144 = vld [vmem:[%s3 + $0x28] sm:$0xff]
  %v145 = vld [vmem:[%s3 + $0x30] sm:$0xff]
  %v146 = vld [vmem:[%s3 + $0x38] sm:$0xff]
  %v147 = vld [vmem:[%s3 + $0x40] sm:$0xff]
  %v148 = vld [vmem:[%s3 + $0x48] sm:$0xff]
  %v149 = vld [vmem:[%s3 + $0x50] sm:$0xff]
  %v150 = vld [vmem:[%s3 + $0x58] sm:$0xff]
  %v151 = vld [vmem:[%s3 + $0x60] sm:$0xff]
  %v152 = vld [vmem:[%s3 + $0x68] sm:$0xff]
  %v153 = vld [vmem:[%s3 + $0x70] sm:$0xff]
  %v154 = vld [vmem:[%s3 + $0x78] sm:$0xff]
  %v155 = vld [vmem:[%s3 + $0x80] sm:$0xff]
  %v156 = vld [vmem:[%s3 + $0x88] sm:$0xff]
  %v157 = vld [vmem:[%s3 + $0x90] sm:$0xff]
  %v158 = vld [vmem:[%s3 + $0x98] sm:$0xff]
  %v159 = vld [vmem:[%s3 + $0xa0] sm:$0xff]
  %v160 = vld [vmem:[%s3 + $0xa8] sm:$0xff]
  %v161 = vld [vmem:[%s3 + $0xb0] sm:$0xff]
  %v162 = vld [vmem:[%s3 + $0xb8] sm:$0xff]
  %v163 = vld [vmem:[%s4] sm:$0xff]
  %v164 = vld [vmem:[%s4 + $0x8] sm:$0xff]
  %v165 = vld [vmem:[%s4 + $0x10] sm:$0xff]
  %v166 = vld [vmem:[%s4 + $0x18] sm:$0xff]
  %v167 = vld [vmem:[%s4 + $0x20] sm:$0xff]
  %v168 = vld [vmem:[%s4 + $0x28] sm:$0xff]
  %v169 = vld [vmem:[%s4 + $0x30] sm:$0xff]
  %v170 = vld [vmem:[%s4 + $0x38] sm:$0xff]
  %v171 = vld [vmem:[%s4 + $0x40] sm:$0xff]
  %v172 = vld [vmem:[%s4 + $0x48] sm:$0xff]
  %v173 = vld [vmem:[%s4 + $0x50] sm:$0xff]
  %v174 = vld [vmem:[%s4 + $0x58] sm:$0xff]
  %v175 = vld [vmem:[%s4 + $0x60] sm:$0xff]
  %v176 = vld [vmem:[%s4 + $0x68] sm:$0xff]
  %v177 = vld [vmem:[%s4 + $0x70] sm:$0xff]
  %v178 = vld [vmem:[%s4 + $0x78] sm:$0xff]
  %v179 = vld [vmem:[%s4 + $0x80] sm:$0xff]
  %v180 = vld [vmem:[%s4 + $0x88] sm:$0xff]
  %v181 = vld [vmem:[%s4 + $0x90] sm:$0xff]
  %v182 = vld [vmem:[%s4 + $0x98] sm:$0xff]
  %v183 = vld [vmem:[%s4 + $0xa0] sm:$0xff]
  %v184 = vld [vmem:[%s4 + $0xa8] sm:$0xff]
  %v185 = vld [vmem:[%s4 + $0xb0] sm:$0xff]
  %v186 = vld [vmem:[%s4 + $0xb8] sm:$0xff]
  %v187 = vld [vmem:[%s11] sm:$0xff]
  %v188 = vld [vmem:[%s11 + $0x8] sm:$0x3]
  %vm189 = vcmask 261120
  %v190 = vsel %vm189, %v125, 0.0
  %191 = vadd.xlane.f32.xlu0 %v190
  %v192 = vpop.xlane.xlu0 %191
  %v193 = vsel %vm189, %v127, 0.0
  %194 = vadd.xlane.f32.xlu0 %v193
  %v195 = vpop.xlane.xlu0 %194
  %v196 = vsel %vm189, %v130, 0.0
  %197 = vadd.xlane.f32.xlu0 %v196
  %v198 = vpop.xlane.xlu0 %197
  %v199 = vsel %vm189, %v132, 0.0
  %200 = vadd.xlane.f32.xlu0 %v199
  %v201 = vpop.xlane.xlu0 %200
  %v202 = vsel %vm189, %v135, 0.0
  %203 = vadd.xlane.f32.xlu0 %v202
  %v204 = vpop.xlane.xlu0 %203
  %v205 = vsel %vm189, %v137, 0.0
  %206 = vadd.xlane.f32.xlu0 %v205
  %v207 = vpop.xlane.xlu0 %206
  %v208 = vrcp.pop 32.0
  %v209 = vmul.f32 32.0, %v208
  %v210 = vsub.f32 1.0, %v209
  %v211 = vmul.f32 %v208, %v210
  %v212 = vadd.f32 %v208, %v211
  %vm213 = vweird.f32 %v208
  %v214 = vsel %vm213, %v208, %v212
  %v215 = vmul.f32 %v192, %v214
  %v216 = vmul.f32 %v195, %v214
  %v217 = vmul.f32 %v198, %v214
  %v218 = vmul.f32 %v201, %v214
  %v219 = vmul.f32 %v204, %v214
  %v220 = vmul.f32 %v207, %v214
  %v221 = vsub.f32 %v125, %v215
  %v222 = vsub.f32 %v127, %v216
  %v223 = vsub.f32 %v130, %v217
  %v224 = vsub.f32 %v132, %v218
  %v225 = vsub.f32 %v135, %v219
  %v226 = vsub.f32 %v137, %v220
  %v227 = vmul.f32 %v221, %v221
  %v228 = vmul.f32 %v222, %v222
  %v229 = vmul.f32 %v223, %v223
  %v230 = vmul.f32 %v224, %v224
  %v231 = vmul.f32 %v225, %v225
  %v232 = vmul.f32 %v226, %v226
  %v233 = vsel %vm189, %v227, 0.0
  %234 = vadd.xlane.f32.xlu0 %v233
  %v235 = vpop.xlane.xlu0 %234
  %v236 = vsel %vm189, %v228, 0.0
  %237 = vadd.xlane.f32.xlu0 %v236
  %v238 = vpop.xlane.xlu0 %237
  %v239 = vsel %vm189, %v229, 0.0
  %240 = vadd.xlane.f32.xlu0 %v239
  %v241 = vpop.xlane.xlu0 %240
  %v242 = vsel %vm189, %v230, 0.0
  %243 = vadd.xlane.f32.xlu0 %v242
  %v244 = vpop.xlane.xlu0 %243
  %v245 = vsel %vm189, %v231, 0.0
  %246 = vadd.xlane.f32.xlu0 %v245
  %v247 = vpop.xlane.xlu0 %246
  %v248 = vsel %vm189, %v232, 0.0
  %249 = vadd.xlane.f32.xlu0 %v248
  %v250 = vpop.xlane.xlu0 %249
  %v251 = vmul.f32 %v235, %v214
  %v252 = vmul.f32 %v238, %v214
  %v253 = vmul.f32 %v241, %v214
  %v254 = vmul.f32 %v244, %v214
  %v255 = vmul.f32 %v247, %v214
  %v256 = vmul.f32 %v250, %v214
  %v257 = vadd.f32 %v251, 1e-06
  %v258 = vadd.f32 %v252, 1e-06
  %v259 = vadd.f32 %v253, 1e-06
  %v260 = vadd.f32 %v254, 1e-06
  %v261 = vadd.f32 %v255, 1e-06
  %v262 = vadd.f32 %v256, 1e-06
  %v263 = vrsqrt.pop %v257
  %v264 = vmul.f32 %v263, %v257
  %v265 = vmul.f32 %v264, %v263
  %v266 = vmul.f32 0.5, %v265
  %v267 = vsub.f32 1.5, %v266
  %v268 = vmul.f32 %v263, %v267
  %vm269 = vweird.f32 %v257
  %vm270 = vweird.f32 %v263
  %vm271 = vmor %vm269, %vm270
  %v272 = vsel %vm271, %v263, %v268
  %v273 = vrsqrt.pop %v258
  %v274 = vmul.f32 %v273, %v258
  %v275 = vmul.f32 %v274, %v273
  %v276 = vmul.f32 0.5, %v275
  %v277 = vsub.f32 1.5, %v276
  %v278 = vmul.f32 %v273, %v277
  %vm279 = vweird.f32 %v258
  %vm280 = vweird.f32 %v273
  %vm281 = vmor %vm279, %vm280
  %v282 = vsel %vm281, %v273, %v278
  %v283 = vrsqrt.pop %v259
  %v284 = vmul.f32 %v283, %v259
  %v285 = vmul.f32 %v284, %v283
  %v286 = vmul.f32 0.5, %v285
  %v287 = vsub.f32 1.5, %v286
  %v288 = vmul.f32 %v283, %v287
  %vm289 = vweird.f32 %v259
  %vm290 = vweird.f32 %v283
  %vm291 = vmor %vm289, %vm290
  %v292 = vsel %vm291, %v283, %v288
  %v293 = vrsqrt.pop %v260
  %v294 = vmul.f32 %v293, %v260
  %v295 = vmul.f32 %v294, %v293
  %v296 = vmul.f32 0.5, %v295
  %v297 = vsub.f32 1.5, %v296
  %v298 = vmul.f32 %v293, %v297
  %vm299 = vweird.f32 %v260
  %vm300 = vweird.f32 %v293
  %vm301 = vmor %vm299, %vm300
  %v302 = vsel %vm301, %v293, %v298
  %v303 = vrsqrt.pop %v261
  %v304 = vmul.f32 %v303, %v261
  %v305 = vmul.f32 %v304, %v303
  %v306 = vmul.f32 0.5, %v305
  %v307 = vsub.f32 1.5, %v306
  %v308 = vmul.f32 %v303, %v307
  %vm309 = vweird.f32 %v261
  %vm310 = vweird.f32 %v303
  %vm311 = vmor %vm309, %vm310
  %v312 = vsel %vm311, %v303, %v308
  %v313 = vrsqrt.pop %v262
  %v314 = vmul.f32 %v313, %v262
  %v315 = vmul.f32 %v314, %v313
  %v316 = vmul.f32 0.5, %v315
  %v317 = vsub.f32 1.5, %v316
  %v318 = vmul.f32 %v313, %v317
  %vm319 = vweird.f32 %v262
  %vm320 = vweird.f32 %v313
  %vm321 = vmor %vm319, %vm320
  %v322 = vsel %vm321, %v313, %v318
  %v323 = vmul.f32 %v221, %v272
  %v324 = vmul.f32 %v222, %v282
  %v325 = vmul.f32 %v223, %v292
  %v326 = vmul.f32 %v224, %v302
  %v327 = vmul.f32 %v225, %v312
  %v328 = vmul.f32 %v226, %v322
  %v329 = vperm.slane %v187, 0
  %v330 = vmul.f32 %v323, %v329
  %v331 = vmul.f32 %v324, %v329
  %v332 = vmul.f32 %v325, %v329
  %v333 = vmul.f32 %v326, %v329
  %v334 = vmul.f32 %v327, %v329
  %v335 = vmul.f32 %v328, %v329
  %v336 = vperm.slane %v187, 1
  %v337 = vadd.f32 %v330, %v336
  %v338 = vadd.f32 %v331, %v336
  %v339 = vadd.f32 %v332, %v336
  %v340 = vadd.f32 %v333, %v336
  %v341 = vadd.f32 %v334, %v336
  %v342 = vadd.f32 %v335, %v336
  %v343 = vpack.c.bf16 %v338, %v337
  %v344 = vpack.c.bf16 %v340, %v339
  %v345 = vpack.c.bf16 %v342, %v341
  %v346 = vld [vmem:[%s5] sm:$0xf]
  %v347 = vld [vmem:[%s5 + $0x4] sm:$0xf]
  %v348 = vld [vmem:[%s5 + $0x8] sm:$0xf]
  %v349 = vld [vmem:[%s5 + $0xc] sm:$0xf]
  %v350 = vperm.slane %v187, 2
  %v355 = vunpack.c.l.b16 %v346
  %v356 = vunpack.c.l.b16 %v347
  %v357 = vunpack.c.l.b16 %v348
  %v358 = vunpack.c.l.b16 %v349
  %v359 = vpack.c.b16 %v356, %v355
  %v360 = vpack.c.b16 %v358, %v357
  %v364 = vsel %vm189, %v343, 0
  %v367 = vsel %vm189, %v344, 0
  %v370 = vsel %vm189, %v345, 0
  %372 = vmatpush.bf16.msra.mxu0 0
  %373 = vmatpush.bf16.msra.mxu0 0
  %374 = vmatpush.bf16.msra.mxu0 0
  %375 = vmatpush.bf16.msra.mxu0 0
  %376 = vmatpush.bf16.msra.mxu0 0
  %377 = vmatpush.bf16.msra.mxu0 0
  %378 = vmatpush.bf16.msra.mxu0 %v360
  %379 = vmatpush.bf16.msra.mxu0 %v359
  %380 = vmatmul.bf16.gmra.mxu0 %v364
  %v381 = vpop.f32.mrf.mxu0
  %v382 = vadd.f32 %v350, %v381
  %v383 = vpop.f32.mrf.mxu0
  %v384 = vadd.f32 %v350, %v383
  %385 = vmatmul.bf16.gmra.mxu0 %v367
  %v386 = vpop.f32.mrf.mxu0
  %v387 = vadd.f32 %v350, %v386
  %v388 = vpop.f32.mrf.mxu0
  %v389 = vadd.f32 %v350, %v388
  %390 = vmatmul.bf16.gmra.mxu0 %v370
  %v391 = vpop.f32.mrf.mxu0
  %v392 = vadd.f32 %v350, %v391
  %v393 = vpop.f32.mrf.mxu0
  %v394 = vadd.f32 %v350, %v393
  %395 = vdwg.mxu0
  %v396 = vld [vmem:[%s6] sm:$0xf]
  %v397 = vld [vmem:[%s6 + $0x4] sm:$0xf]
  %v398 = vld [vmem:[%s6 + $0x8] sm:$0xf]
  %v399 = vld [vmem:[%s6 + $0xc] sm:$0xf]
  %v400 = vperm.slane %v187, 3
  %v405 = vunpack.c.l.b16 %v396
  %v406 = vunpack.c.l.b16 %v397
  %v407 = vunpack.c.l.b16 %v398
  %v408 = vunpack.c.l.b16 %v399
  %v409 = vpack.c.b16 %v406, %v405
  %v410 = vpack.c.b16 %v408, %v407
  %413 = vmatpush.bf16.msra.mxu0 0
  %414 = vmatpush.bf16.msra.mxu0 0
  %415 = vmatpush.bf16.msra.mxu0 0
  %416 = vmatpush.bf16.msra.mxu0 0
  %417 = vmatpush.bf16.msra.mxu0 0
  %418 = vmatpush.bf16.msra.mxu0 0
  %419 = vmatpush.bf16.msra.mxu0 %v410
  %420 = vmatpush.bf16.msra.mxu0 %v409
  %421 = vmatmul.bf16.gmra.mxu0 %v364
  %v422 = vpop.f32.mrf.mxu0
  %v423 = vadd.f32 %v400, %v422
  %v424 = vpop.f32.mrf.mxu0
  %v425 = vadd.f32 %v400, %v424
  %426 = vmatmul.bf16.gmra.mxu0 %v367
  %v427 = vpop.f32.mrf.mxu0
  %v428 = vadd.f32 %v400, %v427
  %v429 = vpop.f32.mrf.mxu0
  %v430 = vadd.f32 %v400, %v429
  %431 = vmatmul.bf16.gmra.mxu0 %v370
  %v432 = vpop.f32.mrf.mxu0
  %v433 = vadd.f32 %v400, %v432
  %v434 = vpop.f32.mrf.mxu0
  %v435 = vadd.f32 %v400, %v434
  %436 = vdwg.mxu0
  %v437 = vld [vmem:[%s7] sm:$0xf]
  %v438 = vld [vmem:[%s7 + $0x4] sm:$0xf]
  %v439 = vld [vmem:[%s7 + $0x8] sm:$0xf]
  %v440 = vld [vmem:[%s7 + $0xc] sm:$0xf]
  %v441 = vperm.slane %v187, 4
  %v446 = vunpack.c.l.b16 %v437
  %v447 = vunpack.c.l.b16 %v438
  %v448 = vunpack.c.l.b16 %v439
  %v449 = vunpack.c.l.b16 %v440
  %v450 = vpack.c.b16 %v447, %v446
  %v451 = vpack.c.b16 %v449, %v448
  %454 = vmatpush.bf16.msra.mxu0 0
  %455 = vmatpush.bf16.msra.mxu0 0
  %456 = vmatpush.bf16.msra.mxu0 0
  %457 = vmatpush.bf16.msra.mxu0 0
  %458 = vmatpush.bf16.msra.mxu0 0
  %459 = vmatpush.bf16.msra.mxu0 0
  %460 = vmatpush.bf16.msra.mxu0 %v451
  %461 = vmatpush.bf16.msra.mxu0 %v450
  %462 = vmatmul.bf16.gmra.mxu0 %v364
  %v463 = vpop.f32.mrf.mxu0
  %v464 = vadd.f32 %v441, %v463
  %v465 = vpop.f32.mrf.mxu0
  %v466 = vadd.f32 %v441, %v465
  %467 = vmatmul.bf16.gmra.mxu0 %v367
  %v468 = vpop.f32.mrf.mxu0
  %v469 = vadd.f32 %v441, %v468
  %v470 = vpop.f32.mrf.mxu0
  %v471 = vadd.f32 %v441, %v470
  %472 = vmatmul.bf16.gmra.mxu0 %v370
  %v473 = vpop.f32.mrf.mxu0
  %v474 = vadd.f32 %v441, %v473
  %v475 = vpop.f32.mrf.mxu0
  %v476 = vadd.f32 %v441, %v475
  %477 = vdwg.mxu0
  %v478 = vmul.f32 %v382, %v139
  %v479 = vmul.f32 %v384, %v140
  %v480 = vmul.f32 %v387, %v141
  %v481 = vmul.f32 %v389, %v142
  %v482 = vmul.f32 %v392, %v143
  %v483 = vmul.f32 %v394, %v144
  %v484 = vmul.f32 %v382, %v145
  %v485 = vmul.f32 %v384, %v146
  %v486 = vmul.f32 %v387, %v147
  %v487 = vmul.f32 %v389, %v148
  %v488 = vmul.f32 %v392, %v149
  %v489 = vmul.f32 %v394, %v150
  %v490 = vmul.f32 %v382, %v151
  %v491 = vmul.f32 %v384, %v152
  %v492 = vmul.f32 %v387, %v153
  %v493 = vmul.f32 %v389, %v154
  %v494 = vmul.f32 %v392, %v155
  %v495 = vmul.f32 %v394, %v156
  %v496 = vmul.f32 %v382, %v157
  %v497 = vmul.f32 %v384, %v158
  %v498 = vmul.f32 %v387, %v159
  %v499 = vmul.f32 %v389, %v160
  %v500 = vmul.f32 %v392, %v161
  %v501 = vmul.f32 %v394, %v162
  %v502 = vpack.c.bf16 %v479, %v478
  %v503 = vpack.c.bf16 %v481, %v480
  %v504 = vpack.c.bf16 %v483, %v482
  %v505 = vpack.c.bf16 %v485, %v484
  %v506 = vpack.c.bf16 %v487, %v486
  %v507 = vpack.c.bf16 %v489, %v488
  %v508 = vpack.c.bf16 %v491, %v490
  %v509 = vpack.c.bf16 %v493, %v492
  %v510 = vpack.c.bf16 %v495, %v494
  %v511 = vpack.c.bf16 %v497, %v496
  %v512 = vpack.c.bf16 %v499, %v498
  %v513 = vpack.c.bf16 %v501, %v500
  %v514 = vpack.c.bf16 %v425, %v423
  %v515 = vpack.c.bf16 %v430, %v428
  %v516 = vpack.c.bf16 %v435, %v433
  %v518 = vsel %vm189, %v502, 0
  %v521 = vsel %vm189, %v503, 0
  %v524 = vsel %vm189, %v504, 0
  %v527 = vsel %vm189, %v505, 0
  %v530 = vsel %vm189, %v506, 0
  %v533 = vsel %vm189, %v507, 0
  %v536 = vsel %vm189, %v508, 0
  %v539 = vsel %vm189, %v509, 0
  %v542 = vsel %vm189, %v510, 0
  %v545 = vsel %vm189, %v511, 0
  %v548 = vsel %vm189, %v512, 0
  %v551 = vsel %vm189, %v513, 0
  %v554 = vsel %vm189, %v514, 0
  %v557 = vsel %vm189, %v515, 0
  %v560 = vsel %vm189, %v516, 0
  %562 = vmatpush.bf16.xpose.msra.mxu0 0
  %563 = vmatpush.bf16.xpose.msra.mxu0 0
  %564 = vmatpush.bf16.xpose.msra.mxu0 0
  %565 = vmatpush.bf16.xpose.msra.mxu0 0
  %566 = vmatpush.bf16.xpose.msra.mxu0 0
  %567 = vmatpush.bf16.xpose.msra.mxu0 %v560
  %568 = vmatpush.bf16.xpose.msra.mxu0 %v557
  %569 = vmatpush.bf16.xpose.msra.mxu0 %v554
  %570 = vmatmul.bf16.gmra.mxu0 %v518
  %v571 = vpop.f32.mrf.mxu0
  %v572 = vadd.f32 %v163, %v571
  %v573 = vpop.f32.mrf.mxu0
  %v574 = vadd.f32 %v164, %v573
  %575 = vmatmul.bf16.gmra.mxu0 %v521
  %v576 = vpop.f32.mrf.mxu0
  %v577 = vadd.f32 %v165, %v576
  %v578 = vpop.f32.mrf.mxu0
  %v579 = vadd.f32 %v166, %v578
  %580 = vmatmul.bf16.gmra.mxu0 %v524
  %v581 = vpop.f32.mrf.mxu0
  %v582 = vadd.f32 %v167, %v581
  %v583 = vpop.f32.mrf.mxu0
  %v584 = vadd.f32 %v168, %v583
  %585 = vmatmul.bf16.gmra.mxu0 %v527
  %v586 = vpop.f32.mrf.mxu0
  %v587 = vadd.f32 %v169, %v586
  %v588 = vpop.f32.mrf.mxu0
  %v589 = vadd.f32 %v170, %v588
  %590 = vmatmul.bf16.gmra.mxu0 %v530
  %v591 = vpop.f32.mrf.mxu0
  %v592 = vadd.f32 %v171, %v591
  %v593 = vpop.f32.mrf.mxu0
  %v594 = vadd.f32 %v172, %v593
  %595 = vmatmul.bf16.gmra.mxu0 %v533
  %v596 = vpop.f32.mrf.mxu0
  %v597 = vadd.f32 %v173, %v596
  %v598 = vpop.f32.mrf.mxu0
  %v599 = vadd.f32 %v174, %v598
  %600 = vmatmul.bf16.gmra.mxu0 %v536
  %v601 = vpop.f32.mrf.mxu0
  %v602 = vadd.f32 %v175, %v601
  %v603 = vpop.f32.mrf.mxu0
  %v604 = vadd.f32 %v176, %v603
  %605 = vmatmul.bf16.gmra.mxu0 %v539
  %v606 = vpop.f32.mrf.mxu0
  %v607 = vadd.f32 %v177, %v606
  %v608 = vpop.f32.mrf.mxu0
  %v609 = vadd.f32 %v178, %v608
  %610 = vmatmul.bf16.gmra.mxu0 %v542
  %v611 = vpop.f32.mrf.mxu0
  %v612 = vadd.f32 %v179, %v611
  %v613 = vpop.f32.mrf.mxu0
  %v614 = vadd.f32 %v180, %v613
  %615 = vmatmul.bf16.gmra.mxu0 %v545
  %v616 = vpop.f32.mrf.mxu0
  %v617 = vadd.f32 %v181, %v616
  %v618 = vpop.f32.mrf.mxu0
  %v619 = vadd.f32 %v182, %v618
  %620 = vmatmul.bf16.gmra.mxu0 %v548
  %v621 = vpop.f32.mrf.mxu0
  %v622 = vadd.f32 %v183, %v621
  %v623 = vpop.f32.mrf.mxu0
  %v624 = vadd.f32 %v184, %v623
  %625 = vmatmul.bf16.gmra.mxu0 %v551
  %v626 = vpop.f32.mrf.mxu0
  %v627 = vadd.f32 %v185, %v626
  %v628 = vpop.f32.mrf.mxu0
  %v629 = vadd.f32 %v186, %v628
  %630 = vdwg.mxu0
  %v631 = vsel %vm105, %v572, -inf
  %632 = vmax.xlane.f32.xlu0 %v631
  %v633 = vpop.xlane.xlu0 %632
  %v634 = vsel %vm105, %v574, -inf
  %635 = vmax.xlane.f32.xlu0 %v634
  %v636 = vpop.xlane.xlu0 %635
  %v637 = vsel %vm105, %v577, -inf
  %638 = vmax.xlane.f32.xlu0 %v637
  %v639 = vpop.xlane.xlu0 %638
  %v640 = vsel %vm105, %v579, -inf
  %641 = vmax.xlane.f32.xlu0 %v640
  %v642 = vpop.xlane.xlu0 %641
  %v643 = vsel %vm105, %v582, -inf
  %644 = vmax.xlane.f32.xlu0 %v643
  %v645 = vpop.xlane.xlu0 %644
  %v646 = vsel %vm105, %v584, -inf
  %647 = vmax.xlane.f32.xlu0 %v646
  %v648 = vpop.xlane.xlu0 %647
  %v649 = vsel %vm105, %v587, -inf
  %650 = vmax.xlane.f32.xlu0 %v649
  %v651 = vpop.xlane.xlu0 %650
  %v652 = vsel %vm105, %v589, -inf
  %653 = vmax.xlane.f32.xlu0 %v652
  %v654 = vpop.xlane.xlu0 %653
  %v655 = vsel %vm105, %v592, -inf
  %656 = vmax.xlane.f32.xlu0 %v655
  %v657 = vpop.xlane.xlu0 %656
  %v658 = vsel %vm105, %v594, -inf
  %659 = vmax.xlane.f32.xlu0 %v658
  %v660 = vpop.xlane.xlu0 %659
  %v661 = vsel %vm105, %v597, -inf
  %662 = vmax.xlane.f32.xlu0 %v661
  %v663 = vpop.xlane.xlu0 %662
  %v664 = vsel %vm105, %v599, -inf
  %665 = vmax.xlane.f32.xlu0 %v664
  %v666 = vpop.xlane.xlu0 %665
  %v667 = vsel %vm105, %v602, -inf
  %668 = vmax.xlane.f32.xlu0 %v667
  %v669 = vpop.xlane.xlu0 %668
  %v670 = vsel %vm105, %v604, -inf
  %671 = vmax.xlane.f32.xlu0 %v670
  %v672 = vpop.xlane.xlu0 %671
  %v673 = vsel %vm105, %v607, -inf
  %674 = vmax.xlane.f32.xlu0 %v673
  %v675 = vpop.xlane.xlu0 %674
  %v676 = vsel %vm105, %v609, -inf
  %677 = vmax.xlane.f32.xlu0 %v676
  %v678 = vpop.xlane.xlu0 %677
  %v679 = vsel %vm105, %v612, -inf
  %680 = vmax.xlane.f32.xlu0 %v679
  %v681 = vpop.xlane.xlu0 %680
  %v682 = vsel %vm105, %v614, -inf
  %683 = vmax.xlane.f32.xlu0 %v682
  %v684 = vpop.xlane.xlu0 %683
  %v685 = vsel %vm105, %v617, -inf
  %686 = vmax.xlane.f32.xlu0 %v685
  %v687 = vpop.xlane.xlu0 %686
  %v688 = vsel %vm105, %v619, -inf
  %689 = vmax.xlane.f32.xlu0 %v688
  %v690 = vpop.xlane.xlu0 %689
  %v691 = vsel %vm105, %v622, -inf
  %692 = vmax.xlane.f32.xlu0 %v691
  %v693 = vpop.xlane.xlu0 %692
  %v694 = vsel %vm105, %v624, -inf
  %695 = vmax.xlane.f32.xlu0 %v694
  %v696 = vpop.xlane.xlu0 %695
  %v697 = vsel %vm105, %v627, -inf
  %698 = vmax.xlane.f32.xlu0 %v697
  %v699 = vpop.xlane.xlu0 %698
  %v700 = vsel %vm105, %v629, -inf
  %701 = vmax.xlane.f32.xlu0 %v700
  %v702 = vpop.xlane.xlu0 %701
  %v703 = vsub.f32 %v572, %v633
  %v704 = vsub.f32 %v574, %v636
  %v705 = vsub.f32 %v577, %v639
  %v706 = vsub.f32 %v579, %v642
  %v707 = vsub.f32 %v582, %v645
  %v708 = vsub.f32 %v584, %v648
  %v709 = vsub.f32 %v587, %v651
  %v710 = vsub.f32 %v589, %v654
  %v711 = vsub.f32 %v592, %v657
  %v712 = vsub.f32 %v594, %v660
  %v713 = vsub.f32 %v597, %v663
  %v714 = vsub.f32 %v599, %v666
  %v715 = vsub.f32 %v602, %v669
  %v716 = vsub.f32 %v604, %v672
  %v717 = vsub.f32 %v607, %v675
  %v718 = vsub.f32 %v609, %v678
  %v719 = vsub.f32 %v612, %v681
  %v720 = vsub.f32 %v614, %v684
  %v721 = vsub.f32 %v617, %v687
  %v722 = vsub.f32 %v619, %v690
  %v723 = vsub.f32 %v622, %v693
  %v724 = vsub.f32 %v624, %v696
  %v725 = vsub.f32 %v627, %v699
  %v726 = vsub.f32 %v629, %v702
  %v727 = vmul.f32 %v703, 1.442695
  %v728 = vpow.pop %v727
  %v729 = vmul.f32 %v704, 1.442695
  %v730 = vpow.pop %v729
  %v731 = vmul.f32 %v705, 1.442695
  %v732 = vpow.pop %v731
  %v733 = vmul.f32 %v706, 1.442695
  %v734 = vpow.pop %v733
  %v735 = vmul.f32 %v707, 1.442695
  %v736 = vpow.pop %v735
  %v737 = vmul.f32 %v708, 1.442695
  %v738 = vpow.pop %v737
  %v739 = vmul.f32 %v709, 1.442695
  %v740 = vpow.pop %v739
  %v741 = vmul.f32 %v710, 1.442695
  %v742 = vpow.pop %v741
  %v743 = vmul.f32 %v711, 1.442695
  %v744 = vpow.pop %v743
  %v745 = vmul.f32 %v712, 1.442695
  %v746 = vpow.pop %v745
  %v747 = vmul.f32 %v713, 1.442695
  %v748 = vpow.pop %v747
  %v749 = vmul.f32 %v714, 1.442695
  %v750 = vpow.pop %v749
  %v751 = vmul.f32 %v715, 1.442695
  %v752 = vpow.pop %v751
  %v753 = vmul.f32 %v716, 1.442695
  %v754 = vpow.pop %v753
  %v755 = vmul.f32 %v717, 1.442695
  %v756 = vpow.pop %v755
  %v757 = vmul.f32 %v718, 1.442695
  %v758 = vpow.pop %v757
  %v759 = vmul.f32 %v719, 1.442695
  %v760 = vpow.pop %v759
  %v761 = vmul.f32 %v720, 1.442695
  %v762 = vpow.pop %v761
  %v763 = vmul.f32 %v721, 1.442695
  %v764 = vpow.pop %v763
  %v765 = vmul.f32 %v722, 1.442695
  %v766 = vpow.pop %v765
  %v767 = vmul.f32 %v723, 1.442695
  %v768 = vpow.pop %v767
  %v769 = vmul.f32 %v724, 1.442695
  %v770 = vpow.pop %v769
  %v771 = vmul.f32 %v725, 1.442695
  %v772 = vpow.pop %v771
  %v773 = vmul.f32 %v726, 1.442695
  %v774 = vpow.pop %v773
  %v775 = vsel %vm105, %v728, 0.0
  %776 = vadd.xlane.f32.xlu0 %v775
  %v777 = vpop.xlane.xlu0 %776
  %v778 = vsel %vm105, %v730, 0.0
  %779 = vadd.xlane.f32.xlu0 %v778
  %v780 = vpop.xlane.xlu0 %779
  %v781 = vsel %vm105, %v732, 0.0
  %782 = vadd.xlane.f32.xlu0 %v781
  %v783 = vpop.xlane.xlu0 %782
  %v784 = vsel %vm105, %v734, 0.0
  %785 = vadd.xlane.f32.xlu0 %v784
  %v786 = vpop.xlane.xlu0 %785
  %v787 = vsel %vm105, %v736, 0.0
  %788 = vadd.xlane.f32.xlu0 %v787
  %v789 = vpop.xlane.xlu0 %788
  %v790 = vsel %vm105, %v738, 0.0
  %791 = vadd.xlane.f32.xlu0 %v790
  %v792 = vpop.xlane.xlu0 %791
  %v793 = vsel %vm105, %v740, 0.0
  %794 = vadd.xlane.f32.xlu0 %v793
  %v795 = vpop.xlane.xlu0 %794
  %v796 = vsel %vm105, %v742, 0.0
  %797 = vadd.xlane.f32.xlu0 %v796
  %v798 = vpop.xlane.xlu0 %797
  %v799 = vsel %vm105, %v744, 0.0
  %800 = vadd.xlane.f32.xlu0 %v799
  %v801 = vpop.xlane.xlu0 %800
  %v802 = vsel %vm105, %v746, 0.0
  %803 = vadd.xlane.f32.xlu0 %v802
  %v804 = vpop.xlane.xlu0 %803
  %v805 = vsel %vm105, %v748, 0.0
  %806 = vadd.xlane.f32.xlu0 %v805
  %v807 = vpop.xlane.xlu0 %806
  %v808 = vsel %vm105, %v750, 0.0
  %809 = vadd.xlane.f32.xlu0 %v808
  %v810 = vpop.xlane.xlu0 %809
  %v811 = vsel %vm105, %v752, 0.0
  %812 = vadd.xlane.f32.xlu0 %v811
  %v813 = vpop.xlane.xlu0 %812
  %v814 = vsel %vm105, %v754, 0.0
  %815 = vadd.xlane.f32.xlu0 %v814
  %v816 = vpop.xlane.xlu0 %815
  %v817 = vsel %vm105, %v756, 0.0
  %818 = vadd.xlane.f32.xlu0 %v817
  %v819 = vpop.xlane.xlu0 %818
  %v820 = vsel %vm105, %v758, 0.0
  %821 = vadd.xlane.f32.xlu0 %v820
  %v822 = vpop.xlane.xlu0 %821
  %v823 = vsel %vm105, %v760, 0.0
  %824 = vadd.xlane.f32.xlu0 %v823
  %v825 = vpop.xlane.xlu0 %824
  %v826 = vsel %vm105, %v762, 0.0
  %827 = vadd.xlane.f32.xlu0 %v826
  %v828 = vpop.xlane.xlu0 %827
  %v829 = vsel %vm105, %v764, 0.0
  %830 = vadd.xlane.f32.xlu0 %v829
  %v831 = vpop.xlane.xlu0 %830
  %v832 = vsel %vm105, %v766, 0.0
  %833 = vadd.xlane.f32.xlu0 %v832
  %v834 = vpop.xlane.xlu0 %833
  %v835 = vsel %vm105, %v768, 0.0
  %836 = vadd.xlane.f32.xlu0 %v835
  %v837 = vpop.xlane.xlu0 %836
  %v838 = vsel %vm105, %v770, 0.0
  %839 = vadd.xlane.f32.xlu0 %v838
  %v840 = vpop.xlane.xlu0 %839
  %v841 = vsel %vm105, %v772, 0.0
  %842 = vadd.xlane.f32.xlu0 %v841
  %v843 = vpop.xlane.xlu0 %842
  %v844 = vsel %vm105, %v774, 0.0
  %845 = vadd.xlane.f32.xlu0 %v844
  %v846 = vpop.xlane.xlu0 %845
  %v847 = vrcp.pop %v777
  %v848 = vrcp.pop %v780
  %v849 = vrcp.pop %v783
  %v850 = vrcp.pop %v786
  %v851 = vrcp.pop %v789
  %v852 = vrcp.pop %v792
  %v853 = vrcp.pop %v795
  %v854 = vrcp.pop %v798
  %v855 = vrcp.pop %v801
  %v856 = vrcp.pop %v804
  %v857 = vrcp.pop %v807
  %v858 = vrcp.pop %v810
  %v859 = vrcp.pop %v813
  %v860 = vrcp.pop %v816
  %v861 = vrcp.pop %v819
  %v862 = vrcp.pop %v822
  %v863 = vrcp.pop %v825
  %v864 = vrcp.pop %v828
  %v865 = vrcp.pop %v831
  %v866 = vrcp.pop %v834
  %v867 = vrcp.pop %v837
  %v868 = vrcp.pop %v840
  %v869 = vrcp.pop %v843
  %v870 = vrcp.pop %v846
  %v871 = vmul.f32 %v728, %v847
  %v872 = vmul.f32 %v730, %v848
  %v873 = vmul.f32 %v732, %v849
  %v874 = vmul.f32 %v734, %v850
  %v875 = vmul.f32 %v736, %v851
  %v876 = vmul.f32 %v738, %v852
  %v877 = vmul.f32 %v740, %v853
  %v878 = vmul.f32 %v742, %v854
  %v879 = vmul.f32 %v744, %v855
  %v880 = vmul.f32 %v746, %v856
  %v881 = vmul.f32 %v748, %v857
  %v882 = vmul.f32 %v750, %v858
  %v883 = vmul.f32 %v752, %v859
  %v884 = vmul.f32 %v754, %v860
  %v885 = vmul.f32 %v756, %v861
  %v886 = vmul.f32 %v758, %v862
  %v887 = vmul.f32 %v760, %v863
  %v888 = vmul.f32 %v762, %v864
  %v889 = vmul.f32 %v764, %v865
  %v890 = vmul.f32 %v766, %v866
  %v891 = vmul.f32 %v768, %v867
  %v892 = vmul.f32 %v770, %v868
  %v893 = vmul.f32 %v772, %v869
  %v894 = vmul.f32 %v774, %v870
  %v895 = vpack.c.bf16 %v872, %v871
  %v896 = vpack.c.bf16 %v874, %v873
  %v897 = vpack.c.bf16 %v876, %v875
  %v898 = vpack.c.bf16 %v878, %v877
  %v899 = vpack.c.bf16 %v880, %v879
  %v900 = vpack.c.bf16 %v882, %v881
  %v901 = vpack.c.bf16 %v884, %v883
  %v902 = vpack.c.bf16 %v886, %v885
  %v903 = vpack.c.bf16 %v888, %v887
  %v904 = vpack.c.bf16 %v890, %v889
  %v905 = vpack.c.bf16 %v892, %v891
  %v906 = vpack.c.bf16 %v894, %v893
  %v907 = vpack.c.bf16 %v466, %v464
  %v908 = vpack.c.bf16 %v471, %v469
  %v909 = vpack.c.bf16 %v476, %v474
  %v911 = vsel %vm105, %v895, 0
  %v914 = vsel %vm105, %v896, 0
  %v917 = vsel %vm105, %v897, 0
  %v920 = vsel %vm105, %v898, 0
  %v923 = vsel %vm105, %v899, 0
  %v926 = vsel %vm105, %v900, 0
  %v929 = vsel %vm105, %v901, 0
  %v932 = vsel %vm105, %v902, 0
  %v935 = vsel %vm105, %v903, 0
  %v938 = vsel %vm105, %v904, 0
  %v941 = vsel %vm105, %v905, 0
  %v944 = vsel %vm105, %v906, 0
  %946 = vmatpush.bf16.msra.mxu0 0
  %947 = vmatpush.bf16.msra.mxu0 0
  %948 = vmatpush.bf16.msra.mxu0 0
  %949 = vmatpush.bf16.msra.mxu0 0
  %950 = vmatpush.bf16.msra.mxu0 0
  %951 = vmatpush.bf16.msra.mxu0 %v909
  %952 = vmatpush.bf16.msra.mxu0 %v908
  %953 = vmatpush.bf16.msra.mxu0 %v907
  %954 = vmatmul.bf16.gmra.mxu0 %v911
  %v955 = vpop.f32.mrf.mxu0
  %v956 = vadd.f32 0.0, %v955
  %v957 = vpop.f32.mrf.mxu0
  %v958 = vadd.f32 0.0, %v957
  %959 = vmatmul.bf16.gmra.mxu0 %v914
  %v960 = vpop.f32.mrf.mxu0
  %v961 = vadd.f32 0.0, %v960
  %v962 = vpop.f32.mrf.mxu0
  %v963 = vadd.f32 0.0, %v962
  %964 = vmatmul.bf16.gmra.mxu0 %v917
  %v965 = vpop.f32.mrf.mxu0
  %v966 = vadd.f32 0.0, %v965
  %v967 = vpop.f32.mrf.mxu0
  %v968 = vadd.f32 0.0, %v967
  %969 = vmatmul.bf16.gmra.mxu0 %v920
  %v970 = vpop.f32.mrf.mxu0
  %v971 = vadd.f32 0.0, %v970
  %v972 = vpop.f32.mrf.mxu0
  %v973 = vadd.f32 0.0, %v972
  %974 = vmatmul.bf16.gmra.mxu0 %v923
  %v975 = vpop.f32.mrf.mxu0
  %v976 = vadd.f32 0.0, %v975
  %v977 = vpop.f32.mrf.mxu0
  %v978 = vadd.f32 0.0, %v977
  %979 = vmatmul.bf16.gmra.mxu0 %v926
  %v980 = vpop.f32.mrf.mxu0
  %v981 = vadd.f32 0.0, %v980
  %v982 = vpop.f32.mrf.mxu0
  %v983 = vadd.f32 0.0, %v982
  %984 = vmatmul.bf16.gmra.mxu0 %v929
  %v985 = vpop.f32.mrf.mxu0
  %v986 = vadd.f32 0.0, %v985
  %v987 = vpop.f32.mrf.mxu0
  %v988 = vadd.f32 0.0, %v987
  %989 = vmatmul.bf16.gmra.mxu0 %v932
  %v990 = vpop.f32.mrf.mxu0
  %v991 = vadd.f32 0.0, %v990
  %v992 = vpop.f32.mrf.mxu0
  %v993 = vadd.f32 0.0, %v992
  %994 = vmatmul.bf16.gmra.mxu0 %v935
  %v995 = vpop.f32.mrf.mxu0
  %v996 = vadd.f32 0.0, %v995
  %v997 = vpop.f32.mrf.mxu0
  %v998 = vadd.f32 0.0, %v997
  %999 = vmatmul.bf16.gmra.mxu0 %v938
  %v1000 = vpop.f32.mrf.mxu0
  %v1001 = vadd.f32 0.0, %v1000
  %v1002 = vpop.f32.mrf.mxu0
  %v1003 = vadd.f32 0.0, %v1002
  %1004 = vmatmul.bf16.gmra.mxu0 %v941
  %v1005 = vpop.f32.mrf.mxu0
  %v1006 = vadd.f32 0.0, %v1005
  %v1007 = vpop.f32.mrf.mxu0
  %v1008 = vadd.f32 0.0, %v1007
  %1009 = vmatmul.bf16.gmra.mxu0 %v944
  %v1010 = vpop.f32.mrf.mxu0
  %v1011 = vadd.f32 0.0, %v1010
  %v1012 = vpop.f32.mrf.mxu0
  %v1013 = vadd.f32 0.0, %v1012
  %1014 = vdwg.mxu0
  %v1015 = vmul.f32 %v956, %v139
  %v1016 = vmul.f32 %v958, %v140
  %v1017 = vmul.f32 %v961, %v141
  %v1018 = vmul.f32 %v963, %v142
  %v1019 = vmul.f32 %v966, %v143
  %v1020 = vmul.f32 %v968, %v144
  %v1021 = vmul.f32 %v971, %v145
  %v1022 = vmul.f32 %v973, %v146
  %v1023 = vmul.f32 %v976, %v147
  %v1024 = vmul.f32 %v978, %v148
  %v1025 = vmul.f32 %v981, %v149
  %v1026 = vmul.f32 %v983, %v150
  %v1027 = vmul.f32 %v986, %v151
  %v1028 = vmul.f32 %v988, %v152
  %v1029 = vmul.f32 %v991, %v153
  %v1030 = vmul.f32 %v993, %v154
  %v1031 = vmul.f32 %v996, %v155
  %v1032 = vmul.f32 %v998, %v156
  %v1033 = vmul.f32 %v1001, %v157
  %v1034 = vmul.f32 %v1003, %v158
  %v1035 = vmul.f32 %v1006, %v159
  %v1036 = vmul.f32 %v1008, %v160
  %v1037 = vmul.f32 %v1011, %v161
  %v1038 = vmul.f32 %v1013, %v162
  %v1039 = vadd.f32 %v1015, %v1021
  %v1040 = vadd.f32 %v1016, %v1022
  %v1041 = vadd.f32 %v1017, %v1023
  %v1042 = vadd.f32 %v1018, %v1024
  %v1043 = vadd.f32 %v1019, %v1025
  %v1044 = vadd.f32 %v1020, %v1026
  %v1045 = vadd.f32 %v1039, %v1027
  %v1046 = vadd.f32 %v1040, %v1028
  %v1047 = vadd.f32 %v1041, %v1029
  %v1048 = vadd.f32 %v1042, %v1030
  %v1049 = vadd.f32 %v1043, %v1031
  %v1050 = vadd.f32 %v1044, %v1032
  %v1051 = vadd.f32 %v1045, %v1033
  %v1052 = vadd.f32 %v1046, %v1034
  %v1053 = vadd.f32 %v1047, %v1035
  %v1054 = vadd.f32 %v1048, %v1036
  %v1055 = vadd.f32 %v1049, %v1037
  %v1056 = vadd.f32 %v1050, %v1038
  %v1057 = vpack.c.bf16 %v1052, %v1051
  %v1058 = vpack.c.bf16 %v1054, %v1053
  %v1059 = vpack.c.bf16 %v1056, %v1055
  %v1060 = vld [vmem:[%s8] sm:$0xf]
  %v1061 = vld [vmem:[%s8 + $0x4] sm:$0xf]
  %v1062 = vld [vmem:[%s8 + $0x8] sm:$0xf]
  %v1063 = vld [vmem:[%s8 + $0xc] sm:$0xf]
  %v1068 = vunpack.c.l.b16 %v1060
  %v1069 = vunpack.c.l.b16 %v1061
  %v1070 = vunpack.c.l.b16 %v1062
  %v1071 = vunpack.c.l.b16 %v1063
  %v1072 = vpack.c.b16 %v1069, %v1068
  %v1073 = vpack.c.b16 %v1071, %v1070
  %v1077 = vsel %vm189, %v1057, 0
  %v1080 = vsel %vm189, %v1058, 0
  %v1083 = vsel %vm189, %v1059, 0
  %1085 = vmatpush.bf16.msra.mxu0 0
  %1086 = vmatpush.bf16.msra.mxu0 0
  %1087 = vmatpush.bf16.msra.mxu0 0
  %1088 = vmatpush.bf16.msra.mxu0 0
  %1089 = vmatpush.bf16.msra.mxu0 0
  %1090 = vmatpush.bf16.msra.mxu0 0
  %1091 = vmatpush.bf16.msra.mxu0 %v1073
  %1092 = vmatpush.bf16.msra.mxu0 %v1072
  %1093 = vmatmul.bf16.gmra.mxu0 %v1077
  %v1094 = vpop.f32.mrf.mxu0
  %v1095 = vadd.f32 0.0, %v1094
  %v1096 = vpop.f32.mrf.mxu0
  %v1097 = vadd.f32 0.0, %v1096
  %1098 = vmatmul.bf16.gmra.mxu0 %v1080
  %v1099 = vpop.f32.mrf.mxu0
  %v1100 = vadd.f32 0.0, %v1099
  %v1101 = vpop.f32.mrf.mxu0
  %v1102 = vadd.f32 0.0, %v1101
  %1103 = vmatmul.bf16.gmra.mxu0 %v1083
  %v1104 = vpop.f32.mrf.mxu0
  %v1105 = vadd.f32 0.0, %v1104
  %v1106 = vpop.f32.mrf.mxu0
  %v1107 = vadd.f32 0.0, %v1106
  %1108 = vdwg.mxu0
  %v1109 = vadd.f32 %v125, %v1095
  %v1110 = vadd.f32 %v127, %v1097
  %v1111 = vadd.f32 %v130, %v1100
  %v1112 = vadd.f32 %v132, %v1102
  %v1113 = vadd.f32 %v135, %v1105
  %v1114 = vadd.f32 %v137, %v1107
  %v1115 = vperm.slane %v187, 5
  %v1116 = vadd.f32 %v1109, %v1115
  %v1117 = vadd.f32 %v1110, %v1115
  %v1118 = vadd.f32 %v1111, %v1115
  %v1119 = vadd.f32 %v1112, %v1115
  %v1120 = vadd.f32 %v1113, %v1115
  %v1121 = vadd.f32 %v1114, %v1115
  %v1122 = vsel %vm189, %v1116, 0.0
  %1123 = vadd.xlane.f32.xlu0 %v1122
  %v1124 = vpop.xlane.xlu0 %1123
  %v1125 = vsel %vm189, %v1117, 0.0
  %1126 = vadd.xlane.f32.xlu0 %v1125
  %v1127 = vpop.xlane.xlu0 %1126
  %v1128 = vsel %vm189, %v1118, 0.0
  %1129 = vadd.xlane.f32.xlu0 %v1128
  %v1130 = vpop.xlane.xlu0 %1129
  %v1131 = vsel %vm189, %v1119, 0.0
  %1132 = vadd.xlane.f32.xlu0 %v1131
  %v1133 = vpop.xlane.xlu0 %1132
  %v1134 = vsel %vm189, %v1120, 0.0
  %1135 = vadd.xlane.f32.xlu0 %v1134
  %v1136 = vpop.xlane.xlu0 %1135
  %v1137 = vsel %vm189, %v1121, 0.0
  %1138 = vadd.xlane.f32.xlu0 %v1137
  %v1139 = vpop.xlane.xlu0 %1138
  %v1140 = vmul.f32 %v1124, %v214
  %v1141 = vmul.f32 %v1127, %v214
  %v1142 = vmul.f32 %v1130, %v214
  %v1143 = vmul.f32 %v1133, %v214
  %v1144 = vmul.f32 %v1136, %v214
  %v1145 = vmul.f32 %v1139, %v214
  %v1146 = vsub.f32 %v1116, %v1140
  %v1147 = vsub.f32 %v1117, %v1141
  %v1148 = vsub.f32 %v1118, %v1142
  %v1149 = vsub.f32 %v1119, %v1143
  %v1150 = vsub.f32 %v1120, %v1144
  %v1151 = vsub.f32 %v1121, %v1145
  %v1152 = vmul.f32 %v1146, %v1146
  %v1153 = vmul.f32 %v1147, %v1147
  %v1154 = vmul.f32 %v1148, %v1148
  %v1155 = vmul.f32 %v1149, %v1149
  %v1156 = vmul.f32 %v1150, %v1150
  %v1157 = vmul.f32 %v1151, %v1151
  %v1158 = vsel %vm189, %v1152, 0.0
  %1159 = vadd.xlane.f32.xlu0 %v1158
  %v1160 = vpop.xlane.xlu0 %1159
  %v1161 = vsel %vm189, %v1153, 0.0
  %1162 = vadd.xlane.f32.xlu0 %v1161
  %v1163 = vpop.xlane.xlu0 %1162
  %v1164 = vsel %vm189, %v1154, 0.0
  %1165 = vadd.xlane.f32.xlu0 %v1164
  %v1166 = vpop.xlane.xlu0 %1165
  %v1167 = vsel %vm189, %v1155, 0.0
  %1168 = vadd.xlane.f32.xlu0 %v1167
  %v1169 = vpop.xlane.xlu0 %1168
  %v1170 = vsel %vm189, %v1156, 0.0
  %1171 = vadd.xlane.f32.xlu0 %v1170
  %v1172 = vpop.xlane.xlu0 %1171
  %v1173 = vsel %vm189, %v1157, 0.0
  %1174 = vadd.xlane.f32.xlu0 %v1173
  %v1175 = vpop.xlane.xlu0 %1174
  %v1176 = vmul.f32 %v1160, %v214
  %v1177 = vmul.f32 %v1163, %v214
  %v1178 = vmul.f32 %v1166, %v214
  %v1179 = vmul.f32 %v1169, %v214
  %v1180 = vmul.f32 %v1172, %v214
  %v1181 = vmul.f32 %v1175, %v214
  %v1182 = vadd.f32 %v1176, 1e-06
  %v1183 = vadd.f32 %v1177, 1e-06
  %v1184 = vadd.f32 %v1178, 1e-06
  %v1185 = vadd.f32 %v1179, 1e-06
  %v1186 = vadd.f32 %v1180, 1e-06
  %v1187 = vadd.f32 %v1181, 1e-06
  %v1188 = vrsqrt.pop %v1182
  %v1189 = vmul.f32 %v1188, %v1182
  %v1190 = vmul.f32 %v1189, %v1188
  %v1191 = vmul.f32 0.5, %v1190
  %v1192 = vsub.f32 1.5, %v1191
  %v1193 = vmul.f32 %v1188, %v1192
  %vm1194 = vweird.f32 %v1182
  %vm1195 = vweird.f32 %v1188
  %vm1196 = vmor %vm1194, %vm1195
  %v1197 = vsel %vm1196, %v1188, %v1193
  %v1198 = vrsqrt.pop %v1183
  %v1199 = vmul.f32 %v1198, %v1183
  %v1200 = vmul.f32 %v1199, %v1198
  %v1201 = vmul.f32 0.5, %v1200
  %v1202 = vsub.f32 1.5, %v1201
  %v1203 = vmul.f32 %v1198, %v1202
  %vm1204 = vweird.f32 %v1183
  %vm1205 = vweird.f32 %v1198
  %vm1206 = vmor %vm1204, %vm1205
  %v1207 = vsel %vm1206, %v1198, %v1203
  %v1208 = vrsqrt.pop %v1184
  %v1209 = vmul.f32 %v1208, %v1184
  %v1210 = vmul.f32 %v1209, %v1208
  %v1211 = vmul.f32 0.5, %v1210
  %v1212 = vsub.f32 1.5, %v1211
  %v1213 = vmul.f32 %v1208, %v1212
  %vm1214 = vweird.f32 %v1184
  %vm1215 = vweird.f32 %v1208
  %vm1216 = vmor %vm1214, %vm1215
  %v1217 = vsel %vm1216, %v1208, %v1213
  %v1218 = vrsqrt.pop %v1185
  %v1219 = vmul.f32 %v1218, %v1185
  %v1220 = vmul.f32 %v1219, %v1218
  %v1221 = vmul.f32 0.5, %v1220
  %v1222 = vsub.f32 1.5, %v1221
  %v1223 = vmul.f32 %v1218, %v1222
  %vm1224 = vweird.f32 %v1185
  %vm1225 = vweird.f32 %v1218
  %vm1226 = vmor %vm1224, %vm1225
  %v1227 = vsel %vm1226, %v1218, %v1223
  %v1228 = vrsqrt.pop %v1186
  %v1229 = vmul.f32 %v1228, %v1186
  %v1230 = vmul.f32 %v1229, %v1228
  %v1231 = vmul.f32 0.5, %v1230
  %v1232 = vsub.f32 1.5, %v1231
  %v1233 = vmul.f32 %v1228, %v1232
  %vm1234 = vweird.f32 %v1186
  %vm1235 = vweird.f32 %v1228
  %vm1236 = vmor %vm1234, %vm1235
  %v1237 = vsel %vm1236, %v1228, %v1233
  %v1238 = vrsqrt.pop %v1187
  %v1239 = vmul.f32 %v1238, %v1187
  %v1240 = vmul.f32 %v1239, %v1238
  %v1241 = vmul.f32 0.5, %v1240
  %v1242 = vsub.f32 1.5, %v1241
  %v1243 = vmul.f32 %v1238, %v1242
  %vm1244 = vweird.f32 %v1187
  %vm1245 = vweird.f32 %v1238
  %vm1246 = vmor %vm1244, %vm1245
  %v1247 = vsel %vm1246, %v1238, %v1243
  %v1248 = vmul.f32 %v1146, %v1197
  %v1249 = vmul.f32 %v1147, %v1207
  %v1250 = vmul.f32 %v1148, %v1217
  %v1251 = vmul.f32 %v1149, %v1227
  %v1252 = vmul.f32 %v1150, %v1237
  %v1253 = vmul.f32 %v1151, %v1247
  %v1254 = vperm.slane %v187, 6
  %v1255 = vmul.f32 %v1248, %v1254
  %v1256 = vmul.f32 %v1249, %v1254
  %v1257 = vmul.f32 %v1250, %v1254
  %v1258 = vmul.f32 %v1251, %v1254
  %v1259 = vmul.f32 %v1252, %v1254
  %v1260 = vmul.f32 %v1253, %v1254
  %v1261 = vperm.slane %v187, 7
  %v1262 = vadd.f32 %v1255, %v1261
  %v1263 = vadd.f32 %v1256, %v1261
  %v1264 = vadd.f32 %v1257, %v1261
  %v1265 = vadd.f32 %v1258, %v1261
  %v1266 = vadd.f32 %v1259, %v1261
  %v1267 = vadd.f32 %v1260, %v1261
  %v1268 = vpack.c.bf16 %v1263, %v1262
  %v1269 = vpack.c.bf16 %v1265, %v1264
  %v1270 = vpack.c.bf16 %v1267, %v1266
  %v1271 = vld [vmem:[%s9] sm:$0xf]
  %v1272 = vld [vmem:[%s9 + $0x4] sm:$0xf]
  %v1273 = vld [vmem:[%s9 + $0x8] sm:$0xf]
  %v1274 = vld [vmem:[%s9 + $0xc] sm:$0xf]
  %v1275 = vperm.slane %v188, 0
  %v1280 = vunpack.c.l.b16 %v1271
  %v1281 = vunpack.c.l.b16 %v1272
  %v1282 = vunpack.c.l.b16 %v1273
  %v1283 = vunpack.c.l.b16 %v1274
  %v1284 = vpack.c.b16 %v1281, %v1280
  %v1285 = vpack.c.b16 %v1283, %v1282
  %v1289 = vsel %vm189, %v1268, 0
  %v1292 = vsel %vm189, %v1269, 0
  %v1295 = vsel %vm189, %v1270, 0
  %1297 = vmatpush.bf16.msra.mxu0 0
  %1298 = vmatpush.bf16.msra.mxu0 0
  %1299 = vmatpush.bf16.msra.mxu0 0
  %1300 = vmatpush.bf16.msra.mxu0 0
  %1301 = vmatpush.bf16.msra.mxu0 0
  %1302 = vmatpush.bf16.msra.mxu0 0
  %1303 = vmatpush.bf16.msra.mxu0 %v1285
  %1304 = vmatpush.bf16.msra.mxu0 %v1284
  %1305 = vmatmul.bf16.gmra.mxu0 %v1289
  %v1306 = vpop.f32.mrf.mxu0
  %v1307 = vadd.f32 %v1275, %v1306
  %v1308 = vpop.f32.mrf.mxu0
  %v1309 = vadd.f32 %v1275, %v1308
  %1310 = vmatmul.bf16.gmra.mxu0 %v1292
  %v1311 = vpop.f32.mrf.mxu0
  %v1312 = vadd.f32 %v1275, %v1311
  %v1313 = vpop.f32.mrf.mxu0
  %v1314 = vadd.f32 %v1275, %v1313
  %1315 = vmatmul.bf16.gmra.mxu0 %v1295
  %v1316 = vpop.f32.mrf.mxu0
  %v1317 = vadd.f32 %v1275, %v1316
  %v1318 = vpop.f32.mrf.mxu0
  %v1319 = vadd.f32 %v1275, %v1318
  %1320 = vdwg.mxu0
  %v1321 = vmul.f32 %v1307, %v1307
  %v1322 = vmul.f32 %v1309, %v1309
  %v1323 = vmul.f32 %v1312, %v1312
  %v1324 = vmul.f32 %v1314, %v1314
  %v1325 = vmul.f32 %v1317, %v1317
  %v1326 = vmul.f32 %v1319, %v1319
  %v1327 = vmul.f32 %v1307, %v1321
  %v1328 = vmul.f32 %v1309, %v1322
  %v1329 = vmul.f32 %v1312, %v1323
  %v1330 = vmul.f32 %v1314, %v1324
  %v1331 = vmul.f32 %v1317, %v1325
  %v1332 = vmul.f32 %v1319, %v1326
  %v1333 = vmul.f32 %v1327, 0.044715
  %v1334 = vmul.f32 %v1328, 0.044715
  %v1335 = vmul.f32 %v1329, 0.044715
  %v1336 = vmul.f32 %v1330, 0.044715
  %v1337 = vmul.f32 %v1331, 0.044715
  %v1338 = vmul.f32 %v1332, 0.044715
  %v1339 = vadd.f32 %v1307, %v1333
  %v1340 = vadd.f32 %v1309, %v1334
  %v1341 = vadd.f32 %v1312, %v1335
  %v1342 = vadd.f32 %v1314, %v1336
  %v1343 = vadd.f32 %v1317, %v1337
  %v1344 = vadd.f32 %v1319, %v1338
  %v1345 = vmul.f32 %v1339, 0.7978846
  %v1346 = vmul.f32 %v1340, 0.7978846
  %v1347 = vmul.f32 %v1341, 0.7978846
  %v1348 = vmul.f32 %v1342, 0.7978846
  %v1349 = vmul.f32 %v1343, 0.7978846
  %v1350 = vmul.f32 %v1344, 0.7978846
  %v1351 = vtanh.pop %v1345
  %v1352 = vtanh.pop %v1346
  %v1353 = vtanh.pop %v1347
  %v1354 = vtanh.pop %v1348
  %v1355 = vtanh.pop %v1349
  %v1356 = vtanh.pop %v1350
  %v1357 = vadd.f32 %v1351, 1.0
  %v1358 = vadd.f32 %v1352, 1.0
  %v1359 = vadd.f32 %v1353, 1.0
  %v1360 = vadd.f32 %v1354, 1.0
  %v1361 = vadd.f32 %v1355, 1.0
  %v1362 = vadd.f32 %v1356, 1.0
  %v1363 = vmul.f32 %v1357, 0.5
  %v1364 = vmul.f32 %v1358, 0.5
  %v1365 = vmul.f32 %v1359, 0.5
  %v1366 = vmul.f32 %v1360, 0.5
  %v1367 = vmul.f32 %v1361, 0.5
  %v1368 = vmul.f32 %v1362, 0.5
  %v1369 = vmul.f32 %v1307, %v1363
  %v1370 = vmul.f32 %v1309, %v1364
  %v1371 = vmul.f32 %v1312, %v1365
  %v1372 = vmul.f32 %v1314, %v1366
  %v1373 = vmul.f32 %v1317, %v1367
  %v1374 = vmul.f32 %v1319, %v1368
  %v1375 = vpack.c.bf16 %v1370, %v1369
  %v1376 = vpack.c.bf16 %v1372, %v1371
  %v1377 = vpack.c.bf16 %v1374, %v1373
  %v1378 = vld [vmem:[%s10] sm:$0xf]
  %v1379 = vld [vmem:[%s10 + $0x4] sm:$0xf]
  %v1380 = vld [vmem:[%s10 + $0x8] sm:$0xf]
  %v1381 = vld [vmem:[%s10 + $0xc] sm:$0xf]
  %v1382 = vld [vmem:[%s10 + $0x10] sm:$0xf]
  %v1383 = vld [vmem:[%s10 + $0x14] sm:$0xf]
  %v1384 = vld [vmem:[%s10 + $0x18] sm:$0xf]
  %v1385 = vld [vmem:[%s10 + $0x1c] sm:$0xf]
  %v1394 = vunpack.c.l.b16 %v1378
  %v1395 = vunpack.c.l.b16 %v1379
  %v1396 = vunpack.c.l.b16 %v1380
  %v1397 = vunpack.c.l.b16 %v1381
  %v1398 = vunpack.c.l.b16 %v1382
  %v1399 = vunpack.c.l.b16 %v1383
  %v1400 = vunpack.c.l.b16 %v1384
  %v1401 = vunpack.c.l.b16 %v1385
  %v1402 = vpack.c.b16 %v1395, %v1394
  %v1403 = vpack.c.b16 %v1397, %v1396
  %v1404 = vpack.c.b16 %v1399, %v1398
  %v1405 = vpack.c.b16 %v1401, %v1400
  %vm1410 = vcmask 523264
  %v1412 = vsel %vm1410, %v1375, 0
  %v1415 = vsel %vm1410, %v1376, 0
  %v1418 = vsel %vm1410, %v1377, 0
  %1420 = vmatpush.bf16.msra.mxu0 0
  %1421 = vmatpush.bf16.msra.mxu0 0
  %1422 = vmatpush.bf16.msra.mxu0 0
  %1423 = vmatpush.bf16.msra.mxu0 0
  %1424 = vmatpush.bf16.msra.mxu0 %v1405
  %1425 = vmatpush.bf16.msra.mxu0 %v1404
  %1426 = vmatpush.bf16.msra.mxu0 %v1403
  %1427 = vmatpush.bf16.msra.mxu0 %v1402
  %1428 = vmatmul.bf16.gmra.mxu0 %v1412
  %v1429 = vpop.f32.mrf.mxu0
  %v1430 = vadd.f32 0.0, %v1429
  %v1431 = vpop.f32.mrf.mxu0
  %v1432 = vadd.f32 0.0, %v1431
  %1433 = vmatmul.bf16.gmra.mxu0 %v1415
  %v1434 = vpop.f32.mrf.mxu0
  %v1435 = vadd.f32 0.0, %v1434
  %v1436 = vpop.f32.mrf.mxu0
  %v1437 = vadd.f32 0.0, %v1436
  %1438 = vmatmul.bf16.gmra.mxu0 %v1418
  %v1439 = vpop.f32.mrf.mxu0
  %v1440 = vadd.f32 0.0, %v1439
  %v1441 = vpop.f32.mrf.mxu0
  %v1442 = vadd.f32 0.0, %v1441
  %1443 = vdwg.mxu0
  %v1444 = vadd.f32 %v1116, %v1430
  %v1445 = vadd.f32 %v1117, %v1432
  %v1446 = vadd.f32 %v1118, %v1435
  %v1447 = vadd.f32 %v1119, %v1437
  %v1448 = vadd.f32 %v1120, %v1440
  %v1449 = vadd.f32 %v1121, %v1442
  %v1450 = vperm.slane %v188, 1
  %v1451 = vadd.f32 %v1444, %v1450
  %v1452 = vadd.f32 %v1445, %v1450
  %v1453 = vadd.f32 %v1446, %v1450
  %v1454 = vadd.f32 %v1447, %v1450
  %v1455 = vadd.f32 %v1448, %v1450
  %v1456 = vadd.f32 %v1449, %v1450
  %s1457 = scalar_lea.vmem %s11, 16
  %v1458 = vld [vmem:[%s1457] sm:$0xff]
  %v1459 = vld [vmem:[%s1457 + $0x8] sm:$0x3]
  %v1460 = vsel %vm189, %v1451, 0.0
  %1461 = vadd.xlane.f32.xlu0 %v1460
  %v1462 = vpop.xlane.xlu0 %1461
  %v1463 = vsel %vm189, %v1452, 0.0
  %1464 = vadd.xlane.f32.xlu0 %v1463
  %v1465 = vpop.xlane.xlu0 %1464
  %v1466 = vsel %vm189, %v1453, 0.0
  %1467 = vadd.xlane.f32.xlu0 %v1466
  %v1468 = vpop.xlane.xlu0 %1467
  %v1469 = vsel %vm189, %v1454, 0.0
  %1470 = vadd.xlane.f32.xlu0 %v1469
  %v1471 = vpop.xlane.xlu0 %1470
  %v1472 = vsel %vm189, %v1455, 0.0
  %1473 = vadd.xlane.f32.xlu0 %v1472
  %v1474 = vpop.xlane.xlu0 %1473
  %v1475 = vsel %vm189, %v1456, 0.0
  %1476 = vadd.xlane.f32.xlu0 %v1475
  %v1477 = vpop.xlane.xlu0 %1476
  %v1478 = vmul.f32 %v1462, %v214
  %v1479 = vmul.f32 %v1465, %v214
  %v1480 = vmul.f32 %v1468, %v214
  %v1481 = vmul.f32 %v1471, %v214
  %v1482 = vmul.f32 %v1474, %v214
  %v1483 = vmul.f32 %v1477, %v214
  %v1484 = vsub.f32 %v1451, %v1478
  %v1485 = vsub.f32 %v1452, %v1479
  %v1486 = vsub.f32 %v1453, %v1480
  %v1487 = vsub.f32 %v1454, %v1481
  %v1488 = vsub.f32 %v1455, %v1482
  %v1489 = vsub.f32 %v1456, %v1483
  %v1490 = vmul.f32 %v1484, %v1484
  %v1491 = vmul.f32 %v1485, %v1485
  %v1492 = vmul.f32 %v1486, %v1486
  %v1493 = vmul.f32 %v1487, %v1487
  %v1494 = vmul.f32 %v1488, %v1488
  %v1495 = vmul.f32 %v1489, %v1489
  %v1496 = vsel %vm189, %v1490, 0.0
  %1497 = vadd.xlane.f32.xlu0 %v1496
  %v1498 = vpop.xlane.xlu0 %1497
  %v1499 = vsel %vm189, %v1491, 0.0
  %1500 = vadd.xlane.f32.xlu0 %v1499
  %v1501 = vpop.xlane.xlu0 %1500
  %v1502 = vsel %vm189, %v1492, 0.0
  %1503 = vadd.xlane.f32.xlu0 %v1502
  %v1504 = vpop.xlane.xlu0 %1503
  %v1505 = vsel %vm189, %v1493, 0.0
  %1506 = vadd.xlane.f32.xlu0 %v1505
  %v1507 = vpop.xlane.xlu0 %1506
  %v1508 = vsel %vm189, %v1494, 0.0
  %1509 = vadd.xlane.f32.xlu0 %v1508
  %v1510 = vpop.xlane.xlu0 %1509
  %v1511 = vsel %vm189, %v1495, 0.0
  %1512 = vadd.xlane.f32.xlu0 %v1511
  %v1513 = vpop.xlane.xlu0 %1512
  %v1514 = vmul.f32 %v1498, %v214
  %v1515 = vmul.f32 %v1501, %v214
  %v1516 = vmul.f32 %v1504, %v214
  %v1517 = vmul.f32 %v1507, %v214
  %v1518 = vmul.f32 %v1510, %v214
  %v1519 = vmul.f32 %v1513, %v214
  %v1520 = vadd.f32 %v1514, 1e-06
  %v1521 = vadd.f32 %v1515, 1e-06
  %v1522 = vadd.f32 %v1516, 1e-06
  %v1523 = vadd.f32 %v1517, 1e-06
  %v1524 = vadd.f32 %v1518, 1e-06
  %v1525 = vadd.f32 %v1519, 1e-06
  %v1526 = vrsqrt.pop %v1520
  %v1527 = vmul.f32 %v1526, %v1520
  %v1528 = vmul.f32 %v1527, %v1526
  %v1529 = vmul.f32 0.5, %v1528
  %v1530 = vsub.f32 1.5, %v1529
  %v1531 = vmul.f32 %v1526, %v1530
  %vm1532 = vweird.f32 %v1520
  %vm1533 = vweird.f32 %v1526
  %vm1534 = vmor %vm1532, %vm1533
  %v1535 = vsel %vm1534, %v1526, %v1531
  %v1536 = vrsqrt.pop %v1521
  %v1537 = vmul.f32 %v1536, %v1521
  %v1538 = vmul.f32 %v1537, %v1536
  %v1539 = vmul.f32 0.5, %v1538
  %v1540 = vsub.f32 1.5, %v1539
  %v1541 = vmul.f32 %v1536, %v1540
  %vm1542 = vweird.f32 %v1521
  %vm1543 = vweird.f32 %v1536
  %vm1544 = vmor %vm1542, %vm1543
  %v1545 = vsel %vm1544, %v1536, %v1541
  %v1546 = vrsqrt.pop %v1522
  %v1547 = vmul.f32 %v1546, %v1522
  %v1548 = vmul.f32 %v1547, %v1546
  %v1549 = vmul.f32 0.5, %v1548
  %v1550 = vsub.f32 1.5, %v1549
  %v1551 = vmul.f32 %v1546, %v1550
  %vm1552 = vweird.f32 %v1522
  %vm1553 = vweird.f32 %v1546
  %vm1554 = vmor %vm1552, %vm1553
  %v1555 = vsel %vm1554, %v1546, %v1551
  %v1556 = vrsqrt.pop %v1523
  %v1557 = vmul.f32 %v1556, %v1523
  %v1558 = vmul.f32 %v1557, %v1556
  %v1559 = vmul.f32 0.5, %v1558
  %v1560 = vsub.f32 1.5, %v1559
  %v1561 = vmul.f32 %v1556, %v1560
  %vm1562 = vweird.f32 %v1523
  %vm1563 = vweird.f32 %v1556
  %vm1564 = vmor %vm1562, %vm1563
  %v1565 = vsel %vm1564, %v1556, %v1561
  %v1566 = vrsqrt.pop %v1524
  %v1567 = vmul.f32 %v1566, %v1524
  %v1568 = vmul.f32 %v1567, %v1566
  %v1569 = vmul.f32 0.5, %v1568
  %v1570 = vsub.f32 1.5, %v1569
  %v1571 = vmul.f32 %v1566, %v1570
  %vm1572 = vweird.f32 %v1524
  %vm1573 = vweird.f32 %v1566
  %vm1574 = vmor %vm1572, %vm1573
  %v1575 = vsel %vm1574, %v1566, %v1571
  %v1576 = vrsqrt.pop %v1525
  %v1577 = vmul.f32 %v1576, %v1525
  %v1578 = vmul.f32 %v1577, %v1576
  %v1579 = vmul.f32 0.5, %v1578
  %v1580 = vsub.f32 1.5, %v1579
  %v1581 = vmul.f32 %v1576, %v1580
  %vm1582 = vweird.f32 %v1525
  %vm1583 = vweird.f32 %v1576
  %vm1584 = vmor %vm1582, %vm1583
  %v1585 = vsel %vm1584, %v1576, %v1581
  %v1586 = vmul.f32 %v1484, %v1535
  %v1587 = vmul.f32 %v1485, %v1545
  %v1588 = vmul.f32 %v1486, %v1555
  %v1589 = vmul.f32 %v1487, %v1565
  %v1590 = vmul.f32 %v1488, %v1575
  %v1591 = vmul.f32 %v1489, %v1585
  %v1592 = vperm.slane %v1458, 0
  %v1593 = vmul.f32 %v1586, %v1592
  %v1594 = vmul.f32 %v1587, %v1592
  %v1595 = vmul.f32 %v1588, %v1592
  %v1596 = vmul.f32 %v1589, %v1592
  %v1597 = vmul.f32 %v1590, %v1592
  %v1598 = vmul.f32 %v1591, %v1592
  %v1599 = vperm.slane %v1458, 1
  %v1600 = vadd.f32 %v1593, %v1599
  %v1601 = vadd.f32 %v1594, %v1599
  %v1602 = vadd.f32 %v1595, %v1599
  %v1603 = vadd.f32 %v1596, %v1599
  %v1604 = vadd.f32 %v1597, %v1599
  %v1605 = vadd.f32 %v1598, %v1599
  %v1606 = vpack.c.bf16 %v1601, %v1600
  %v1607 = vpack.c.bf16 %v1603, %v1602
  %v1608 = vpack.c.bf16 %v1605, %v1604
  %s1609 = scalar_lea.vmem %s5, 16
  %v1610 = vld [vmem:[%s1609] sm:$0xf]
  %v1611 = vld [vmem:[%s1609 + $0x4] sm:$0xf]
  %v1612 = vld [vmem:[%s1609 + $0x8] sm:$0xf]
  %v1613 = vld [vmem:[%s1609 + $0xc] sm:$0xf]
  %v1614 = vperm.slane %v1458, 2
  %v1619 = vunpack.c.l.b16 %v1610
  %v1620 = vunpack.c.l.b16 %v1611
  %v1621 = vunpack.c.l.b16 %v1612
  %v1622 = vunpack.c.l.b16 %v1613
  %v1623 = vpack.c.b16 %v1620, %v1619
  %v1624 = vpack.c.b16 %v1622, %v1621
  %v1628 = vsel %vm189, %v1606, 0
  %v1631 = vsel %vm189, %v1607, 0
  %v1634 = vsel %vm189, %v1608, 0
  %1636 = vmatpush.bf16.msra.mxu0 0
  %1637 = vmatpush.bf16.msra.mxu0 0
  %1638 = vmatpush.bf16.msra.mxu0 0
  %1639 = vmatpush.bf16.msra.mxu0 0
  %1640 = vmatpush.bf16.msra.mxu0 0
  %1641 = vmatpush.bf16.msra.mxu0 0
  %1642 = vmatpush.bf16.msra.mxu0 %v1624
  %1643 = vmatpush.bf16.msra.mxu0 %v1623
  %1644 = vmatmul.bf16.gmra.mxu0 %v1628
  %v1645 = vpop.f32.mrf.mxu0
  %v1646 = vadd.f32 %v1614, %v1645
  %v1647 = vpop.f32.mrf.mxu0
  %v1648 = vadd.f32 %v1614, %v1647
  %1649 = vmatmul.bf16.gmra.mxu0 %v1631
  %v1650 = vpop.f32.mrf.mxu0
  %v1651 = vadd.f32 %v1614, %v1650
  %v1652 = vpop.f32.mrf.mxu0
  %v1653 = vadd.f32 %v1614, %v1652
  %1654 = vmatmul.bf16.gmra.mxu0 %v1634
  %v1655 = vpop.f32.mrf.mxu0
  %v1656 = vadd.f32 %v1614, %v1655
  %v1657 = vpop.f32.mrf.mxu0
  %v1658 = vadd.f32 %v1614, %v1657
  %1659 = vdwg.mxu0
  %s1660 = scalar_lea.vmem %s6, 16
  %v1661 = vld [vmem:[%s1660] sm:$0xf]
  %v1662 = vld [vmem:[%s1660 + $0x4] sm:$0xf]
  %v1663 = vld [vmem:[%s1660 + $0x8] sm:$0xf]
  %v1664 = vld [vmem:[%s1660 + $0xc] sm:$0xf]
  %v1665 = vperm.slane %v1458, 3
  %v1670 = vunpack.c.l.b16 %v1661
  %v1671 = vunpack.c.l.b16 %v1662
  %v1672 = vunpack.c.l.b16 %v1663
  %v1673 = vunpack.c.l.b16 %v1664
  %v1674 = vpack.c.b16 %v1671, %v1670
  %v1675 = vpack.c.b16 %v1673, %v1672
  %1678 = vmatpush.bf16.msra.mxu0 0
  %1679 = vmatpush.bf16.msra.mxu0 0
  %1680 = vmatpush.bf16.msra.mxu0 0
  %1681 = vmatpush.bf16.msra.mxu0 0
  %1682 = vmatpush.bf16.msra.mxu0 0
  %1683 = vmatpush.bf16.msra.mxu0 0
  %1684 = vmatpush.bf16.msra.mxu0 %v1675
  %1685 = vmatpush.bf16.msra.mxu0 %v1674
  %1686 = vmatmul.bf16.gmra.mxu0 %v1628
  %v1687 = vpop.f32.mrf.mxu0
  %v1688 = vadd.f32 %v1665, %v1687
  %v1689 = vpop.f32.mrf.mxu0
  %v1690 = vadd.f32 %v1665, %v1689
  %1691 = vmatmul.bf16.gmra.mxu0 %v1631
  %v1692 = vpop.f32.mrf.mxu0
  %v1693 = vadd.f32 %v1665, %v1692
  %v1694 = vpop.f32.mrf.mxu0
  %v1695 = vadd.f32 %v1665, %v1694
  %1696 = vmatmul.bf16.gmra.mxu0 %v1634
  %v1697 = vpop.f32.mrf.mxu0
  %v1698 = vadd.f32 %v1665, %v1697
  %v1699 = vpop.f32.mrf.mxu0
  %v1700 = vadd.f32 %v1665, %v1699
  %1701 = vdwg.mxu0
  %s1702 = scalar_lea.vmem %s7, 16
  %v1703 = vld [vmem:[%s1702] sm:$0xf]
  %v1704 = vld [vmem:[%s1702 + $0x4] sm:$0xf]
  %v1705 = vld [vmem:[%s1702 + $0x8] sm:$0xf]
  %v1706 = vld [vmem:[%s1702 + $0xc] sm:$0xf]
  %v1707 = vperm.slane %v1458, 4
  %v1712 = vunpack.c.l.b16 %v1703
  %v1713 = vunpack.c.l.b16 %v1704
  %v1714 = vunpack.c.l.b16 %v1705
  %v1715 = vunpack.c.l.b16 %v1706
  %v1716 = vpack.c.b16 %v1713, %v1712
  %v1717 = vpack.c.b16 %v1715, %v1714
  %1720 = vmatpush.bf16.msra.mxu0 0
  %1721 = vmatpush.bf16.msra.mxu0 0
  %1722 = vmatpush.bf16.msra.mxu0 0
  %1723 = vmatpush.bf16.msra.mxu0 0
  %1724 = vmatpush.bf16.msra.mxu0 0
  %1725 = vmatpush.bf16.msra.mxu0 0
  %1726 = vmatpush.bf16.msra.mxu0 %v1717
  %1727 = vmatpush.bf16.msra.mxu0 %v1716
  %1728 = vmatmul.bf16.gmra.mxu0 %v1628
  %v1729 = vpop.f32.mrf.mxu0
  %v1730 = vadd.f32 %v1707, %v1729
  %v1731 = vpop.f32.mrf.mxu0
  %v1732 = vadd.f32 %v1707, %v1731
  %1733 = vmatmul.bf16.gmra.mxu0 %v1631
  %v1734 = vpop.f32.mrf.mxu0
  %v1735 = vadd.f32 %v1707, %v1734
  %v1736 = vpop.f32.mrf.mxu0
  %v1737 = vadd.f32 %v1707, %v1736
  %1738 = vmatmul.bf16.gmra.mxu0 %v1634
  %v1739 = vpop.f32.mrf.mxu0
  %v1740 = vadd.f32 %v1707, %v1739
  %v1741 = vpop.f32.mrf.mxu0
  %v1742 = vadd.f32 %v1707, %v1741
  %1743 = vdwg.mxu0
  %v1744 = vmul.f32 %v1646, %v139
  %v1745 = vmul.f32 %v1648, %v140
  %v1746 = vmul.f32 %v1651, %v141
  %v1747 = vmul.f32 %v1653, %v142
  %v1748 = vmul.f32 %v1656, %v143
  %v1749 = vmul.f32 %v1658, %v144
  %v1750 = vmul.f32 %v1646, %v145
  %v1751 = vmul.f32 %v1648, %v146
  %v1752 = vmul.f32 %v1651, %v147
  %v1753 = vmul.f32 %v1653, %v148
  %v1754 = vmul.f32 %v1656, %v149
  %v1755 = vmul.f32 %v1658, %v150
  %v1756 = vmul.f32 %v1646, %v151
  %v1757 = vmul.f32 %v1648, %v152
  %v1758 = vmul.f32 %v1651, %v153
  %v1759 = vmul.f32 %v1653, %v154
  %v1760 = vmul.f32 %v1656, %v155
  %v1761 = vmul.f32 %v1658, %v156
  %v1762 = vmul.f32 %v1646, %v157
  %v1763 = vmul.f32 %v1648, %v158
  %v1764 = vmul.f32 %v1651, %v159
  %v1765 = vmul.f32 %v1653, %v160
  %v1766 = vmul.f32 %v1656, %v161
  %v1767 = vmul.f32 %v1658, %v162
  %v1768 = vpack.c.bf16 %v1745, %v1744
  %v1769 = vpack.c.bf16 %v1747, %v1746
  %v1770 = vpack.c.bf16 %v1749, %v1748
  %v1771 = vpack.c.bf16 %v1751, %v1750
  %v1772 = vpack.c.bf16 %v1753, %v1752
  %v1773 = vpack.c.bf16 %v1755, %v1754
  %v1774 = vpack.c.bf16 %v1757, %v1756
  %v1775 = vpack.c.bf16 %v1759, %v1758
  %v1776 = vpack.c.bf16 %v1761, %v1760
  %v1777 = vpack.c.bf16 %v1763, %v1762
  %v1778 = vpack.c.bf16 %v1765, %v1764
  %v1779 = vpack.c.bf16 %v1767, %v1766
  %v1780 = vpack.c.bf16 %v1690, %v1688
  %v1781 = vpack.c.bf16 %v1695, %v1693
  %v1782 = vpack.c.bf16 %v1700, %v1698
  %v1784 = vsel %vm189, %v1768, 0
  %v1787 = vsel %vm189, %v1769, 0
  %v1790 = vsel %vm189, %v1770, 0
  %v1793 = vsel %vm189, %v1771, 0
  %v1796 = vsel %vm189, %v1772, 0
  %v1799 = vsel %vm189, %v1773, 0
  %v1802 = vsel %vm189, %v1774, 0
  %v1805 = vsel %vm189, %v1775, 0
  %v1808 = vsel %vm189, %v1776, 0
  %v1811 = vsel %vm189, %v1777, 0
  %v1814 = vsel %vm189, %v1778, 0
  %v1817 = vsel %vm189, %v1779, 0
  %v1820 = vsel %vm189, %v1780, 0
  %v1823 = vsel %vm189, %v1781, 0
  %v1826 = vsel %vm189, %v1782, 0
  %1828 = vmatpush.bf16.xpose.msra.mxu0 0
  %1829 = vmatpush.bf16.xpose.msra.mxu0 0
  %1830 = vmatpush.bf16.xpose.msra.mxu0 0
  %1831 = vmatpush.bf16.xpose.msra.mxu0 0
  %1832 = vmatpush.bf16.xpose.msra.mxu0 0
  %1833 = vmatpush.bf16.xpose.msra.mxu0 %v1826
  %1834 = vmatpush.bf16.xpose.msra.mxu0 %v1823
  %1835 = vmatpush.bf16.xpose.msra.mxu0 %v1820
  %1836 = vmatmul.bf16.gmra.mxu0 %v1784
  %v1837 = vpop.f32.mrf.mxu0
  %v1838 = vadd.f32 %v163, %v1837
  %v1839 = vpop.f32.mrf.mxu0
  %v1840 = vadd.f32 %v164, %v1839
  %1841 = vmatmul.bf16.gmra.mxu0 %v1787
  %v1842 = vpop.f32.mrf.mxu0
  %v1843 = vadd.f32 %v165, %v1842
  %v1844 = vpop.f32.mrf.mxu0
  %v1845 = vadd.f32 %v166, %v1844
  %1846 = vmatmul.bf16.gmra.mxu0 %v1790
  %v1847 = vpop.f32.mrf.mxu0
  %v1848 = vadd.f32 %v167, %v1847
  %v1849 = vpop.f32.mrf.mxu0
  %v1850 = vadd.f32 %v168, %v1849
  %1851 = vmatmul.bf16.gmra.mxu0 %v1793
  %v1852 = vpop.f32.mrf.mxu0
  %v1853 = vadd.f32 %v169, %v1852
  %v1854 = vpop.f32.mrf.mxu0
  %v1855 = vadd.f32 %v170, %v1854
  %1856 = vmatmul.bf16.gmra.mxu0 %v1796
  %v1857 = vpop.f32.mrf.mxu0
  %v1858 = vadd.f32 %v171, %v1857
  %v1859 = vpop.f32.mrf.mxu0
  %v1860 = vadd.f32 %v172, %v1859
  %1861 = vmatmul.bf16.gmra.mxu0 %v1799
  %v1862 = vpop.f32.mrf.mxu0
  %v1863 = vadd.f32 %v173, %v1862
  %v1864 = vpop.f32.mrf.mxu0
  %v1865 = vadd.f32 %v174, %v1864
  %1866 = vmatmul.bf16.gmra.mxu0 %v1802
  %v1867 = vpop.f32.mrf.mxu0
  %v1868 = vadd.f32 %v175, %v1867
  %v1869 = vpop.f32.mrf.mxu0
  %v1870 = vadd.f32 %v176, %v1869
  %1871 = vmatmul.bf16.gmra.mxu0 %v1805
  %v1872 = vpop.f32.mrf.mxu0
  %v1873 = vadd.f32 %v177, %v1872
  %v1874 = vpop.f32.mrf.mxu0
  %v1875 = vadd.f32 %v178, %v1874
  %1876 = vmatmul.bf16.gmra.mxu0 %v1808
  %v1877 = vpop.f32.mrf.mxu0
  %v1878 = vadd.f32 %v179, %v1877
  %v1879 = vpop.f32.mrf.mxu0
  %v1880 = vadd.f32 %v180, %v1879
  %1881 = vmatmul.bf16.gmra.mxu0 %v1811
  %v1882 = vpop.f32.mrf.mxu0
  %v1883 = vadd.f32 %v181, %v1882
  %v1884 = vpop.f32.mrf.mxu0
  %v1885 = vadd.f32 %v182, %v1884
  %1886 = vmatmul.bf16.gmra.mxu0 %v1814
  %v1887 = vpop.f32.mrf.mxu0
  %v1888 = vadd.f32 %v183, %v1887
  %v1889 = vpop.f32.mrf.mxu0
  %v1890 = vadd.f32 %v184, %v1889
  %1891 = vmatmul.bf16.gmra.mxu0 %v1817
  %v1892 = vpop.f32.mrf.mxu0
  %v1893 = vadd.f32 %v185, %v1892
  %v1894 = vpop.f32.mrf.mxu0
  %v1895 = vadd.f32 %v186, %v1894
  %1896 = vdwg.mxu0
  %v1897 = vsel %vm105, %v1838, -inf
  %1898 = vmax.xlane.f32.xlu0 %v1897
  %v1899 = vpop.xlane.xlu0 %1898
  %v1900 = vsel %vm105, %v1840, -inf
  %1901 = vmax.xlane.f32.xlu0 %v1900
  %v1902 = vpop.xlane.xlu0 %1901
  %v1903 = vsel %vm105, %v1843, -inf
  %1904 = vmax.xlane.f32.xlu0 %v1903
  %v1905 = vpop.xlane.xlu0 %1904
  %v1906 = vsel %vm105, %v1845, -inf
  %1907 = vmax.xlane.f32.xlu0 %v1906
  %v1908 = vpop.xlane.xlu0 %1907
  %v1909 = vsel %vm105, %v1848, -inf
  %1910 = vmax.xlane.f32.xlu0 %v1909
  %v1911 = vpop.xlane.xlu0 %1910
  %v1912 = vsel %vm105, %v1850, -inf
  %1913 = vmax.xlane.f32.xlu0 %v1912
  %v1914 = vpop.xlane.xlu0 %1913
  %v1915 = vsel %vm105, %v1853, -inf
  %1916 = vmax.xlane.f32.xlu0 %v1915
  %v1917 = vpop.xlane.xlu0 %1916
  %v1918 = vsel %vm105, %v1855, -inf
  %1919 = vmax.xlane.f32.xlu0 %v1918
  %v1920 = vpop.xlane.xlu0 %1919
  %v1921 = vsel %vm105, %v1858, -inf
  %1922 = vmax.xlane.f32.xlu0 %v1921
  %v1923 = vpop.xlane.xlu0 %1922
  %v1924 = vsel %vm105, %v1860, -inf
  %1925 = vmax.xlane.f32.xlu0 %v1924
  %v1926 = vpop.xlane.xlu0 %1925
  %v1927 = vsel %vm105, %v1863, -inf
  %1928 = vmax.xlane.f32.xlu0 %v1927
  %v1929 = vpop.xlane.xlu0 %1928
  %v1930 = vsel %vm105, %v1865, -inf
  %1931 = vmax.xlane.f32.xlu0 %v1930
  %v1932 = vpop.xlane.xlu0 %1931
  %v1933 = vsel %vm105, %v1868, -inf
  %1934 = vmax.xlane.f32.xlu0 %v1933
  %v1935 = vpop.xlane.xlu0 %1934
  %v1936 = vsel %vm105, %v1870, -inf
  %1937 = vmax.xlane.f32.xlu0 %v1936
  %v1938 = vpop.xlane.xlu0 %1937
  %v1939 = vsel %vm105, %v1873, -inf
  %1940 = vmax.xlane.f32.xlu0 %v1939
  %v1941 = vpop.xlane.xlu0 %1940
  %v1942 = vsel %vm105, %v1875, -inf
  %1943 = vmax.xlane.f32.xlu0 %v1942
  %v1944 = vpop.xlane.xlu0 %1943
  %v1945 = vsel %vm105, %v1878, -inf
  %1946 = vmax.xlane.f32.xlu0 %v1945
  %v1947 = vpop.xlane.xlu0 %1946
  %v1948 = vsel %vm105, %v1880, -inf
  %1949 = vmax.xlane.f32.xlu0 %v1948
  %v1950 = vpop.xlane.xlu0 %1949
  %v1951 = vsel %vm105, %v1883, -inf
  %1952 = vmax.xlane.f32.xlu0 %v1951
  %v1953 = vpop.xlane.xlu0 %1952
  %v1954 = vsel %vm105, %v1885, -inf
  %1955 = vmax.xlane.f32.xlu0 %v1954
  %v1956 = vpop.xlane.xlu0 %1955
  %v1957 = vsel %vm105, %v1888, -inf
  %1958 = vmax.xlane.f32.xlu0 %v1957
  %v1959 = vpop.xlane.xlu0 %1958
  %v1960 = vsel %vm105, %v1890, -inf
  %1961 = vmax.xlane.f32.xlu0 %v1960
  %v1962 = vpop.xlane.xlu0 %1961
  %v1963 = vsel %vm105, %v1893, -inf
  %1964 = vmax.xlane.f32.xlu0 %v1963
  %v1965 = vpop.xlane.xlu0 %1964
  %v1966 = vsel %vm105, %v1895, -inf
  %1967 = vmax.xlane.f32.xlu0 %v1966
  %v1968 = vpop.xlane.xlu0 %1967
  %v1969 = vsub.f32 %v1838, %v1899
  %v1970 = vsub.f32 %v1840, %v1902
  %v1971 = vsub.f32 %v1843, %v1905
  %v1972 = vsub.f32 %v1845, %v1908
  %v1973 = vsub.f32 %v1848, %v1911
  %v1974 = vsub.f32 %v1850, %v1914
  %v1975 = vsub.f32 %v1853, %v1917
  %v1976 = vsub.f32 %v1855, %v1920
  %v1977 = vsub.f32 %v1858, %v1923
  %v1978 = vsub.f32 %v1860, %v1926
  %v1979 = vsub.f32 %v1863, %v1929
  %v1980 = vsub.f32 %v1865, %v1932
  %v1981 = vsub.f32 %v1868, %v1935
  %v1982 = vsub.f32 %v1870, %v1938
  %v1983 = vsub.f32 %v1873, %v1941
  %v1984 = vsub.f32 %v1875, %v1944
  %v1985 = vsub.f32 %v1878, %v1947
  %v1986 = vsub.f32 %v1880, %v1950
  %v1987 = vsub.f32 %v1883, %v1953
  %v1988 = vsub.f32 %v1885, %v1956
  %v1989 = vsub.f32 %v1888, %v1959
  %v1990 = vsub.f32 %v1890, %v1962
  %v1991 = vsub.f32 %v1893, %v1965
  %v1992 = vsub.f32 %v1895, %v1968
  %v1993 = vmul.f32 %v1969, 1.442695
  %v1994 = vpow.pop %v1993
  %v1995 = vmul.f32 %v1970, 1.442695
  %v1996 = vpow.pop %v1995
  %v1997 = vmul.f32 %v1971, 1.442695
  %v1998 = vpow.pop %v1997
  %v1999 = vmul.f32 %v1972, 1.442695
  %v2000 = vpow.pop %v1999
  %v2001 = vmul.f32 %v1973, 1.442695
  %v2002 = vpow.pop %v2001
  %v2003 = vmul.f32 %v1974, 1.442695
  %v2004 = vpow.pop %v2003
  %v2005 = vmul.f32 %v1975, 1.442695
  %v2006 = vpow.pop %v2005
  %v2007 = vmul.f32 %v1976, 1.442695
  %v2008 = vpow.pop %v2007
  %v2009 = vmul.f32 %v1977, 1.442695
  %v2010 = vpow.pop %v2009
  %v2011 = vmul.f32 %v1978, 1.442695
  %v2012 = vpow.pop %v2011
  %v2013 = vmul.f32 %v1979, 1.442695
  %v2014 = vpow.pop %v2013
  %v2015 = vmul.f32 %v1980, 1.442695
  %v2016 = vpow.pop %v2015
  %v2017 = vmul.f32 %v1981, 1.442695
  %v2018 = vpow.pop %v2017
  %v2019 = vmul.f32 %v1982, 1.442695
  %v2020 = vpow.pop %v2019
  %v2021 = vmul.f32 %v1983, 1.442695
  %v2022 = vpow.pop %v2021
  %v2023 = vmul.f32 %v1984, 1.442695
  %v2024 = vpow.pop %v2023
  %v2025 = vmul.f32 %v1985, 1.442695
  %v2026 = vpow.pop %v2025
  %v2027 = vmul.f32 %v1986, 1.442695
  %v2028 = vpow.pop %v2027
  %v2029 = vmul.f32 %v1987, 1.442695
  %v2030 = vpow.pop %v2029
  %v2031 = vmul.f32 %v1988, 1.442695
  %v2032 = vpow.pop %v2031
  %v2033 = vmul.f32 %v1989, 1.442695
  %v2034 = vpow.pop %v2033
  %v2035 = vmul.f32 %v1990, 1.442695
  %v2036 = vpow.pop %v2035
  %v2037 = vmul.f32 %v1991, 1.442695
  %v2038 = vpow.pop %v2037
  %v2039 = vmul.f32 %v1992, 1.442695
  %v2040 = vpow.pop %v2039
  %v2041 = vsel %vm105, %v1994, 0.0
  %2042 = vadd.xlane.f32.xlu0 %v2041
  %v2043 = vpop.xlane.xlu0 %2042
  %v2044 = vsel %vm105, %v1996, 0.0
  %2045 = vadd.xlane.f32.xlu0 %v2044
  %v2046 = vpop.xlane.xlu0 %2045
  %v2047 = vsel %vm105, %v1998, 0.0
  %2048 = vadd.xlane.f32.xlu0 %v2047
  %v2049 = vpop.xlane.xlu0 %2048
  %v2050 = vsel %vm105, %v2000, 0.0
  %2051 = vadd.xlane.f32.xlu0 %v2050
  %v2052 = vpop.xlane.xlu0 %2051
  %v2053 = vsel %vm105, %v2002, 0.0
  %2054 = vadd.xlane.f32.xlu0 %v2053
  %v2055 = vpop.xlane.xlu0 %2054
  %v2056 = vsel %vm105, %v2004, 0.0
  %2057 = vadd.xlane.f32.xlu0 %v2056
  %v2058 = vpop.xlane.xlu0 %2057
  %v2059 = vsel %vm105, %v2006, 0.0
  %2060 = vadd.xlane.f32.xlu0 %v2059
  %v2061 = vpop.xlane.xlu0 %2060
  %v2062 = vsel %vm105, %v2008, 0.0
  %2063 = vadd.xlane.f32.xlu0 %v2062
  %v2064 = vpop.xlane.xlu0 %2063
  %v2065 = vsel %vm105, %v2010, 0.0
  %2066 = vadd.xlane.f32.xlu0 %v2065
  %v2067 = vpop.xlane.xlu0 %2066
  %v2068 = vsel %vm105, %v2012, 0.0
  %2069 = vadd.xlane.f32.xlu0 %v2068
  %v2070 = vpop.xlane.xlu0 %2069
  %v2071 = vsel %vm105, %v2014, 0.0
  %2072 = vadd.xlane.f32.xlu0 %v2071
  %v2073 = vpop.xlane.xlu0 %2072
  %v2074 = vsel %vm105, %v2016, 0.0
  %2075 = vadd.xlane.f32.xlu0 %v2074
  %v2076 = vpop.xlane.xlu0 %2075
  %v2077 = vsel %vm105, %v2018, 0.0
  %2078 = vadd.xlane.f32.xlu0 %v2077
  %v2079 = vpop.xlane.xlu0 %2078
  %v2080 = vsel %vm105, %v2020, 0.0
  %2081 = vadd.xlane.f32.xlu0 %v2080
  %v2082 = vpop.xlane.xlu0 %2081
  %v2083 = vsel %vm105, %v2022, 0.0
  %2084 = vadd.xlane.f32.xlu0 %v2083
  %v2085 = vpop.xlane.xlu0 %2084
  %v2086 = vsel %vm105, %v2024, 0.0
  %2087 = vadd.xlane.f32.xlu0 %v2086
  %v2088 = vpop.xlane.xlu0 %2087
  %v2089 = vsel %vm105, %v2026, 0.0
  %2090 = vadd.xlane.f32.xlu0 %v2089
  %v2091 = vpop.xlane.xlu0 %2090
  %v2092 = vsel %vm105, %v2028, 0.0
  %2093 = vadd.xlane.f32.xlu0 %v2092
  %v2094 = vpop.xlane.xlu0 %2093
  %v2095 = vsel %vm105, %v2030, 0.0
  %2096 = vadd.xlane.f32.xlu0 %v2095
  %v2097 = vpop.xlane.xlu0 %2096
  %v2098 = vsel %vm105, %v2032, 0.0
  %2099 = vadd.xlane.f32.xlu0 %v2098
  %v2100 = vpop.xlane.xlu0 %2099
  %v2101 = vsel %vm105, %v2034, 0.0
  %2102 = vadd.xlane.f32.xlu0 %v2101
  %v2103 = vpop.xlane.xlu0 %2102
  %v2104 = vsel %vm105, %v2036, 0.0
  %2105 = vadd.xlane.f32.xlu0 %v2104
  %v2106 = vpop.xlane.xlu0 %2105
  %v2107 = vsel %vm105, %v2038, 0.0
  %2108 = vadd.xlane.f32.xlu0 %v2107
  %v2109 = vpop.xlane.xlu0 %2108
  %v2110 = vsel %vm105, %v2040, 0.0
  %2111 = vadd.xlane.f32.xlu0 %v2110
  %v2112 = vpop.xlane.xlu0 %2111
  %v2113 = vrcp.pop %v2043
  %v2114 = vrcp.pop %v2046
  %v2115 = vrcp.pop %v2049
  %v2116 = vrcp.pop %v2052
  %v2117 = vrcp.pop %v2055
  %v2118 = vrcp.pop %v2058
  %v2119 = vrcp.pop %v2061
  %v2120 = vrcp.pop %v2064
  %v2121 = vrcp.pop %v2067
  %v2122 = vrcp.pop %v2070
  %v2123 = vrcp.pop %v2073
  %v2124 = vrcp.pop %v2076
  %v2125 = vrcp.pop %v2079
  %v2126 = vrcp.pop %v2082
  %v2127 = vrcp.pop %v2085
  %v2128 = vrcp.pop %v2088
  %v2129 = vrcp.pop %v2091
  %v2130 = vrcp.pop %v2094
  %v2131 = vrcp.pop %v2097
  %v2132 = vrcp.pop %v2100
  %v2133 = vrcp.pop %v2103
  %v2134 = vrcp.pop %v2106
  %v2135 = vrcp.pop %v2109
  %v2136 = vrcp.pop %v2112
  %v2137 = vmul.f32 %v1994, %v2113
  %v2138 = vmul.f32 %v1996, %v2114
  %v2139 = vmul.f32 %v1998, %v2115
  %v2140 = vmul.f32 %v2000, %v2116
  %v2141 = vmul.f32 %v2002, %v2117
  %v2142 = vmul.f32 %v2004, %v2118
  %v2143 = vmul.f32 %v2006, %v2119
  %v2144 = vmul.f32 %v2008, %v2120
  %v2145 = vmul.f32 %v2010, %v2121
  %v2146 = vmul.f32 %v2012, %v2122
  %v2147 = vmul.f32 %v2014, %v2123
  %v2148 = vmul.f32 %v2016, %v2124
  %v2149 = vmul.f32 %v2018, %v2125
  %v2150 = vmul.f32 %v2020, %v2126
  %v2151 = vmul.f32 %v2022, %v2127
  %v2152 = vmul.f32 %v2024, %v2128
  %v2153 = vmul.f32 %v2026, %v2129
  %v2154 = vmul.f32 %v2028, %v2130
  %v2155 = vmul.f32 %v2030, %v2131
  %v2156 = vmul.f32 %v2032, %v2132
  %v2157 = vmul.f32 %v2034, %v2133
  %v2158 = vmul.f32 %v2036, %v2134
  %v2159 = vmul.f32 %v2038, %v2135
  %v2160 = vmul.f32 %v2040, %v2136
  %v2161 = vpack.c.bf16 %v2138, %v2137
  %v2162 = vpack.c.bf16 %v2140, %v2139
  %v2163 = vpack.c.bf16 %v2142, %v2141
  %v2164 = vpack.c.bf16 %v2144, %v2143
  %v2165 = vpack.c.bf16 %v2146, %v2145
  %v2166 = vpack.c.bf16 %v2148, %v2147
  %v2167 = vpack.c.bf16 %v2150, %v2149
  %v2168 = vpack.c.bf16 %v2152, %v2151
  %v2169 = vpack.c.bf16 %v2154, %v2153
  %v2170 = vpack.c.bf16 %v2156, %v2155
  %v2171 = vpack.c.bf16 %v2158, %v2157
  %v2172 = vpack.c.bf16 %v2160, %v2159
  %v2173 = vpack.c.bf16 %v1732, %v1730
  %v2174 = vpack.c.bf16 %v1737, %v1735
  %v2175 = vpack.c.bf16 %v1742, %v1740
  %v2177 = vsel %vm105, %v2161, 0
  %v2180 = vsel %vm105, %v2162, 0
  %v2183 = vsel %vm105, %v2163, 0
  %v2186 = vsel %vm105, %v2164, 0
  %v2189 = vsel %vm105, %v2165, 0
  %v2192 = vsel %vm105, %v2166, 0
  %v2195 = vsel %vm105, %v2167, 0
  %v2198 = vsel %vm105, %v2168, 0
  %v2201 = vsel %vm105, %v2169, 0
  %v2204 = vsel %vm105, %v2170, 0
  %v2207 = vsel %vm105, %v2171, 0
  %v2210 = vsel %vm105, %v2172, 0
  %2212 = vmatpush.bf16.msra.mxu0 0
  %2213 = vmatpush.bf16.msra.mxu0 0
  %2214 = vmatpush.bf16.msra.mxu0 0
  %2215 = vmatpush.bf16.msra.mxu0 0
  %2216 = vmatpush.bf16.msra.mxu0 0
  %2217 = vmatpush.bf16.msra.mxu0 %v2175
  %2218 = vmatpush.bf16.msra.mxu0 %v2174
  %2219 = vmatpush.bf16.msra.mxu0 %v2173
  %2220 = vmatmul.bf16.gmra.mxu0 %v2177
  %v2221 = vpop.f32.mrf.mxu0
  %v2222 = vadd.f32 0.0, %v2221
  %v2223 = vpop.f32.mrf.mxu0
  %v2224 = vadd.f32 0.0, %v2223
  %2225 = vmatmul.bf16.gmra.mxu0 %v2180
  %v2226 = vpop.f32.mrf.mxu0
  %v2227 = vadd.f32 0.0, %v2226
  %v2228 = vpop.f32.mrf.mxu0
  %v2229 = vadd.f32 0.0, %v2228
  %2230 = vmatmul.bf16.gmra.mxu0 %v2183
  %v2231 = vpop.f32.mrf.mxu0
  %v2232 = vadd.f32 0.0, %v2231
  %v2233 = vpop.f32.mrf.mxu0
  %v2234 = vadd.f32 0.0, %v2233
  %2235 = vmatmul.bf16.gmra.mxu0 %v2186
  %v2236 = vpop.f32.mrf.mxu0
  %v2237 = vadd.f32 0.0, %v2236
  %v2238 = vpop.f32.mrf.mxu0
  %v2239 = vadd.f32 0.0, %v2238
  %2240 = vmatmul.bf16.gmra.mxu0 %v2189
  %v2241 = vpop.f32.mrf.mxu0
  %v2242 = vadd.f32 0.0, %v2241
  %v2243 = vpop.f32.mrf.mxu0
  %v2244 = vadd.f32 0.0, %v2243
  %2245 = vmatmul.bf16.gmra.mxu0 %v2192
  %v2246 = vpop.f32.mrf.mxu0
  %v2247 = vadd.f32 0.0, %v2246
  %v2248 = vpop.f32.mrf.mxu0
  %v2249 = vadd.f32 0.0, %v2248
  %2250 = vmatmul.bf16.gmra.mxu0 %v2195
  %v2251 = vpop.f32.mrf.mxu0
  %v2252 = vadd.f32 0.0, %v2251
  %v2253 = vpop.f32.mrf.mxu0
  %v2254 = vadd.f32 0.0, %v2253
  %2255 = vmatmul.bf16.gmra.mxu0 %v2198
  %v2256 = vpop.f32.mrf.mxu0
  %v2257 = vadd.f32 0.0, %v2256
  %v2258 = vpop.f32.mrf.mxu0
  %v2259 = vadd.f32 0.0, %v2258
  %2260 = vmatmul.bf16.gmra.mxu0 %v2201
  %v2261 = vpop.f32.mrf.mxu0
  %v2262 = vadd.f32 0.0, %v2261
  %v2263 = vpop.f32.mrf.mxu0
  %v2264 = vadd.f32 0.0, %v2263
  %2265 = vmatmul.bf16.gmra.mxu0 %v2204
  %v2266 = vpop.f32.mrf.mxu0
  %v2267 = vadd.f32 0.0, %v2266
  %v2268 = vpop.f32.mrf.mxu0
  %v2269 = vadd.f32 0.0, %v2268
  %2270 = vmatmul.bf16.gmra.mxu0 %v2207
  %v2271 = vpop.f32.mrf.mxu0
  %v2272 = vadd.f32 0.0, %v2271
  %v2273 = vpop.f32.mrf.mxu0
  %v2274 = vadd.f32 0.0, %v2273
  %2275 = vmatmul.bf16.gmra.mxu0 %v2210
  %v2276 = vpop.f32.mrf.mxu0
  %v2277 = vadd.f32 0.0, %v2276
  %v2278 = vpop.f32.mrf.mxu0
  %v2279 = vadd.f32 0.0, %v2278
  %2280 = vdwg.mxu0
  %v2281 = vmul.f32 %v2222, %v139
  %v2282 = vmul.f32 %v2224, %v140
  %v2283 = vmul.f32 %v2227, %v141
  %v2284 = vmul.f32 %v2229, %v142
  %v2285 = vmul.f32 %v2232, %v143
  %v2286 = vmul.f32 %v2234, %v144
  %v2287 = vmul.f32 %v2237, %v145
  %v2288 = vmul.f32 %v2239, %v146
  %v2289 = vmul.f32 %v2242, %v147
  %v2290 = vmul.f32 %v2244, %v148
  %v2291 = vmul.f32 %v2247, %v149
  %v2292 = vmul.f32 %v2249, %v150
  %v2293 = vmul.f32 %v2252, %v151
  %v2294 = vmul.f32 %v2254, %v152
  %v2295 = vmul.f32 %v2257, %v153
  %v2296 = vmul.f32 %v2259, %v154
  %v2297 = vmul.f32 %v2262, %v155
  %v2298 = vmul.f32 %v2264, %v156
  %v2299 = vmul.f32 %v2267, %v157
  %v2300 = vmul.f32 %v2269, %v158
  %v2301 = vmul.f32 %v2272, %v159
  %v2302 = vmul.f32 %v2274, %v160
  %v2303 = vmul.f32 %v2277, %v161
  %v2304 = vmul.f32 %v2279, %v162
  %v2305 = vadd.f32 %v2281, %v2287
  %v2306 = vadd.f32 %v2282, %v2288
  %v2307 = vadd.f32 %v2283, %v2289
  %v2308 = vadd.f32 %v2284, %v2290
  %v2309 = vadd.f32 %v2285, %v2291
  %v2310 = vadd.f32 %v2286, %v2292
  %v2311 = vadd.f32 %v2305, %v2293
  %v2312 = vadd.f32 %v2306, %v2294
  %v2313 = vadd.f32 %v2307, %v2295
  %v2314 = vadd.f32 %v2308, %v2296
  %v2315 = vadd.f32 %v2309, %v2297
  %v2316 = vadd.f32 %v2310, %v2298
  %v2317 = vadd.f32 %v2311, %v2299
  %v2318 = vadd.f32 %v2312, %v2300
  %v2319 = vadd.f32 %v2313, %v2301
  %v2320 = vadd.f32 %v2314, %v2302
  %v2321 = vadd.f32 %v2315, %v2303
  %v2322 = vadd.f32 %v2316, %v2304
  %v2323 = vpack.c.bf16 %v2318, %v2317
  %v2324 = vpack.c.bf16 %v2320, %v2319
  %v2325 = vpack.c.bf16 %v2322, %v2321
  %s2326 = scalar_lea.vmem %s8, 16
  %v2327 = vld [vmem:[%s2326] sm:$0xf]
  %v2328 = vld [vmem:[%s2326 + $0x4] sm:$0xf]
  %v2329 = vld [vmem:[%s2326 + $0x8] sm:$0xf]
  %v2330 = vld [vmem:[%s2326 + $0xc] sm:$0xf]
  %v2335 = vunpack.c.l.b16 %v2327
  %v2336 = vunpack.c.l.b16 %v2328
  %v2337 = vunpack.c.l.b16 %v2329
  %v2338 = vunpack.c.l.b16 %v2330
  %v2339 = vpack.c.b16 %v2336, %v2335
  %v2340 = vpack.c.b16 %v2338, %v2337
  %v2344 = vsel %vm189, %v2323, 0
  %v2347 = vsel %vm189, %v2324, 0
  %v2350 = vsel %vm189, %v2325, 0
  %2352 = vmatpush.bf16.msra.mxu0 0
  %2353 = vmatpush.bf16.msra.mxu0 0
  %2354 = vmatpush.bf16.msra.mxu0 0
  %2355 = vmatpush.bf16.msra.mxu0 0
  %2356 = vmatpush.bf16.msra.mxu0 0
  %2357 = vmatpush.bf16.msra.mxu0 0
  %2358 = vmatpush.bf16.msra.mxu0 %v2340
  %2359 = vmatpush.bf16.msra.mxu0 %v2339
  %2360 = vmatmul.bf16.gmra.mxu0 %v2344
  %v2361 = vpop.f32.mrf.mxu0
  %v2362 = vadd.f32 0.0, %v2361
  %v2363 = vpop.f32.mrf.mxu0
  %v2364 = vadd.f32 0.0, %v2363
  %2365 = vmatmul.bf16.gmra.mxu0 %v2347
  %v2366 = vpop.f32.mrf.mxu0
  %v2367 = vadd.f32 0.0, %v2366
  %v2368 = vpop.f32.mrf.mxu0
  %v2369 = vadd.f32 0.0, %v2368
  %2370 = vmatmul.bf16.gmra.mxu0 %v2350
  %v2371 = vpop.f32.mrf.mxu0
  %v2372 = vadd.f32 0.0, %v2371
  %v2373 = vpop.f32.mrf.mxu0
  %v2374 = vadd.f32 0.0, %v2373
  %2375 = vdwg.mxu0
  %v2376 = vadd.f32 %v1451, %v2362
  %v2377 = vadd.f32 %v1452, %v2364
  %v2378 = vadd.f32 %v1453, %v2367
  %v2379 = vadd.f32 %v1454, %v2369
  %v2380 = vadd.f32 %v1455, %v2372
  %v2381 = vadd.f32 %v1456, %v2374
  %v2382 = vperm.slane %v1458, 5
  %v2383 = vadd.f32 %v2376, %v2382
  %v2384 = vadd.f32 %v2377, %v2382
  %v2385 = vadd.f32 %v2378, %v2382
  %v2386 = vadd.f32 %v2379, %v2382
  %v2387 = vadd.f32 %v2380, %v2382
  %v2388 = vadd.f32 %v2381, %v2382
  %v2389 = vsel %vm189, %v2383, 0.0
  %2390 = vadd.xlane.f32.xlu0 %v2389
  %v2391 = vpop.xlane.xlu0 %2390
  %v2392 = vsel %vm189, %v2384, 0.0
  %2393 = vadd.xlane.f32.xlu0 %v2392
  %v2394 = vpop.xlane.xlu0 %2393
  %v2395 = vsel %vm189, %v2385, 0.0
  %2396 = vadd.xlane.f32.xlu0 %v2395
  %v2397 = vpop.xlane.xlu0 %2396
  %v2398 = vsel %vm189, %v2386, 0.0
  %2399 = vadd.xlane.f32.xlu0 %v2398
  %v2400 = vpop.xlane.xlu0 %2399
  %v2401 = vsel %vm189, %v2387, 0.0
  %2402 = vadd.xlane.f32.xlu0 %v2401
  %v2403 = vpop.xlane.xlu0 %2402
  %v2404 = vsel %vm189, %v2388, 0.0
  %2405 = vadd.xlane.f32.xlu0 %v2404
  %v2406 = vpop.xlane.xlu0 %2405
  %v2407 = vmul.f32 %v2391, %v214
  %v2408 = vmul.f32 %v2394, %v214
  %v2409 = vmul.f32 %v2397, %v214
  %v2410 = vmul.f32 %v2400, %v214
  %v2411 = vmul.f32 %v2403, %v214
  %v2412 = vmul.f32 %v2406, %v214
  %v2413 = vsub.f32 %v2383, %v2407
  %v2414 = vsub.f32 %v2384, %v2408
  %v2415 = vsub.f32 %v2385, %v2409
  %v2416 = vsub.f32 %v2386, %v2410
  %v2417 = vsub.f32 %v2387, %v2411
  %v2418 = vsub.f32 %v2388, %v2412
  %v2419 = vmul.f32 %v2413, %v2413
  %v2420 = vmul.f32 %v2414, %v2414
  %v2421 = vmul.f32 %v2415, %v2415
  %v2422 = vmul.f32 %v2416, %v2416
  %v2423 = vmul.f32 %v2417, %v2417
  %v2424 = vmul.f32 %v2418, %v2418
  %v2425 = vsel %vm189, %v2419, 0.0
  %2426 = vadd.xlane.f32.xlu0 %v2425
  %v2427 = vpop.xlane.xlu0 %2426
  %v2428 = vsel %vm189, %v2420, 0.0
  %2429 = vadd.xlane.f32.xlu0 %v2428
  %v2430 = vpop.xlane.xlu0 %2429
  %v2431 = vsel %vm189, %v2421, 0.0
  %2432 = vadd.xlane.f32.xlu0 %v2431
  %v2433 = vpop.xlane.xlu0 %2432
  %v2434 = vsel %vm189, %v2422, 0.0
  %2435 = vadd.xlane.f32.xlu0 %v2434
  %v2436 = vpop.xlane.xlu0 %2435
  %v2437 = vsel %vm189, %v2423, 0.0
  %2438 = vadd.xlane.f32.xlu0 %v2437
  %v2439 = vpop.xlane.xlu0 %2438
  %v2440 = vsel %vm189, %v2424, 0.0
  %2441 = vadd.xlane.f32.xlu0 %v2440
  %v2442 = vpop.xlane.xlu0 %2441
  %v2443 = vmul.f32 %v2427, %v214
  %v2444 = vmul.f32 %v2430, %v214
  %v2445 = vmul.f32 %v2433, %v214
  %v2446 = vmul.f32 %v2436, %v214
  %v2447 = vmul.f32 %v2439, %v214
  %v2448 = vmul.f32 %v2442, %v214
  %v2449 = vadd.f32 %v2443, 1e-06
  %v2450 = vadd.f32 %v2444, 1e-06
  %v2451 = vadd.f32 %v2445, 1e-06
  %v2452 = vadd.f32 %v2446, 1e-06
  %v2453 = vadd.f32 %v2447, 1e-06
  %v2454 = vadd.f32 %v2448, 1e-06
  %v2455 = vrsqrt.pop %v2449
  %v2456 = vmul.f32 %v2455, %v2449
  %v2457 = vmul.f32 %v2456, %v2455
  %v2458 = vmul.f32 0.5, %v2457
  %v2459 = vsub.f32 1.5, %v2458
  %v2460 = vmul.f32 %v2455, %v2459
  %vm2461 = vweird.f32 %v2449
  %vm2462 = vweird.f32 %v2455
  %vm2463 = vmor %vm2461, %vm2462
  %v2464 = vsel %vm2463, %v2455, %v2460
  %v2465 = vrsqrt.pop %v2450
  %v2466 = vmul.f32 %v2465, %v2450
  %v2467 = vmul.f32 %v2466, %v2465
  %v2468 = vmul.f32 0.5, %v2467
  %v2469 = vsub.f32 1.5, %v2468
  %v2470 = vmul.f32 %v2465, %v2469
  %vm2471 = vweird.f32 %v2450
  %vm2472 = vweird.f32 %v2465
  %vm2473 = vmor %vm2471, %vm2472
  %v2474 = vsel %vm2473, %v2465, %v2470
  %v2475 = vrsqrt.pop %v2451
  %v2476 = vmul.f32 %v2475, %v2451
  %v2477 = vmul.f32 %v2476, %v2475
  %v2478 = vmul.f32 0.5, %v2477
  %v2479 = vsub.f32 1.5, %v2478
  %v2480 = vmul.f32 %v2475, %v2479
  %vm2481 = vweird.f32 %v2451
  %vm2482 = vweird.f32 %v2475
  %vm2483 = vmor %vm2481, %vm2482
  %v2484 = vsel %vm2483, %v2475, %v2480
  %v2485 = vrsqrt.pop %v2452
  %v2486 = vmul.f32 %v2485, %v2452
  %v2487 = vmul.f32 %v2486, %v2485
  %v2488 = vmul.f32 0.5, %v2487
  %v2489 = vsub.f32 1.5, %v2488
  %v2490 = vmul.f32 %v2485, %v2489
  %vm2491 = vweird.f32 %v2452
  %vm2492 = vweird.f32 %v2485
  %vm2493 = vmor %vm2491, %vm2492
  %v2494 = vsel %vm2493, %v2485, %v2490
  %v2495 = vrsqrt.pop %v2453
  %v2496 = vmul.f32 %v2495, %v2453
  %v2497 = vmul.f32 %v2496, %v2495
  %v2498 = vmul.f32 0.5, %v2497
  %v2499 = vsub.f32 1.5, %v2498
  %v2500 = vmul.f32 %v2495, %v2499
  %vm2501 = vweird.f32 %v2453
  %vm2502 = vweird.f32 %v2495
  %vm2503 = vmor %vm2501, %vm2502
  %v2504 = vsel %vm2503, %v2495, %v2500
  %v2505 = vrsqrt.pop %v2454
  %v2506 = vmul.f32 %v2505, %v2454
  %v2507 = vmul.f32 %v2506, %v2505
  %v2508 = vmul.f32 0.5, %v2507
  %v2509 = vsub.f32 1.5, %v2508
  %v2510 = vmul.f32 %v2505, %v2509
  %vm2511 = vweird.f32 %v2454
  %vm2512 = vweird.f32 %v2505
  %vm2513 = vmor %vm2511, %vm2512
  %v2514 = vsel %vm2513, %v2505, %v2510
  %v2515 = vmul.f32 %v2413, %v2464
  %v2516 = vmul.f32 %v2414, %v2474
  %v2517 = vmul.f32 %v2415, %v2484
  %v2518 = vmul.f32 %v2416, %v2494
  %v2519 = vmul.f32 %v2417, %v2504
  %v2520 = vmul.f32 %v2418, %v2514
  %v2521 = vperm.slane %v1458, 6
  %v2522 = vmul.f32 %v2515, %v2521
  %v2523 = vmul.f32 %v2516, %v2521
  %v2524 = vmul.f32 %v2517, %v2521
  %v2525 = vmul.f32 %v2518, %v2521
  %v2526 = vmul.f32 %v2519, %v2521
  %v2527 = vmul.f32 %v2520, %v2521
  %v2528 = vperm.slane %v1458, 7
  %v2529 = vadd.f32 %v2522, %v2528
  %v2530 = vadd.f32 %v2523, %v2528
  %v2531 = vadd.f32 %v2524, %v2528
  %v2532 = vadd.f32 %v2525, %v2528
  %v2533 = vadd.f32 %v2526, %v2528
  %v2534 = vadd.f32 %v2527, %v2528
  %v2535 = vpack.c.bf16 %v2530, %v2529
  %v2536 = vpack.c.bf16 %v2532, %v2531
  %v2537 = vpack.c.bf16 %v2534, %v2533
  %s2538 = scalar_lea.vmem %s9, 16
  %v2539 = vld [vmem:[%s2538] sm:$0xf]
  %v2540 = vld [vmem:[%s2538 + $0x4] sm:$0xf]
  %v2541 = vld [vmem:[%s2538 + $0x8] sm:$0xf]
  %v2542 = vld [vmem:[%s2538 + $0xc] sm:$0xf]
  %v2543 = vperm.slane %v1459, 0
  %v2548 = vunpack.c.l.b16 %v2539
  %v2549 = vunpack.c.l.b16 %v2540
  %v2550 = vunpack.c.l.b16 %v2541
  %v2551 = vunpack.c.l.b16 %v2542
  %v2552 = vpack.c.b16 %v2549, %v2548
  %v2553 = vpack.c.b16 %v2551, %v2550
  %v2557 = vsel %vm189, %v2535, 0
  %v2560 = vsel %vm189, %v2536, 0
  %v2563 = vsel %vm189, %v2537, 0
  %2565 = vmatpush.bf16.msra.mxu0 0
  %2566 = vmatpush.bf16.msra.mxu0 0
  %2567 = vmatpush.bf16.msra.mxu0 0
  %2568 = vmatpush.bf16.msra.mxu0 0
  %2569 = vmatpush.bf16.msra.mxu0 0
  %2570 = vmatpush.bf16.msra.mxu0 0
  %2571 = vmatpush.bf16.msra.mxu0 %v2553
  %2572 = vmatpush.bf16.msra.mxu0 %v2552
  %2573 = vmatmul.bf16.gmra.mxu0 %v2557
  %v2574 = vpop.f32.mrf.mxu0
  %v2575 = vadd.f32 %v2543, %v2574
  %v2576 = vpop.f32.mrf.mxu0
  %v2577 = vadd.f32 %v2543, %v2576
  %2578 = vmatmul.bf16.gmra.mxu0 %v2560
  %v2579 = vpop.f32.mrf.mxu0
  %v2580 = vadd.f32 %v2543, %v2579
  %v2581 = vpop.f32.mrf.mxu0
  %v2582 = vadd.f32 %v2543, %v2581
  %2583 = vmatmul.bf16.gmra.mxu0 %v2563
  %v2584 = vpop.f32.mrf.mxu0
  %v2585 = vadd.f32 %v2543, %v2584
  %v2586 = vpop.f32.mrf.mxu0
  %v2587 = vadd.f32 %v2543, %v2586
  %2588 = vdwg.mxu0
  %v2589 = vmul.f32 %v2575, %v2575
  %v2590 = vmul.f32 %v2577, %v2577
  %v2591 = vmul.f32 %v2580, %v2580
  %v2592 = vmul.f32 %v2582, %v2582
  %v2593 = vmul.f32 %v2585, %v2585
  %v2594 = vmul.f32 %v2587, %v2587
  %v2595 = vmul.f32 %v2575, %v2589
  %v2596 = vmul.f32 %v2577, %v2590
  %v2597 = vmul.f32 %v2580, %v2591
  %v2598 = vmul.f32 %v2582, %v2592
  %v2599 = vmul.f32 %v2585, %v2593
  %v2600 = vmul.f32 %v2587, %v2594
  %v2601 = vmul.f32 %v2595, 0.044715
  %v2602 = vmul.f32 %v2596, 0.044715
  %v2603 = vmul.f32 %v2597, 0.044715
  %v2604 = vmul.f32 %v2598, 0.044715
  %v2605 = vmul.f32 %v2599, 0.044715
  %v2606 = vmul.f32 %v2600, 0.044715
  %v2607 = vadd.f32 %v2575, %v2601
  %v2608 = vadd.f32 %v2577, %v2602
  %v2609 = vadd.f32 %v2580, %v2603
  %v2610 = vadd.f32 %v2582, %v2604
  %v2611 = vadd.f32 %v2585, %v2605
  %v2612 = vadd.f32 %v2587, %v2606
  %v2613 = vmul.f32 %v2607, 0.7978846
  %v2614 = vmul.f32 %v2608, 0.7978846
  %v2615 = vmul.f32 %v2609, 0.7978846
  %v2616 = vmul.f32 %v2610, 0.7978846
  %v2617 = vmul.f32 %v2611, 0.7978846
  %v2618 = vmul.f32 %v2612, 0.7978846
  %v2619 = vtanh.pop %v2613
  %v2620 = vtanh.pop %v2614
  %v2621 = vtanh.pop %v2615
  %v2622 = vtanh.pop %v2616
  %v2623 = vtanh.pop %v2617
  %v2624 = vtanh.pop %v2618
  %v2625 = vadd.f32 %v2619, 1.0
  %v2626 = vadd.f32 %v2620, 1.0
  %v2627 = vadd.f32 %v2621, 1.0
  %v2628 = vadd.f32 %v2622, 1.0
  %v2629 = vadd.f32 %v2623, 1.0
  %v2630 = vadd.f32 %v2624, 1.0
  %v2631 = vmul.f32 %v2625, 0.5
  %v2632 = vmul.f32 %v2626, 0.5
  %v2633 = vmul.f32 %v2627, 0.5
  %v2634 = vmul.f32 %v2628, 0.5
  %v2635 = vmul.f32 %v2629, 0.5
  %v2636 = vmul.f32 %v2630, 0.5
  %v2637 = vmul.f32 %v2575, %v2631
  %v2638 = vmul.f32 %v2577, %v2632
  %v2639 = vmul.f32 %v2580, %v2633
  %v2640 = vmul.f32 %v2582, %v2634
  %v2641 = vmul.f32 %v2585, %v2635
  %v2642 = vmul.f32 %v2587, %v2636
  %v2643 = vpack.c.bf16 %v2638, %v2637
  %v2644 = vpack.c.bf16 %v2640, %v2639
  %v2645 = vpack.c.bf16 %v2642, %v2641
  %s2646 = scalar_lea.vmem %s10, 32
  %v2647 = vld [vmem:[%s2646] sm:$0xf]
  %v2648 = vld [vmem:[%s2646 + $0x4] sm:$0xf]
  %v2649 = vld [vmem:[%s2646 + $0x8] sm:$0xf]
  %v2650 = vld [vmem:[%s2646 + $0xc] sm:$0xf]
  %v2651 = vld [vmem:[%s2646 + $0x10] sm:$0xf]
  %v2652 = vld [vmem:[%s2646 + $0x14] sm:$0xf]
  %v2653 = vld [vmem:[%s2646 + $0x18] sm:$0xf]
  %v2654 = vld [vmem:[%s2646 + $0x1c] sm:$0xf]
  %v2663 = vunpack.c.l.b16 %v2647
  %v2664 = vunpack.c.l.b16 %v2648
  %v2665 = vunpack.c.l.b16 %v2649
  %v2666 = vunpack.c.l.b16 %v2650
  %v2667 = vunpack.c.l.b16 %v2651
  %v2668 = vunpack.c.l.b16 %v2652
  %v2669 = vunpack.c.l.b16 %v2653
  %v2670 = vunpack.c.l.b16 %v2654
  %v2671 = vpack.c.b16 %v2664, %v2663
  %v2672 = vpack.c.b16 %v2666, %v2665
  %v2673 = vpack.c.b16 %v2668, %v2667
  %v2674 = vpack.c.b16 %v2670, %v2669
  %v2680 = vsel %vm1410, %v2643, 0
  %v2683 = vsel %vm1410, %v2644, 0
  %v2686 = vsel %vm1410, %v2645, 0
  %2688 = vmatpush.bf16.msra.mxu0 0
  %2689 = vmatpush.bf16.msra.mxu0 0
  %2690 = vmatpush.bf16.msra.mxu0 0
  %2691 = vmatpush.bf16.msra.mxu0 0
  %2692 = vmatpush.bf16.msra.mxu0 %v2674
  %2693 = vmatpush.bf16.msra.mxu0 %v2673
  %2694 = vmatpush.bf16.msra.mxu0 %v2672
  %2695 = vmatpush.bf16.msra.mxu0 %v2671
  %2696 = vmatmul.bf16.gmra.mxu0 %v2680
  %v2697 = vpop.f32.mrf.mxu0
  %v2698 = vadd.f32 0.0, %v2697
  %v2699 = vpop.f32.mrf.mxu0
  %2700 = vmatmul.bf16.gmra.mxu0 %v2683
  %v2701 = vpop.f32.mrf.mxu0
  %v2702 = vpop.f32.mrf.mxu0
  %v2703 = vadd.f32 0.0, %v2702
  %2704 = vmatmul.bf16.gmra.mxu0 %v2686
  %v2705 = vpop.f32.mrf.mxu0
  %v2706 = vpop.f32.mrf.mxu0
  %2707 = vdwg.mxu0
  %v2708 = vadd.f32 %v2383, %v2698
  %v2709 = vadd.f32 %v2386, %v2703
  %v2710 = vperm.slane %v1459, 1
  %v2711 = vadd.f32 %v2708, %v2710
  %v2712 = vadd.f32 %v2709, %v2710
  %v2714 = vrot.slane %v2712, 7
  %vm2716 = vcmask 1040384
  %v2717 = vsel %vm2716, %v2711, %v2714
  %v2718 = vld [vmem:[%s12] sm:$0xff]
  %v2719 = vld [vmem:[%s12 + $0x8] sm:$0x1]
  %vm2720 = vcmask 254976
  %v2721 = vsel %vm2720, %v2717, 0.0
  %2722 = vadd.xlane.f32.xlu0 %v2721
  %v2723 = vpop.xlane.xlu0 %2722
  %v2724 = vmul.f32 %v2723, %v214
  %v2725 = vsub.f32 %v2717, %v2724
  %v2726 = vmul.f32 %v2725, %v2725
  %v2727 = vsel %vm2720, %v2726, 0.0
  %2728 = vadd.xlane.f32.xlu0 %v2727
  %v2729 = vpop.xlane.xlu0 %2728
  %v2730 = vmul.f32 %v2729, %v214
  %v2731 = vadd.f32 %v2730, 1e-06
  %v2732 = vrsqrt.pop %v2731
  %v2733 = vmul.f32 %v2732, %v2731
  %v2734 = vmul.f32 %v2733, %v2732
  %v2735 = vmul.f32 0.5, %v2734
  %v2736 = vsub.f32 1.5, %v2735
  %v2737 = vmul.f32 %v2732, %v2736
  %vm2738 = vweird.f32 %v2731
  %vm2739 = vweird.f32 %v2732
  %vm2740 = vmor %vm2738, %vm2739
  %v2741 = vsel %vm2740, %v2732, %v2737
  %v2742 = vmul.f32 %v2725, %v2741
  %v2743 = vperm.slane %v2718, 0
  %v2744 = vmul.f32 %v2742, %v2743
  %v2745 = vperm.slane %v2718, 1
  %v2746 = vadd.f32 %v2744, %v2745
  %v2747 = vpack.c.bf16 %v2746, %v2746
  %v2748 = vld [vmem:[%s13] sm:$0xf]
  %v2749 = vld [vmem:[%s13 + $0x4] sm:$0xf]
  %v2750 = vld [vmem:[%s13 + $0x8] sm:$0xf]
  %v2751 = vld [vmem:[%s13 + $0xc] sm:$0xf]
  %v2752 = vperm.slane %v2718, 2
  %v2757 = vunpack.c.l.b16 %v2748
  %v2758 = vunpack.c.l.b16 %v2749
  %v2759 = vunpack.c.l.b16 %v2750
  %v2760 = vunpack.c.l.b16 %v2751
  %v2761 = vpack.c.b16 %v2758, %v2757
  %v2762 = vpack.c.b16 %v2760, %v2759
  %v2766 = vsel %vm189, %v2747, 0
  %2768 = vmatpush.bf16.msra.mxu0 0
  %2769 = vmatpush.bf16.msra.mxu0 0
  %2770 = vmatpush.bf16.msra.mxu0 0
  %2771 = vmatpush.bf16.msra.mxu0 0
  %2772 = vmatpush.bf16.msra.mxu0 0
  %2773 = vmatpush.bf16.msra.mxu0 0
  %2774 = vmatpush.bf16.msra.mxu0 %v2762
  %2775 = vmatpush.bf16.msra.mxu0 %v2761
  %2776 = vmatmul.bf16.gmra.mxu0 %v2766
  %v2777 = vpop.f32.mrf.mxu0
  %v2778 = vadd.f32 %v2752, %v2777
  %v2779 = vpop.f32.mrf.mxu0
  %2780 = vdwg.mxu0
  %v2781 = vsel %vm2720, %v2778, 0.0
  %v2782 = vrot.slane %v2781, 4
  %v2783 = vadd.f32 %v2781, %v2782
  %v2784 = vrot.slane %v2783, 2
  %v2785 = vadd.f32 %v2783, %v2784
  %v2786 = vrot.slane %v2785, 1
  %v2787 = vadd.f32 %v2785, %v2786
  %v2788 = vrcp.pop 2.0
  %v2789 = vmul.f32 2.0, %v2788
  %v2790 = vsub.f32 1.0, %v2789
  %v2791 = vmul.f32 %v2788, %v2790
  %v2792 = vadd.f32 %v2788, %v2791
  %vm2793 = vweird.f32 %v2788
  %v2794 = vsel %vm2793, %v2788, %v2792
  %v2795 = vmul.f32 %v2787, %v2794
  %v2796 = vsub.f32 %v2778, %v2795
  %v2797 = vmul.f32 %v2796, %v2796
  %v2798 = vsel %vm2720, %v2797, 0.0
  %v2799 = vrot.slane %v2798, 4
  %v2800 = vadd.f32 %v2798, %v2799
  %v2801 = vrot.slane %v2800, 2
  %v2802 = vadd.f32 %v2800, %v2801
  %v2803 = vrot.slane %v2802, 1
  %v2804 = vadd.f32 %v2802, %v2803
  %v2805 = vmul.f32 %v2804, %v2794
  %v2806 = vadd.f32 %v2805, 1e-05
  %v2807 = vrsqrt.pop %v2806
  %v2808 = vmul.f32 %v2807, %v2806
  %v2809 = vmul.f32 %v2808, %v2807
  %v2810 = vmul.f32 0.5, %v2809
  %v2811 = vsub.f32 1.5, %v2810
  %v2812 = vmul.f32 %v2807, %v2811
  %vm2813 = vweird.f32 %v2806
  %vm2814 = vweird.f32 %v2807
  %vm2815 = vmor %vm2813, %vm2814
  %v2816 = vsel %vm2815, %v2807, %v2812
  %v2817 = vmul.f32 %v2796, %v2816
  %v2818 = vperm.slane %v2718, 3
  %v2819 = vmul.f32 %v2817, %v2818
  %v2820 = vperm.slane %v2718, 4
  %v2821 = vadd.f32 %v2819, %v2820
  %v2822 = vmax.f32 %v2821, 0.0
  %v2823 = vpack.c.bf16 %v2822, %v2822
  %v2824 = vld [vmem:[%s14] sm:$0xf]
  %v2825 = vld [vmem:[%s14 + $0x4] sm:$0xf]
  %v2826 = vld [vmem:[%s14 + $0x8] sm:$0xf]
  %v2827 = vld [vmem:[%s14 + $0xc] sm:$0xf]
  %v2828 = vperm.slane %v2718, 5
  %v2833 = vunpack.c.l.b16 %v2824
  %v2834 = vunpack.c.l.b16 %v2825
  %v2835 = vunpack.c.l.b16 %v2826
  %v2836 = vunpack.c.l.b16 %v2827
  %v2837 = vpack.c.b16 %v2834, %v2833
  %v2838 = vpack.c.b16 %v2836, %v2835
  %v2842 = vsel %vm189, %v2823, 0
  %2844 = vmatpush.bf16.msra.mxu0 0
  %2845 = vmatpush.bf16.msra.mxu0 0
  %2846 = vmatpush.bf16.msra.mxu0 0
  %2847 = vmatpush.bf16.msra.mxu0 0
  %2848 = vmatpush.bf16.msra.mxu0 0
  %2849 = vmatpush.bf16.msra.mxu0 0
  %2850 = vmatpush.bf16.msra.mxu0 %v2838
  %2851 = vmatpush.bf16.msra.mxu0 %v2837
  %2852 = vmatmul.bf16.gmra.mxu0 %v2842
  %v2853 = vpop.f32.mrf.mxu0
  %v2854 = vadd.f32 %v2828, %v2853
  %v2855 = vpop.f32.mrf.mxu0
  %2856 = vdwg.mxu0
  %v2857 = vsel %vm2720, %v2854, 0.0
  %v2858 = vrot.slane %v2857, 4
  %v2859 = vadd.f32 %v2857, %v2858
  %v2860 = vrot.slane %v2859, 2
  %v2861 = vadd.f32 %v2859, %v2860
  %v2862 = vrot.slane %v2861, 1
  %v2863 = vadd.f32 %v2861, %v2862
  %v2864 = vmul.f32 %v2863, %v2794
  %v2865 = vsub.f32 %v2854, %v2864
  %v2866 = vmul.f32 %v2865, %v2865
  %v2867 = vsel %vm2720, %v2866, 0.0
  %v2868 = vrot.slane %v2867, 4
  %v2869 = vadd.f32 %v2867, %v2868
  %v2870 = vrot.slane %v2869, 2
  %v2871 = vadd.f32 %v2869, %v2870
  %v2872 = vrot.slane %v2871, 1
  %v2873 = vadd.f32 %v2871, %v2872
  %v2874 = vmul.f32 %v2873, %v2794
  %v2875 = vadd.f32 %v2874, 1e-05
  %v2876 = vrsqrt.pop %v2875
  %v2877 = vmul.f32 %v2876, %v2875
  %v2878 = vmul.f32 %v2877, %v2876
  %v2879 = vmul.f32 0.5, %v2878
  %v2880 = vsub.f32 1.5, %v2879
  %v2881 = vmul.f32 %v2876, %v2880
  %vm2882 = vweird.f32 %v2875
  %vm2883 = vweird.f32 %v2876
  %vm2884 = vmor %vm2882, %vm2883
  %v2885 = vsel %vm2884, %v2876, %v2881
  %v2886 = vmul.f32 %v2865, %v2885
  %v2887 = vperm.slane %v2718, 6
  %v2888 = vmul.f32 %v2886, %v2887
  %v2889 = vperm.slane %v2718, 7
  %v2890 = vadd.f32 %v2888, %v2889
  %v2891 = vmax.f32 %v2890, 0.0
  %v2892 = vpack.c.bf16 %v2891, %v2891
  %v2893 = vld [vmem:[%s15] sm:$0xf]
  %v2894 = vld [vmem:[%s15 + $0x4] sm:$0xf]
  %v2895 = vld [vmem:[%s15 + $0x8] sm:$0xf]
  %v2896 = vld [vmem:[%s15 + $0xc] sm:$0xf]
  %v2897 = vperm.slane %v2719, 0
  %v2902 = vunpack.c.l.b16 %v2893
  %v2903 = vunpack.c.l.b16 %v2894
  %v2904 = vunpack.c.l.b16 %v2895
  %v2905 = vunpack.c.l.b16 %v2896
  %v2906 = vpack.c.b16 %v2903, %v2902
  %v2907 = vpack.c.b16 %v2905, %v2904
  %v2911 = vsel %vm189, %v2892, 0
  %2913 = vmatpush.bf16.msra.mxu0 0
  %2914 = vmatpush.bf16.msra.mxu0 0
  %2915 = vmatpush.bf16.msra.mxu0 0
  %2916 = vmatpush.bf16.msra.mxu0 0
  %2917 = vmatpush.bf16.msra.mxu0 0
  %2918 = vmatpush.bf16.msra.mxu0 0
  %2919 = vmatpush.bf16.msra.mxu0 %v2907
  %2920 = vmatpush.bf16.msra.mxu0 %v2906
  %2921 = vmatmul.bf16.gmra.mxu0 %v2911
  %v2922 = vpop.f32.mrf.mxu0
  %v2923 = vadd.f32 %v2897, %v2922
  %v2924 = vpop.f32.mrf.mxu0
  %2925 = vdwg.mxu0
  %vm2926 = vcmask 1041408
  %v2927 = vsel %vm2926, %v2923, 0.0
  %v2928 = vrot.slane %v2927, 4
  %v2929 = vadd.f32 %v2927, %v2928
  %v2930 = vrot.slane %v2929, 2
  %v2931 = vadd.f32 %v2929, %v2930
  %v2932 = vrot.slane %v2931, 1
  %v2933 = vadd.f32 %v2931, %v2932
  %v2934 = vmul.f32 %v2933, %v2794
  %v2935 = vsub.f32 %v2923, %v2934
  %v2936 = vmul.f32 %v2935, %v2935
  %v2937 = vsel %vm2926, %v2936, 0.0
  %v2938 = vrot.slane %v2937, 4
  %v2939 = vadd.f32 %v2937, %v2938
  %v2940 = vrot.slane %v2939, 2
  %v2941 = vadd.f32 %v2939, %v2940
  %v2942 = vrot.slane %v2941, 1
  %v2943 = vadd.f32 %v2941, %v2942
  %v2944 = vmul.f32 %v2943, %v2794
  %v2945 = vadd.f32 %v2944, 1e-05
  %v2946 = vrsqrt.pop %v2945
  %v2947 = vmul.f32 %v2946, %v2945
  %v2948 = vmul.f32 %v2947, %v2946
  %v2949 = vmul.f32 0.5, %v2948
  %v2950 = vsub.f32 1.5, %v2949
  %v2951 = vmul.f32 %v2946, %v2950
  %vm2952 = vweird.f32 %v2945
  %vm2953 = vweird.f32 %v2946
  %vm2954 = vmor %vm2952, %vm2953
  %v2955 = vsel %vm2954, %v2946, %v2951
  %v2956 = vmul.f32 %v2935, %v2955
  %v2958 = vrot.slane %v2956, 6
  %v2960 = vsel %vm2926, %v2956, %v2958
  %v2961 = vmul.f32 %v2960, %v2960
  %vm2962 = vcmask 1043456
  %v2963 = vsel %vm2962, %v2961, 0.0
  %2964 = vadd.xlane.f32.xlu0 %v2963
  %v2965 = vpop.xlane.xlu0 %2964
  %v2966 = vmax.f32 %v2965, 1e-24
  %v2967 = vrsqrt.pop %v2966
  %v2968 = vmul.f32 %v2967, %v2966
  %v2969 = vmul.f32 %v2968, %v2967
  %v2970 = vmul.f32 0.5, %v2969
  %v2971 = vsub.f32 1.5, %v2970
  %v2972 = vmul.f32 %v2967, %v2971
  %vm2973 = vweird.f32 %v2966
  %vm2974 = vweird.f32 %v2967
  %vm2975 = vmor %vm2973, %vm2974
  %v2976 = vsel %vm2975, %v2967, %v2972
  %v2977 = vmul.f32 %v2960, %v2976
  %2978 = vmatpush.xpose.msra.mxu0 0.0
  %2979 = vmatpush.xpose.msra.mxu0 0.0
  %2980 = vmatpush.xpose.msra.mxu0 0.0
  %2981 = vmatpush.xpose.msra.mxu0 0.0
  %2982 = vmatpush.xpose.msra.mxu0 0.0
  %2983 = vmatpush.xpose.msra.mxu0 0.0
  %2984 = vmatpush.xpose.msra.mxu0 0.0
  %2985 = vmatpush.xpose.msra.mxu0 0.0
  %2986 = vmatpush.xpose.msra.mxu0 0.0
  %2987 = vmatpush.xpose.msra.mxu0 0.0
  %2988 = vmatpush.xpose.msra.mxu0 0.0
  %2989 = vmatpush.xpose.msra.mxu0 0.0
  %2990 = vmatpush.xpose.msra.mxu0 0.0
  %2991 = vmatpush.xpose.msra.mxu0 0.0
  %2992 = vmatpush.xpose.msra.mxu0 0.0
  %2993 = vmatpush.xpose.msra.mxu0 %v2977
  %2994 = vmatmul.f32.gmra.mxu0 %v2977
  %v2995 = vpop.f32.mrf.mxu0
  %v2996 = vadd.f32 0.0, %v2995
  %2997 = vdwg.mxu0
  %v2998 = vmul.f32 %v2996, 14.285714
  %vm2999 = vcmask 27648
  %3000 = vst.msk [vmem:[%s16] sm:$0xf] %vm2999, %v2998
  // Predicated region
  $region66: #{simclr_forward.1} parent=0 // pred_check
    _
  $region67: #{simclr_forward.1} parent=0 // pred_check_branch
    %3002 = sbr.rel (0) target = $region69
  $region68: #{simclr_forward.1} parent=0 // pred_region
    _
  $region69: #{simclr_forward.1} parent=0 // pred_fallthru
    _
  // Predicated region
  $region70: #{simclr_forward.1} parent=0 // pred_check
    _
  $region71: #{simclr_forward.1} parent=0 // pred_check_branch
    %3004 = sbr.rel (0) target = $region73
  $region72: #{simclr_forward.1} parent=0 // pred_region
    _
  $region73: #{simclr_forward.1} parent=0 // pred_fallthru
    _

</llo_original>
